<compile_context>
chip_gen: v5e
topology: v5e:2x2
jax: 0.10.0
libtpu: 0.0.40
codegen_flags: <defaults>
</compile_context>

<pallas_src>
import jax
import jax.numpy as jnp
import numpy as np
from jax.experimental import pallas as pl
from jax.experimental.pallas import tpu as pltpu

EPS = 1e-5  # PyTorch BatchNorm2d default


# -----------------------------------------------------------------------------
# Host-side helper: 1-D linear-resize matrix (align_corners=True)
# -----------------------------------------------------------------------------
def _bilinear_matrix(hin, hout):
    a = np.zeros((hout, hin), np.float32)
    if hout == 1 or hin == 1:           # degenerate dims: no interpolation
        a[:, 0] = 1.0
        return jnp.asarray(a)
    src = np.arange(hout, dtype=np.float64) * (hin - 1) / (hout - 1)
    i0 = np.clip(np.floor(src).astype(np.int64), 0, hin - 1)
    i1 = np.minimum(i0 + 1, hin - 1)
    f = (src - i0).astype(np.float32)
    a[np.arange(hout), i0] += 1.0 - f
    a[np.arange(hout), i1] += f
    return jnp.asarray(a)


# -----------------------------------------------------------------------------
# Pass 1: (per batch sample) upsample + pad + concat + conv1 raw + BN1 partials
# -----------------------------------------------------------------------------
def _up_conv1_kernel(ah_ref, awt_ref, x1_ref, x2_ref, w1_ref,
                     y1_ref, s1_ref, s2_ref, pad_ref):
    f32, bf16 = jnp.float32, jnp.bfloat16
    _, c1, h1, w1 = x1_ref.shape
    _, c2, h, w = x2_ref.shape
    cin = pad_ref.shape[0]
    cmid = w1_ref.shape[1]
    h1u, w1u = 2 * h1, 2 * w1
    hw = h * w
    py0 = (h - h1u) // 2
    px0 = (w - w1u) // 2

    # Padded [x2 ; pad(up(x1))] channel-concat built by writing into a
    # pre-zeroed VMEM scratch (conv border + F.pad region stay zero).  Zeroing
    # is re-done every grid step so the kernel stays correct when the
    # "parallel" batch axis is split across TensorCores (v7x).
    pad_ref[...] = jnp.zeros_like(pad_ref)
    pad_ref[0:c2, 1:h + 1, 1:w + 1] = x2_ref[0].astype(f32)

    # Bilinear x2 upsample (align_corners=True) of this sample's x1:
    #   W axis: one (c1*h1, w1) @ (w1, 2w1) bf16 MXU matmul, f32 accumulate.
    #   H axis: batched-over-c1 (2h1, h1) @ (h1, 2w1) matmuls; the broadcast
    #   interpolation matrix is per-sample (c1*2h1*h1 bf16, a few KiB), unlike
    #   the old whole-batch N*C1 broadcast.
    x1v = x1_ref[0]                                               # (c1,h1,w1) bf16
    xw = jnp.dot(x1v.reshape(c1 * h1, w1), awt_ref[...],
                 preferred_element_type=f32)                      # (c1*h1, 2w1)
    xw = xw.astype(bf16).reshape(c1, h1, w1u)
    ah_b = jnp.broadcast_to(ah_ref[...][None], (c1, h1u, h1))
    xup = jax.lax.dot_general(ah_b, xw, (((2,), (1,)), ((0,), (0,))),
                              preferred_element_type=f32)         # (c1,2h1,2w1)
    pad_ref[c2:cin, 1 + py0:1 + py0 + h1u, 1 + px0:1 + px0 + w1u] = xup

    # conv1 as a 9-tap K-loop: acc += W_k @ x_shift_k, each tap a single
    # lane-dense 2-D matmul (cmid, cin) @ (cin, h*w).  No 9x im2col buffer.
    xp = pad_ref[...].astype(bf16)                                # (cin,h+2,w+2)
    acc = jnp.zeros((cmid, hw), f32)
    for k in range(9):
        ky, kx = k // 3, k % 3
        tap = xp[:, ky:ky + h, kx:kx + w].reshape(cin, hw)
        acc = acc + jnp.dot(w1_ref[k], tap, preferred_element_type=f32)

    # Conv bias dropped: batch-statistic BN right after cancels it exactly.
    y1_ref[0] = acc                                               # raw conv1 (f32)
    s1_ref[0] = jnp.sum(acc, axis=1, keepdims=True)               # BN1 partials
    s2_ref[0] = jnp.sum(acc * acc, axis=1, keepdims=True)


# -----------------------------------------------------------------------------
# Pass 2: (per batch sample) BN1 + ReLU + conv2 raw + BN2 partials
# -----------------------------------------------------------------------------
def _up_conv2_kernel(y1_ref, sc1_ref, sh1_ref, w2_ref,
                     y2_ref, s1_ref, s2_ref, pad_ref):
    f32, bf16 = jnp.float32, jnp.bfloat16
    cmid = pad_ref.shape[0]
    h = pad_ref.shape[1] - 2
    w = pad_ref.shape[2] - 2
    cout = w2_ref.shape[1]
    hw = h * w

    # BN1 (global scale/shift precomputed from summed batch stats) + ReLU, f32.
    h1a = jnp.maximum(y1_ref[0] * sc1_ref[...] + sh1_ref[...], 0.0)

    pad_ref[...] = jnp.zeros_like(pad_ref)
    pad_ref[:, 1:h + 1, 1:w + 1] = h1a.reshape(cmid, h, w)

    xp = pad_ref[...].astype(bf16)
    acc = jnp.zeros((cout, hw), f32)
    for k in range(9):
        ky, kx = k // 3, k % 3
        tap = xp[:, ky:ky + h, kx:kx + w].reshape(cmid, hw)
        acc = acc + jnp.dot(w2_ref[k], tap, preferred_element_type=f32)

    y2_ref[0] = acc                                               # raw conv2 (f32)
    s1_ref[0] = jnp.sum(acc, axis=1, keepdims=True)               # BN2 partials
    s2_ref[0] = jnp.sum(acc * acc, axis=1, keepdims=True)


# -----------------------------------------------------------------------------
# Pass 3: (per batch sample) BN2 + ReLU, lane-dense store
# -----------------------------------------------------------------------------
def _bn_relu_kernel(y_ref, sc_ref, sh_ref, o_ref):
    o_ref[0] = jnp.maximum(y_ref[0] * sc_ref[...] + sh_ref[...], 0.0)


# -----------------------------------------------------------------------------
# BN finalize: per-sample partial sums -> per-channel scale/shift (tiny, f32)
# -----------------------------------------------------------------------------
def _bn_scale_shift(s1, s2, gamma, beta, count):
    s1t = jnp.sum(s1, axis=0)                         # (C, 1)
    s2t = jnp.sum(s2, axis=0)
    mean = s1t / count
    # TODO(synk): one-pass E[x^2]-mean^2 can cancel for huge N*H*W; switch to a
    # two-pass / Welford tile accumulation if counts get very large.
    var = jnp.maximum(s2t / count - mean * mean, 0.0)
    scale = gamma.reshape(-1, 1).astype(jnp.float32) * jax.lax.rsqrt(var + EPS)
    shift = beta.reshape(-1, 1).astype(jnp.float32) - mean * scale
    return scale, shift


# -----------------------------------------------------------------------------
# Public wrapper (NCHW in, NCHW out)
# -----------------------------------------------------------------------------
def up_forward(params, x1, x2):
    f32, bf16 = jnp.float32, jnp.bfloat16
    n, c1, h1, w1 = x1.shape
    n2, c2, h, w = x2.shape
    assert n == n2
    h1u, w1u = 2 * h1, 2 * w1
    if h < h1u or w < w1u:
        # TODO(synk): negative pad (crop) not supported.
        raise NotImplementedError("negative pad (crop) not supported")
    cin = c1 + c2
    cmid = params["w1"].shape[2]
    cout = params["w2"].shape[2]
    assert params["w1"].shape == (9, cin, cmid)
    assert params["w2"].shape == (9, cmid, cout)
    hw = h * w

    # bf16 activations + weights at the kernel boundary (halves input DMA);
    # accumulators / BN statistics stay f32 inside the kernels.
    x1b = x1.astype(bf16)
    x2b = x2.astype(bf16)
    ah = _bilinear_matrix(h1, h1u).astype(bf16)                  # (2h1, h1)
    awt = _bilinear_matrix(w1, w1u).T.astype(bf16)               # (w1, 2w1)
    w1t = jnp.transpose(params["w1"], (0, 2, 1)).astype(bf16)    # (9, cmid, cin)
    w2t = jnp.transpose(params["w2"], (0, 2, 1)).astype(bf16)    # (9, cout, cmid)

    cparams = pltpu.CompilerParams(
        dimension_semantics=("parallel",),       # v7x: batch sharded over 2 TCs
        vmem_limit_bytes=32 * 1024 * 1024)

    def full(shape):
        nd = len(shape)
        return pl.BlockSpec(tuple(shape), lambda i, _nd=nd: (0,) * _nd)

    def per_n(shape):
        nd = len(shape)
        return pl.BlockSpec((1,) + tuple(shape[1:]),
                            lambda i, _nd=nd: (i,) + (0,) * (_nd - 1))

    # ---- pass 1: upsample + pad + concat + conv1 (raw) + BN1 partial sums ----
    y1_raw, s11, s21 = pl.pallas_call(
        _up_conv1_kernel,
        grid=(n,),
        in_specs=[full((h1u, h1)), full((w1, w1u)),
                  per_n((n, c1, h1, w1)), per_n((n, c2, h, w)),
                  full((9, cmid, cin))],
        out_specs=(per_n((n, cmid, hw)),
                   per_n((n, cmid, 1)), per_n((n, cmid, 1))),
        out_shape=(jax.ShapeDtypeStruct((n, cmid, hw), f32),
                   jax.ShapeDtypeStruct((n, cmid, 1), f32),
                   jax.ShapeDtypeStruct((n, cmid, 1), f32)),
        scratch_shapes=[pltpu.VMEM((cin, h + 2, w + 2), f32)],
        compiler_params=cparams,
    )(ah, awt, x1b, x2b, w1t)

    scale1, shift1 = _bn_scale_shift(s11, s21, params["g1"], params["be1"],
                                     float(n * hw))

    # ---- pass 2: BN1 + ReLU + conv2 (raw) + BN2 partial sums -----------------
    y2_raw, s12, s22 = pl.pallas_call(
        _up_conv2_kernel,
        grid=(n,),
        in_specs=[per_n((n, cmid, hw)), full((cmid, 1)), full((cmid, 1)),
                  full((9, cout, cmid))],
        out_specs=(per_n((n, cout, hw)),
                   per_n((n, cout, 1)), per_n((n, cout, 1))),
        out_shape=(jax.ShapeDtypeStruct((n, cout, hw), f32),
                   jax.ShapeDtypeStruct((n, cout, 1), f32),
                   jax.ShapeDtypeStruct((n, cout, 1), f32)),
        scratch_shapes=[pltpu.VMEM((cmid, h + 2, w + 2), f32)],
        compiler_params=cparams,
    )(y1_raw, scale1, shift1, w2t)

    scale2, shift2 = _bn_scale_shift(s12, s22, params["g2"], params["be2"],
                                     float(n * hw))

    # ---- pass 3: BN2 + ReLU (elementwise), lane-dense (N, COUT, H*W) store ---
    out_flat = pl.pallas_call(
        _bn_relu_kernel,
        grid=(n,),
        in_specs=[per_n((n, cout, hw)), full((cout, 1)), full((cout, 1))],
        out_specs=per_n((n, cout, hw)),
        out_shape=jax.ShapeDtypeStruct((n, cout, hw), f32),
        compiler_params=cparams,
    )(y2_raw, scale2, shift2)

    # (N, COUT, H*W) -> (N, COUT, H, W): pure reshape, no transpose/relayout.
    return out_flat.reshape(n, cout, h, w)


# -----------------------------------------------------------------------------
# Pure-JAX reference (lax.conv; same bf16-in / f32-accumulate convention)
# -----------------------------------------------------------------------------
def ref_forward(params, x1, x2):
    f32, bf16 = jnp.float32, jnp.bfloat16
    hi = jax.lax.Precision.HIGHEST
    x1 = x1.astype(f32)
    x2 = x2.astype(f32)
    n, c1, h1, w1 = x1.shape
    ah = _bilinear_matrix(h1, 2 * h1).astype(bf16).astype(f32)
    awt = _bilinear_matrix(w1, 2 * w1).T.astype(bf16).astype(f32)
    x1b = x1.astype(bf16).astype(f32)
    xw = jnp.einsum('nchw,wp->nchp', x1b, awt, precision=hi)
    xw = xw.astype(bf16).astype(f32)
    x1u = jnp.einsum('oh,nchp->ncop', ah, xw, precision=hi)
    dy = x2.shape[2] - x1u.shape[2]
    dx = x2.shape[3] - x1u.shape[3]
    x1u = jnp.pad(x1u, ((0, 0), (0, 0),
                        (dy // 2, dy - dy // 2), (dx // 2, dx - dx // 2)))
    x = jnp.concatenate([x2, x1u], axis=1)
    x = jnp.transpose(x, (0, 2, 3, 1))                       # NHWC

    def conv_bn_relu(x, w9, b, g, be):
        ker = w9.reshape(3, 3, w9.shape[1], w9.shape[2]).astype(bf16)
        y = jax.lax.conv_general_dilated(
            x.astype(bf16), ker, (1, 1), 'SAME',
            dimension_numbers=('NHWC', 'HWIO', 'NHWC'),
            preferred_element_type=f32) + b
        mean = y.mean(axis=(0, 1, 2))
        var = ((y - mean) ** 2).mean(axis=(0, 1, 2))
        return jnp.maximum((y - mean) * jax.lax.rsqrt(var + EPS) * g + be, 0.0)

    x = conv_bn_relu(x, params["w1"], params["b1"], params["g1"], params["be1"])
    x = conv_bn_relu(x, params["w2"], params["b2"], params["g2"], params["be2"])
    return jnp.transpose(x, (0, 3, 1, 2))


# -----------------------------------------------------------------------------
# main
# -----------------------------------------------------------------------------
if __name__ == "__main__":
    # Module config: Up(in_channels=8, out_channels=4, bilinear=True)
    # -> DoubleConv(8, 4, mid_channels=4)
    N = 2
    C1, H1, W1 = 4, 8, 8        # x1: coarse feature map, gets upsampled 2x
    C2, H2, W2 = 4, 16, 16      # x2: skip connection
    CIN = C1 + C2               # 8
    CMID = CIN // 2             # 4
    COUT = 4

    key = jax.random.PRNGKey(0)
    ks = jax.random.split(key, 10)
    params = {
        # conv weights stored as (9, Cin, Cout) == HWIO flattened over 3x3 taps
        "w1": 0.1 * jax.random.normal(ks[0], (9, CIN, CMID), jnp.float32),
        "b1": 0.05 * jax.random.normal(ks[1], (CMID,), jnp.float32),
        "g1": 1.0 + 0.1 * jax.random.normal(ks[2], (CMID,), jnp.float32),
        "be1": 0.05 * jax.random.normal(ks[3], (CMID,), jnp.float32),
        "w2": 0.1 * jax.random.normal(ks[4], (9, CMID, COUT), jnp.float32),
        "b2": 0.05 * jax.random.normal(ks[5], (COUT,), jnp.float32),
        "g2": 1.0 + 0.1 * jax.random.normal(ks[6], (COUT,), jnp.float32),
        "be2": 0.05 * jax.random.normal(ks[7], (COUT,), jnp.float32),
    }

    x1 = jax.random.normal(ks[8], (N, C1, H1, W1), jnp.float32)
    x2 = jax.random.normal(ks[9], (N, C2, H2, W2), jnp.float32)

    out = jax.block_until_ready(up_forward(params, x1, x2))
    ref = jax.block_until_ready(ref_forward(params, x1, x2))

    assert out.shape == (N, COUT, H2, W2), out.shape
    err = float(jnp.max(jnp.abs(out - ref)))
    if not np.isfinite(err) or err > 2e-2:
        raise RuntimeError(f"mismatch vs reference: max abs err = {err}")

    print("KERNEL_OK")
</pallas_src>

<mosaic_0001>
module attributes {stable_mosaic.version = 11 : i64} {
  func.func @_up_conv1_kernel(%arg0: i32, %arg1: memref<16x8xbf16, #tpu.memory_space<vmem>>, %arg2: memref<8x16xbf16, #tpu.memory_space<vmem>>, %arg3: memref<1x4x8x8xbf16, #tpu.memory_space<vmem>>, %arg4: memref<1x4x16x16xbf16, #tpu.memory_space<vmem>>, %arg5: memref<9x4x8xbf16, #tpu.memory_space<vmem>>, %arg6: memref<1x4x256xf32, #tpu.memory_space<vmem>>, %arg7: memref<1x4x1xf32, #tpu.memory_space<vmem>>, %arg8: memref<1x4x1xf32, #tpu.memory_space<vmem>>, %arg9: memref<8x18x18xf32, #tpu.memory_space<vmem>>) attributes {dimension_semantics = [#tpu.dimension_semantics<parallel>], iteration_bounds = array<i64: 2>, scalar_prefetch = 0 : i64, scratch_operands = 1 : i64, tpu.core_type = #tpu.core_type<tc>, window_params = [{pipeline_mode = #tpu.pipeline_mode<synchronous>, transform_indices = @transform_0, window_bounds = array<i64: 16, 8>}, {pipeline_mode = #tpu.pipeline_mode<synchronous>, transform_indices = @transform_1, window_bounds = array<i64: 8, 16>}, {transform_indices = @transform_2, window_bounds = array<i64: 1, 4, 8, 8>}, {transform_indices = @transform_3, window_bounds = array<i64: 1, 4, 16, 16>}, {pipeline_mode = #tpu.pipeline_mode<synchronous>, transform_indices = @transform_4, window_bounds = array<i64: 9, 4, 8>}, {transform_indices = @transform_5, window_bounds = array<i64: 1, 4, 256>}, {transform_indices = @transform_6, window_bounds = array<i64: 1, 4, 1>}, {transform_indices = @transform_7, window_bounds = array<i64: 1, 4, 1>}]} {
    %cst = arith.constant 0.000000e+00 : f32
    %0 = vector.broadcast %cst : f32 to vector<8x18x18xf32>
    %c0 = arith.constant 0 : index
    %c0_0 = arith.constant 0 : index
    %c0_1 = arith.constant 0 : index
    %1 = vector.load %arg9[%c0, %c0_0, %c0_1] : memref<8x18x18xf32, #tpu.memory_space<vmem>>, vector<8x18x18xf32>
    tpu.vector_store %arg9[%c0, %c0_0, %c0_1], %0 {strides = array<i32>} : memref<8x18x18xf32, #tpu.memory_space<vmem>>, vector<8x18x18xf32>,
    %c0_2 = arith.constant 0 : index
    %c0_3 = arith.constant 0 : index
    %c0_4 = arith.constant 0 : index
    %c0_5 = arith.constant 0 : index
    %2 = vector.load %arg4[%c0_2, %c0_3, %c0_4, %c0_5] : memref<1x4x16x16xbf16, #tpu.memory_space<vmem>>, vector<1x4x16x16xbf16>
    %3 = vector.shape_cast %2 : vector<1x4x16x16xbf16> to vector<4x16x16xbf16>
    %4 = arith.extf %3 : vector<4x16x16xbf16> to vector<4x16x16xf32>
    %c0_6 = arith.constant 0 : index
    %c1 = arith.constant 1 : index
    %c1_7 = arith.constant 1 : index
    %5 = vector.load %arg9[%c0_6, %c1, %c1_7] : memref<8x18x18xf32, #tpu.memory_space<vmem>>, vector<4x16x16xf32>
    tpu.vector_store %arg9[%c0_6, %c1, %c1_7], %4 {strides = array<i32>} : memref<8x18x18xf32, #tpu.memory_space<vmem>>, vector<4x16x16xf32>,
    %c0_8 = arith.constant 0 : index
    %c0_9 = arith.constant 0 : index
    %c0_10 = arith.constant 0 : index
    %c0_11 = arith.constant 0 : index
    %6 = vector.load %arg3[%c0_8, %c0_9, %c0_10, %c0_11] : memref<1x4x8x8xbf16, #tpu.memory_space<vmem>>, vector<1x4x8x8xbf16>
    %7 = vector.shape_cast %6 : vector<1x4x8x8xbf16> to vector<4x8x8xbf16>
    %8 = vector.shape_cast %7 : vector<4x8x8xbf16> to vector<32x8xbf16>
    %c0_12 = arith.constant 0 : index
    %c0_13 = arith.constant 0 : index
    %9 = vector.load %arg2[%c0_12, %c0_13] : memref<8x16xbf16, #tpu.memory_space<vmem>>, vector<8x16xbf16>
    %cst_14 = arith.constant dense<0.000000e+00> : vector<32x16xf32>
    %10 = tpu.matmul %8, %9, %cst_14 {dimension_numbers = #tpu.dot_dimension_numbers<[1], [0], [0], [1], [0, 0, 1, 1], [], []>} : vector<32x8xbf16>, vector<8x16xbf16>, vector<32x16xf32> -> vector<32x16xf32>
    %11 = arith.truncf %10 : vector<32x16xf32> to vector<32x16xbf16>
    %12 = vector.shape_cast %11 : vector<32x16xbf16> to vector<4x8x16xbf16>
    %c0_15 = arith.constant 0 : index
    %c0_16 = arith.constant 0 : index
    %13 = vector.load %arg1[%c0_15, %c0_16] : memref<16x8xbf16, #tpu.memory_space<vmem>>, vector<16x8xbf16>
    %14 = vector.shape_cast %13 : vector<16x8xbf16> to vector<1x16x8xbf16>
    %15 = vector.shape_cast %14 : vector<1x16x8xbf16> to vector<1x16x8xbf16>
    %16 = vector.broadcast %15 : vector<1x16x8xbf16> to vector<4x16x8xbf16>
    %cst_17 = arith.constant dense<0.000000e+00> : vector<4x16x16xf32>
    %17 = tpu.matmul %16, %12, %cst_17 {dimension_numbers = #tpu.dot_dimension_numbers<[2], [1], [1], [2], [0, 0, 0, 1, 1, 2], [0], [0]>} : vector<4x16x8xbf16>, vector<4x8x16xbf16>, vector<4x16x16xf32> -> vector<4x16x16xf32>
    %c4 = arith.constant 4 : index
    %c1_18 = arith.constant 1 : index
    %c1_19 = arith.constant 1 : index
    %18 = vector.load %arg9[%c4, %c1_18, %c1_19] : memref<8x18x18xf32, #tpu.memory_space<vmem>>, vector<4x16x16xf32>
    tpu.vector_store %arg9[%c4, %c1_18, %c1_19], %17 {strides = array<i32>} : memref<8x18x18xf32, #tpu.memory_space<vmem>>, vector<4x16x16xf32>,
    %c0_20 = arith.constant 0 : index
    %c0_21 = arith.constant 0 : index
    %c0_22 = arith.constant 0 : index
    %19 = vector.load %arg9[%c0_20, %c0_21, %c0_22] : memref<8x18x18xf32, #tpu.memory_space<vmem>>, vector<8x18x18xf32>
    %20 = arith.truncf %19 : vector<8x18x18xf32> to vector<8x18x18xbf16>
    %cst_23 = arith.constant 0.000000e+00 : f32
    %21 = vector.broadcast %cst_23 : f32 to vector<4x256xf32>
    %22 = vector.extract_strided_slice %20 {offsets = [0, 0, 0], sizes = [8, 16, 16], strides = [1, 1, 1]} : vector<8x18x18xbf16> to vector<8x16x16xbf16>
    %23 = vector.shape_cast %22 : vector<8x16x16xbf16> to vector<8x256xbf16>
    %c0_24 = arith.constant 0 : index
    %c0_25 = arith.constant 0 : index
    %c0_26 = arith.constant 0 : index
    %24 = vector.load %arg5[%c0_24, %c0_25, %c0_26] : memref<9x4x8xbf16, #tpu.memory_space<vmem>>, vector<1x4x8xbf16>
    %25 = vector.shape_cast %24 : vector<1x4x8xbf16> to vector<4x8xbf16>
    %cst_27 = arith.constant dense<0.000000e+00> : vector<4x256xf32>
    %26 = tpu.matmul %25, %23, %cst_27 {dimension_numbers = #tpu.dot_dimension_numbers<[1], [0], [0], [1], [0, 0, 1, 1], [], []>} : vector<4x8xbf16>, vector<8x256xbf16>, vector<4x256xf32> -> vector<4x256xf32>
    %27 = arith.addf %21, %26 : vector<4x256xf32>
    %28 = vector.extract_strided_slice %20 {offsets = [0, 0, 1], sizes = [8, 16, 16], strides = [1, 1, 1]} : vector<8x18x18xbf16> to vector<8x16x16xbf16>
    %29 = vector.shape_cast %28 : vector<8x16x16xbf16> to vector<8x256xbf16>
    %c1_28 = arith.constant 1 : index
    %c0_29 = arith.constant 0 : index
    %c0_30 = arith.constant 0 : index
    %30 = vector.load %arg5[%c1_28, %c0_29, %c0_30] : memref<9x4x8xbf16, #tpu.memory_space<vmem>>, vector<1x4x8xbf16>
    %31 = vector.shape_cast %30 : vector<1x4x8xbf16> to vector<4x8xbf16>
    %cst_31 = arith.constant dense<0.000000e+00> : vector<4x256xf32>
    %32 = tpu.matmul %31, %29, %cst_31 {dimension_numbers = #tpu.dot_dimension_numbers<[1], [0], [0], [1], [0, 0, 1, 1], [], []>} : vector<4x8xbf16>, vector<8x256xbf16>, vector<4x256xf32> -> vector<4x256xf32>
    %33 = arith.addf %27, %32 : vector<4x256xf32>
    %34 = vector.extract_strided_slice %20 {offsets = [0, 0, 2], sizes = [8, 16, 16], strides = [1, 1, 1]} : vector<8x18x18xbf16> to vector<8x16x16xbf16>
    %35 = vector.shape_cast %34 : vector<8x16x16xbf16> to vector<8x256xbf16>
    %c2 = arith.constant 2 : index
    %c0_32 = arith.constant 0 : index
    %c0_33 = arith.constant 0 : index
    %36 = vector.load %arg5[%c2, %c0_32, %c0_33] : memref<9x4x8xbf16, #tpu.memory_space<vmem>>, vector<1x4x8xbf16>
    %37 = vector.shape_cast %36 : vector<1x4x8xbf16> to vector<4x8xbf16>
    %cst_34 = arith.constant dense<0.000000e+00> : vector<4x256xf32>
    %38 = tpu.matmul %37, %35, %cst_34 {dimension_numbers = #tpu.dot_dimension_numbers<[1], [0], [0], [1], [0, 0, 1, 1], [], []>} : vector<4x8xbf16>, vector<8x256xbf16>, vector<4x256xf32> -> vector<4x256xf32>
    %39 = arith.addf %33, %38 : vector<4x256xf32>
    %40 = vector.extract_strided_slice %20 {offsets = [0, 1, 0], sizes = [8, 16, 16], strides = [1, 1, 1]} : vector<8x18x18xbf16> to vector<8x16x16xbf16>
    %41 = vector.shape_cast %40 : vector<8x16x16xbf16> to vector<8x256xbf16>
    %c3 = arith.constant 3 : index
    %c0_35 = arith.constant 0 : index
    %c0_36 = arith.constant 0 : index
    %42 = vector.load %arg5[%c3, %c0_35, %c0_36] : memref<9x4x8xbf16, #tpu.memory_space<vmem>>, vector<1x4x8xbf16>
    %43 = vector.shape_cast %42 : vector<1x4x8xbf16> to vector<4x8xbf16>
    %cst_37 = arith.constant dense<0.000000e+00> : vector<4x256xf32>
    %44 = tpu.matmul %43, %41, %cst_37 {dimension_numbers = #tpu.dot_dimension_numbers<[1], [0], [0], [1], [0, 0, 1, 1], [], []>} : vector<4x8xbf16>, vector<8x256xbf16>, vector<4x256xf32> -> vector<4x256xf32>
    %45 = arith.addf %39, %44 : vector<4x256xf32>
    %46 = vector.extract_strided_slice %20 {offsets = [0, 1, 1], sizes = [8, 16, 16], strides = [1, 1, 1]} : vector<8x18x18xbf16> to vector<8x16x16xbf16>
    %47 = vector.shape_cast %46 : vector<8x16x16xbf16> to vector<8x256xbf16>
    %c4_38 = arith.constant 4 : index
    %c0_39 = arith.constant 0 : index
    %c0_40 = arith.constant 0 : index
    %48 = vector.load %arg5[%c4_38, %c0_39, %c0_40] : memref<9x4x8xbf16, #tpu.memory_space<vmem>>, vector<1x4x8xbf16>
    %49 = vector.shape_cast %48 : vector<1x4x8xbf16> to vector<4x8xbf16>
    %cst_41 = arith.constant dense<0.000000e+00> : vector<4x256xf32>
    %50 = tpu.matmul %49, %47, %cst_41 {dimension_numbers = #tpu.dot_dimension_numbers<[1], [0], [0], [1], [0, 0, 1, 1], [], []>} : vector<4x8xbf16>, vector<8x256xbf16>, vector<4x256xf32> -> vector<4x256xf32>
    %51 = arith.addf %45, %50 : vector<4x256xf32>
    %52 = vector.extract_strided_slice %20 {offsets = [0, 1, 2], sizes = [8, 16, 16], strides = [1, 1, 1]} : vector<8x18x18xbf16> to vector<8x16x16xbf16>
    %53 = vector.shape_cast %52 : vector<8x16x16xbf16> to vector<8x256xbf16>
    %c5 = arith.constant 5 : index
    %c0_42 = arith.constant 0 : index
    %c0_43 = arith.constant 0 : index
    %54 = vector.load %arg5[%c5, %c0_42, %c0_43] : memref<9x4x8xbf16, #tpu.memory_space<vmem>>, vector<1x4x8xbf16>
    %55 = vector.shape_cast %54 : vector<1x4x8xbf16> to vector<4x8xbf16>
    %cst_44 = arith.constant dense<0.000000e+00> : vector<4x256xf32>
    %56 = tpu.matmul %55, %53, %cst_44 {dimension_numbers = #tpu.dot_dimension_numbers<[1], [0], [0], [1], [0, 0, 1, 1], [], []>} : vector<4x8xbf16>, vector<8x256xbf16>, vector<4x256xf32> -> vector<4x256xf32>
    %57 = arith.addf %51, %56 : vector<4x256xf32>
    %58 = vector.extract_strided_slice %20 {offsets = [0, 2, 0], sizes = [8, 16, 16], strides = [1, 1, 1]} : vector<8x18x18xbf16> to vector<8x16x16xbf16>
    %59 = vector.shape_cast %58 : vector<8x16x16xbf16> to vector<8x256xbf16>
    %c6 = arith.constant 6 : index
    %c0_45 = arith.constant 0 : index
    %c0_46 = arith.constant 0 : index
    %60 = vector.load %arg5[%c6, %c0_45, %c0_46] : memref<9x4x8xbf16, #tpu.memory_space<vmem>>, vector<1x4x8xbf16>
    %61 = vector.shape_cast %60 : vector<1x4x8xbf16> to vector<4x8xbf16>
    %cst_47 = arith.constant dense<0.000000e+00> : vector<4x256xf32>
    %62 = tpu.matmul %61, %59, %cst_47 {dimension_numbers = #tpu.dot_dimension_numbers<[1], [0], [0], [1], [0, 0, 1, 1], [], []>} : vector<4x8xbf16>, vector<8x256xbf16>, vector<4x256xf32> -> vector<4x256xf32>
    %63 = arith.addf %57, %62 : vector<4x256xf32>
    %64 = vector.extract_strided_slice %20 {offsets = [0, 2, 1], sizes = [8, 16, 16], strides = [1, 1, 1]} : vector<8x18x18xbf16> to vector<8x16x16xbf16>
    %65 = vector.shape_cast %64 : vector<8x16x16xbf16> to vector<8x256xbf16>
    %c7 = arith.constant 7 : index
    %c0_48 = arith.constant 0 : index
    %c0_49 = arith.constant 0 : index
    %66 = vector.load %arg5[%c7, %c0_48, %c0_49] : memref<9x4x8xbf16, #tpu.memory_space<vmem>>, vector<1x4x8xbf16>
    %67 = vector.shape_cast %66 : vector<1x4x8xbf16> to vector<4x8xbf16>
    %cst_50 = arith.constant dense<0.000000e+00> : vector<4x256xf32>
    %68 = tpu.matmul %67, %65, %cst_50 {dimension_numbers = #tpu.dot_dimension_numbers<[1], [0], [0], [1], [0, 0, 1, 1], [], []>} : vector<4x8xbf16>, vector<8x256xbf16>, vector<4x256xf32> -> vector<4x256xf32>
    %69 = arith.addf %63, %68 : vector<4x256xf32>
    %70 = vector.extract_strided_slice %20 {offsets = [0, 2, 2], sizes = [8, 16, 16], strides = [1, 1, 1]} : vector<8x18x18xbf16> to vector<8x16x16xbf16>
    %71 = vector.shape_cast %70 : vector<8x16x16xbf16> to vector<8x256xbf16>
    %c8 = arith.constant 8 : index
    %c0_51 = arith.constant 0 : index
    %c0_52 = arith.constant 0 : index
    %72 = vector.load %arg5[%c8, %c0_51, %c0_52] : memref<9x4x8xbf16, #tpu.memory_space<vmem>>, vector<1x4x8xbf16>
    %73 = vector.shape_cast %72 : vector<1x4x8xbf16> to vector<4x8xbf16>
    %cst_53 = arith.constant dense<0.000000e+00> : vector<4x256xf32>
    %74 = tpu.matmul %73, %71, %cst_53 {dimension_numbers = #tpu.dot_dimension_numbers<[1], [0], [0], [1], [0, 0, 1, 1], [], []>} : vector<4x8xbf16>, vector<8x256xbf16>, vector<4x256xf32> -> vector<4x256xf32>
    %75 = arith.addf %69, %74 : vector<4x256xf32>
    %c0_54 = arith.constant 0 : index
    %c0_55 = arith.constant 0 : index
    %c0_56 = arith.constant 0 : index
    %76 = vector.load %arg6[%c0_54, %c0_55, %c0_56] : memref<1x4x256xf32, #tpu.memory_space<vmem>>, vector<1x4x256xf32>
    %77 = vector.shape_cast %76 : vector<1x4x256xf32> to vector<4x256xf32>
    %78 = vector.shape_cast %75 : vector<4x256xf32> to vector<1x4x256xf32>
    tpu.vector_store %arg6[%c0_54, %c0_55, %c0_56], %78 {strides = array<i32>} : memref<1x4x256xf32, #tpu.memory_space<vmem>>, vector<1x4x256xf32>,
    %cst_57 = arith.constant dense<0.000000e+00> : vector<4xf32>
    %79 = vector.multi_reduction <add>, %75, %cst_57 [1] : vector<4x256xf32> to vector<4xf32>
    %80 = vector.shape_cast %79 : vector<4xf32> to vector<4x1xf32>
    %c0_58 = arith.constant 0 : index
    %c0_59 = arith.constant 0 : index
    %c0_60 = arith.constant 0 : index
    %81 = vector.load %arg7[%c0_58, %c0_59, %c0_60] : memref<1x4x1xf32, #tpu.memory_space<vmem>>, vector<1x4x1xf32>
    %82 = vector.shape_cast %81 : vector<1x4x1xf32> to vector<4x1xf32>
    %83 = vector.shape_cast %80 : vector<4x1xf32> to vector<1x4x1xf32>
    tpu.vector_store %arg7[%c0_58, %c0_59, %c0_60], %83 {strides = array<i32>} : memref<1x4x1xf32, #tpu.memory_space<vmem>>, vector<1x4x1xf32>,
    %84 = arith.mulf %75, %75 : vector<4x256xf32>
    %cst_61 = arith.constant dense<0.000000e+00> : vector<4xf32>
    %85 = vector.multi_reduction <add>, %84, %cst_61 [1] : vector<4x256xf32> to vector<4xf32>
    %86 = vector.shape_cast %85 : vector<4xf32> to vector<4x1xf32>
    %c0_62 = arith.constant 0 : index
    %c0_63 = arith.constant 0 : index
    %c0_64 = arith.constant 0 : index
    %87 = vector.load %arg8[%c0_62, %c0_63, %c0_64] : memref<1x4x1xf32, #tpu.memory_space<vmem>>, vector<1x4x1xf32>
    %88 = vector.shape_cast %87 : vector<1x4x1xf32> to vector<4x1xf32>
    %89 = vector.shape_cast %86 : vector<4x1xf32> to vector<1x4x1xf32>
    tpu.vector_store %arg8[%c0_62, %c0_63, %c0_64], %89 {strides = array<i32>} : memref<1x4x1xf32, #tpu.memory_space<vmem>>, vector<1x4x1xf32>,
    return
  }
  func.func @transform_0(%arg0: i32) -> (i32, i32) {
    %c0_i32 = arith.constant 0 : i32
    %c0_i32_0 = arith.constant 0 : i32
    %c0_i32_1 = arith.constant 0 : i32
    return %c0_i32, %c0_i32_0 : i32, i32
  }
  func.func @transform_1(%arg0: i32) -> (i32, i32) {
    %c0_i32 = arith.constant 0 : i32
    %c0_i32_0 = arith.constant 0 : i32
    %c0_i32_1 = arith.constant 0 : i32
    return %c0_i32, %c0_i32_0 : i32, i32
  }
  func.func @transform_2(%arg0: i32) -> (i32, i32, i32, i32) {
    %c0_i32 = arith.constant 0 : i32
    %c0_i32_0 = arith.constant 0 : i32
    %c0_i32_1 = arith.constant 0 : i32
    %c0_i32_2 = arith.constant 0 : i32
    return %arg0, %c0_i32, %c0_i32_0, %c0_i32_1 : i32, i32, i32, i32
  }
  func.func @transform_3(%arg0: i32) -> (i32, i32, i32, i32) {
    %c0_i32 = arith.constant 0 : i32
    %c0_i32_0 = arith.constant 0 : i32
    %c0_i32_1 = arith.constant 0 : i32
    %c0_i32_2 = arith.constant 0 : i32
    return %arg0, %c0_i32, %c0_i32_0, %c0_i32_1 : i32, i32, i32, i32
  }
  func.func @transform_4(%arg0: i32) -> (i32, i32, i32) {
    %c0_i32 = arith.constant 0 : i32
    %c0_i32_0 = arith.constant 0 : i32
    %c0_i32_1 = arith.constant 0 : i32
    %c0_i32_2 = arith.constant 0 : i32
    return %c0_i32, %c0_i32_0, %c0_i32_1 : i32, i32, i32
  }
  func.func @transform_5(%arg0: i32) -> (i32, i32, i32) {
    %c0_i32 = arith.constant 0 : i32
    %c0_i32_0 = arith.constant 0 : i32
    %c0_i32_1 = arith.constant 0 : i32
    return %arg0, %c0_i32, %c0_i32_0 : i32, i32, i32
  }
  func.func @transform_6(%arg0: i32) -> (i32, i32, i32) {
    %c0_i32 = arith.constant 0 : i32
    %c0_i32_0 = arith.constant 0 : i32
    %c0_i32_1 = arith.constant 0 : i32
    return %arg0, %c0_i32, %c0_i32_0 : i32, i32, i32
  }
  func.func @transform_7(%arg0: i32) -> (i32, i32, i32) {
    %c0_i32 = arith.constant 0 : i32
    %c0_i32_0 = arith.constant 0 : i32
    %c0_i32_1 = arith.constant 0 : i32
    return %arg0, %c0_i32, %c0_i32_0 : i32, i32, i32
  }
}

</mosaic_0001>

<llo_original>
// kernel: tpu_custom_call.1
$region0: #{tpu_custom_call.1}
  #allocation0 [shape = 'u32[]', space=smem, size = 0x4, offset = 0x4, fixed_abs, tag = 'smem constant byte address 0x4 - core index']
  #allocation1 [shape = 'u32[72,128]{1,0:T(1,128)}', space=vmem, size = 0x9000, scoped, tag = 'internal scratch']
  #allocation2 [shape = 'f32[8,18,18]{2,1,0:T(8,128)}', space=vmem, size = 0x18000, scoped, tag = 'scratch operand']
  %s0 = inlined_call_operand.vmem [shape: bf16[16,8], index: 0, kind: input, shape index: {}]
  %s1 = inlined_call_operand.vmem [shape: bf16[8,16], index: 1, kind: input, shape index: {}]
  %s2 = inlined_call_operand.vmem [shape: bf16[2,4,8,8], index: 2, kind: input, shape index: {}]
  %s3 = inlined_call_operand.hbm [shape: bf16[2,4,16,16], index: 3, kind: input, shape index: {}]
  %s4 = inlined_call_operand.vmem [shape: bf16[9,4,8], index: 4, kind: input, shape index: {}]
  %s5 = inlined_call_operand.hbm [shape: f32[2,4,256], index: 5, kind: output, shape index: {0}]
  %s6 = inlined_call_operand.vmem [shape: f32[2,4,1], index: 6, kind: output, shape index: {1}]
  %s7 = inlined_call_operand.vmem [shape: f32[2,4,1], index: 7, kind: output, shape index: {2}]
  %8 = xla_tuple %s5, %s6, %s7
  %s9 = sld [smem:[#allocation0]]
  $region73: #{tpu_custom_call.1} parent=0
    _
  %s11 = ssub.s32 1, %s9
  %s12 = scalar_select 0, %s11, %s9
  $region1: #{tpu_custom_call.1} parent=0
    #allocation3 [shape = 'u8[32768]{0}', space=vmem, size = 0x8000, scoped, tag = 'input window, operand 3']
    #allocation4 [shape = 's32[2]{0}', space=sflag, size = 0x8, scoped, tag = 'scoped memory for tpu_custom_call.1']
    #allocation5 [shape = 's32[2]{0}', space=sflag, size = 0x8, scoped, tag = 'scoped memory for tpu_custom_call.1']
    #allocation6 [shape = 'u8[8192]{0}', space=vmem, size = 0x2000, scoped, tag = 'output window, operand 0']
    %13 = vsyncpa [#allocation4], 0
    %s14 = scalar_lea.sflag [#allocation4], 1
    %15 = vsyncpa %s14, 0
    %16 = vsyncpa [#allocation5], 0
    %s17 = scalar_lea.sflag [#allocation5], 1
    %18 = vsyncpa %s17, 0
    loop: start=0, step=1, limit=4
    $region2: #{tpu_custom_call.1} parent=1 // loop_pre_header
      _
    $region3: #{tpu_custom_call.1} parent=1 // loop_header
      %s20 = sphi 0, %s24
      %p21 = scmp.ge.s32.totalorder %s20, 4
      %s28 = sphi 0, %s28
      %s30 = sphi 0, %s28
      %s31 = sphi 0, %s30
      %s45 = sphi 0, %s31
      %s49 = sphi 0, %s49
      %s51 = sphi 0, %s49
      %s52 = sphi 0, %s51
      %s66 = sphi 0, %s52
      %s72 = sphi 0, %s74
      %s75 = sphi 0, %s72
      %s76 = sphi 0, %s75
      %s92 = sphi 0, %s76
      %s98 = sphi 0, %s100
      %s101 = sphi 0, %s98
      %s102 = sphi 0, %s101
      %s118 = sphi 0, %s102
      %s122 = sphi 0, %s122
      %s124 = sphi 0, %s122
      %s125 = sphi 0, %s124
      %s139 = sphi 0, %s125
      %s145 = sphi 0, %s147
      %s148 = sphi 0, %s145
      %s149 = sphi 0, %s148
      %s165 = sphi 0, %s149
      %s171 = sphi 0, %s173
      %s174 = sphi 0, %s171
      %s175 = sphi 0, %s174
      %s191 = sphi 0, %s175
      %s197 = sphi 0, %s199
      %s200 = sphi 0, %s197
      %s201 = sphi 0, %s200
      %s217 = sphi 0, %s201
    $region4: #{tpu_custom_call.1} parent=1 // loop_header_branch
      %23 = sbr.rel (%p21) target = $region8
    $region5: #{tpu_custom_call.1} parent=1 // loop_body
      %s25 = ssub.s32 %s20, 1
      %s26 = ssub.s32 %s20, 2
      %s27 = sadd.s32 %s20, 1
      %s29 = sadd.s32 %s28, 1
      %p32 = scmp.eq.s32.totalorder %s20, 1
      %p33 = scmp.ne.s32.totalorder %s28, %s30
      %p34 = scmp.eq.s32.totalorder %s20, 0
      %p35 = por %p33, %p34
      %p36 = scmp.ne.s32.totalorder %s28, %s30
      %p37 = scmp.eq.s32.totalorder %s25, 1
      %p38 = por %p36, %p37
      %p39 = scmp.ne.s32.totalorder %s30, %s31
      %p40 = scmp.eq.s32.totalorder %s25, 0
      %p41 = por %p39, %p40
      %p42 = scmp.ne.s32.totalorder %s30, %s31
      %p43 = scmp.eq.s32.totalorder %s26, 1
      %p44 = por %p42, %p43
      %p46 = scmp.ne.s32.totalorder %s31, %s45
      %p47 = scmp.eq.s32.totalorder %s26, 0
      %p48 = por %p46, %p47
      %s50 = sadd.s32 %s49, 1
      %p53 = scmp.eq.s32.totalorder %s20, 1
      %p54 = scmp.ne.s32.totalorder %s49, %s51
      %p55 = scmp.eq.s32.totalorder %s20, 0
      %p56 = por %p54, %p55
      %p57 = scmp.ne.s32.totalorder %s49, %s51
      %p58 = scmp.eq.s32.totalorder %s25, 1
      %p59 = por %p57, %p58
      %p60 = scmp.ne.s32.totalorder %s51, %s52
      %p61 = scmp.eq.s32.totalorder %s25, 0
      %p62 = por %p60, %p61
      %p63 = scmp.ne.s32.totalorder %s51, %s52
      %p64 = scmp.eq.s32.totalorder %s26, 1
      %p65 = por %p63, %p64
      %p67 = scmp.ne.s32.totalorder %s52, %s66
      %p68 = scmp.eq.s32.totalorder %s26, 0
      %p69 = por %p67, %p68
      %s70 = ssub.s32 %s20, %s27
      %p71 = scmp.eq.s32.totalorder %s70, 0
      %s73 = sadd.s32 %s72, 1
      %s74 = scalar_select %p71, %s72, %s73
      %p77 = pneg %p71
      %p78 = scmp.eq.s32.totalorder %s20, 1
      %p79 = por %p77, %p78
      %p80 = scmp.ne.s32.totalorder %s72, %s75
      %p81 = scmp.eq.s32.totalorder %s20, 0
      %p82 = por %p80, %p81
      %p83 = scmp.ne.s32.totalorder %s72, %s75
      %p84 = scmp.eq.s32.totalorder %s25, 1
      %p85 = por %p83, %p84
      %p86 = scmp.ne.s32.totalorder %s75, %s76
      %p87 = scmp.eq.s32.totalorder %s25, 0
      %p88 = por %p86, %p87
      %p89 = scmp.ne.s32.totalorder %s75, %s76
      %p90 = scmp.eq.s32.totalorder %s26, 1
      %p91 = por %p89, %p90
      %p93 = scmp.ne.s32.totalorder %s76, %s92
      %p94 = scmp.eq.s32.totalorder %s26, 0
      %p95 = por %p93, %p94
      %s96 = ssub.s32 %s20, %s27
      %p97 = scmp.eq.s32.totalorder %s96, 0
      %s99 = sadd.s32 %s98, 1
      %s100 = scalar_select %p97, %s98, %s99
      %p103 = pneg %p97
      %p104 = scmp.eq.s32.totalorder %s20, 1
      %p105 = por %p103, %p104
      %p106 = scmp.ne.s32.totalorder %s98, %s101
      %p107 = scmp.eq.s32.totalorder %s20, 0
      %p108 = por %p106, %p107
      %p109 = scmp.ne.s32.totalorder %s98, %s101
      %p110 = scmp.eq.s32.totalorder %s25, 1
      %p111 = por %p109, %p110
      %p112 = scmp.ne.s32.totalorder %s101, %s102
      %p113 = scmp.eq.s32.totalorder %s25, 0
      %p114 = por %p112, %p113
      %p115 = scmp.ne.s32.totalorder %s101, %s102
      %p116 = scmp.eq.s32.totalorder %s26, 1
      %p117 = por %p115, %p116
      %p119 = scmp.ne.s32.totalorder %s102, %s118
      %p120 = scmp.eq.s32.totalorder %s26, 0
      %p121 = por %p119, %p120
      %s123 = sadd.s32 %s122, 1
      %p126 = scmp.eq.s32.totalorder %s20, 1
      %p127 = scmp.ne.s32.totalorder %s122, %s124
      %p128 = scmp.eq.s32.totalorder %s20, 0
      %p129 = por %p127, %p128
      %p130 = scmp.ne.s32.totalorder %s122, %s124
      %p131 = scmp.eq.s32.totalorder %s25, 1
      %p132 = por %p130, %p131
      %p133 = scmp.ne.s32.totalorder %s124, %s125
      %p134 = scmp.eq.s32.totalorder %s25, 0
      %p135 = por %p133, %p134
      %p136 = scmp.ne.s32.totalorder %s124, %s125
      %p137 = scmp.eq.s32.totalorder %s26, 1
      %p138 = por %p136, %p137
      %p140 = scmp.ne.s32.totalorder %s125, %s139
      %p141 = scmp.eq.s32.totalorder %s26, 0
      %p142 = por %p140, %p141
      %s143 = ssub.s32 %s20, %s27
      %p144 = scmp.eq.s32.totalorder %s143, 0
      %s146 = sadd.s32 %s145, 1
      %s147 = scalar_select %p144, %s145, %s146
      %p150 = pneg %p144
      %p151 = scmp.eq.s32.totalorder %s20, 1
      %p152 = por %p150, %p151
      %p153 = scmp.ne.s32.totalorder %s145, %s148
      %p154 = scmp.eq.s32.totalorder %s20, 0
      %p155 = por %p153, %p154
      %p156 = scmp.ne.s32.totalorder %s145, %s148
      %p157 = scmp.eq.s32.totalorder %s25, 1
      %p158 = por %p156, %p157
      %p159 = scmp.ne.s32.totalorder %s148, %s149
      %p160 = scmp.eq.s32.totalorder %s25, 0
      %p161 = por %p159, %p160
      %p162 = scmp.ne.s32.totalorder %s148, %s149
      %p163 = scmp.eq.s32.totalorder %s26, 1
      %p164 = por %p162, %p163
      %p166 = scmp.ne.s32.totalorder %s149, %s165
      %p167 = scmp.eq.s32.totalorder %s26, 0
      %p168 = por %p166, %p167
      %s169 = ssub.s32 %s20, %s27
      %p170 = scmp.eq.s32.totalorder %s169, 0
      %s172 = sadd.s32 %s171, 1
      %s173 = scalar_select %p170, %s171, %s172
      %p176 = pneg %p170
      %p177 = scmp.eq.s32.totalorder %s20, 1
      %p178 = por %p176, %p177
      %p179 = scmp.ne.s32.totalorder %s171, %s174
      %p180 = scmp.eq.s32.totalorder %s20, 0
      %p181 = por %p179, %p180
      %p182 = scmp.ne.s32.totalorder %s171, %s174
      %p183 = scmp.eq.s32.totalorder %s25, 1
      %p184 = por %p182, %p183
      %p185 = scmp.ne.s32.totalorder %s174, %s175
      %p186 = scmp.eq.s32.totalorder %s25, 0
      %p187 = por %p185, %p186
      %p188 = scmp.ne.s32.totalorder %s174, %s175
      %p189 = scmp.eq.s32.totalorder %s26, 1
      %p190 = por %p188, %p189
      %p192 = scmp.ne.s32.totalorder %s175, %s191
      %p193 = scmp.eq.s32.totalorder %s26, 0
      %p194 = por %p192, %p193
      %s195 = ssub.s32 %s20, %s27
      %p196 = scmp.eq.s32.totalorder %s195, 0
      %s198 = sadd.s32 %s197, 1
      %s199 = scalar_select %p196, %s197, %s198
      %p202 = pneg %p196
      %p203 = scmp.eq.s32.totalorder %s20, 1
      %p204 = por %p202, %p203
      %p205 = scmp.ne.s32.totalorder %s197, %s200
      %p206 = scmp.eq.s32.totalorder %s20, 0
      %p207 = por %p205, %p206
      %p208 = scmp.ne.s32.totalorder %s197, %s200
      %p209 = scmp.eq.s32.totalorder %s25, 1
      %p210 = por %p208, %p209
      %p211 = scmp.ne.s32.totalorder %s200, %s201
      %p212 = scmp.eq.s32.totalorder %s25, 0
      %p213 = por %p211, %p212
      %p214 = scmp.ne.s32.totalorder %s200, %s201
      %p215 = scmp.eq.s32.totalorder %s26, 1
      %p216 = por %p214, %p215
      %p218 = scmp.ne.s32.totalorder %s201, %s217
      %p219 = scmp.eq.s32.totalorder %s26, 0
      %p220 = por %p218, %p219
      %p221 = scmp.le.s32.totalorder 1, %s20
      %p222 = scmp.lt.s32.totalorder %s20, 3
      %p223 = pnand %p221, %p222
      %p224 = pneg %p223
      // Predicated region
      $region9: #{tpu_custom_call.1} parent=5 // pred_check
        _
      $region10: #{tpu_custom_call.1} parent=5 // pred_check_branch
        %226 = sbr.rel (%p223) target = $region12
      $region11: #{tpu_custom_call.1} parent=5 // pred_region
        %s227 = ssub.s32 %s20, 1
        // Predicated region
        $region13: #{tpu_custom_call.1} parent=11 // pred_check
          %p228 = pneg %p41
        $region14: #{tpu_custom_call.1} parent=11 // pred_check_branch
          %230 = sbr.rel (%p228) target = $region16
        $region15: #{tpu_custom_call.1} parent=11 // pred_region
          _
        $region16: #{tpu_custom_call.1} parent=11 // pred_fallthru
          _
        // Predicated region
        $region17: #{tpu_custom_call.1} parent=11 // pred_check
          %p231 = pneg %p62
        $region18: #{tpu_custom_call.1} parent=11 // pred_check_branch
          %233 = sbr.rel (%p231) target = $region20
        $region19: #{tpu_custom_call.1} parent=11 // pred_region
          _
        $region20: #{tpu_custom_call.1} parent=11 // pred_fallthru
          _
        // Predicated region
        $region21: #{tpu_custom_call.1} parent=11 // pred_check
          %p234 = pneg %p135
        $region22: #{tpu_custom_call.1} parent=11 // pred_check_branch
          %236 = sbr.rel (%p234) target = $region24
        $region23: #{tpu_custom_call.1} parent=11 // pred_region
          _
        $region24: #{tpu_custom_call.1} parent=11 // pred_fallthru
          _
      $region12: #{tpu_custom_call.1} parent=5 // pred_fallthru
        _
      %p237 = scmp.lt.s32.totalorder %s20, 2
      // Predicated region
      $region25: #{tpu_custom_call.1} parent=5 // pred_check
        %p238 = pneg %p237
      $region26: #{tpu_custom_call.1} parent=5 // pred_check_branch
        %240 = sbr.rel (%p238) target = $region28
      $region27: #{tpu_custom_call.1} parent=5 // pred_region
        // Predicated region
        $region29: #{tpu_custom_call.1} parent=27 // pred_check
          %p241 = pneg %p82
        $region30: #{tpu_custom_call.1} parent=27 // pred_check_branch
          %243 = sbr.rel (%p241) target = $region32
        $region31: #{tpu_custom_call.1} parent=27 // pred_region
          %p244 = scmp.lt.s32.totalorder %s20, 1
          %s245 = scalar_select %p244, %s20, 1
          %s246 = smul.addr %s245, 4
          %s247 = smul.addr %s246, 4
          %s248 = scalar_lea.vmem %s2, %s247
        $region32: #{tpu_custom_call.1} parent=27 // pred_fallthru
          _
        // Predicated region
        $region33: #{tpu_custom_call.1} parent=27 // pred_check
          %p249 = pneg %p108
        $region34: #{tpu_custom_call.1} parent=27 // pred_check_branch
          %251 = sbr.rel (%p249) target = $region36
        $region35: #{tpu_custom_call.1} parent=27 // pred_region
          %s252 = sand.u32 %s98, 1
          %s253 = scalar_lea.sflag [#allocation4], %s252
          %s254 = sand.u32 %s98, 1
          %s255 = smul.addr %s254, 32
          %s256 = scalar_lea.vmem [#allocation3], %s255
          %258 = vsyncadd %s253, 0
          %s259 = smul.addr %s20, 8
          %s260 = smul.addr %s259, 4
          %s261 = scalar_lea.hbm %s3, %s260
          %s262 = sshll.u32 %s261, 4
          %s263 = int_to_ptr.hbm [resolvable:$true] %s262
          %s264 = sshll.u32 %s256, 4
          %s265 = int_to_ptr.vmem [resolvable:$true] %s264
          %270 = dma.hbm_to_vmem [thread:$0]  %s263, 512, %s265, %s253, 64, 64, 4
        $region36: #{tpu_custom_call.1} parent=27 // pred_fallthru
          _
      $region28: #{tpu_custom_call.1} parent=5 // pred_fallthru
        _
      %p271 = scmp.le.s32.totalorder 1, %s20
      %p272 = scmp.lt.s32.totalorder %s20, 3
      %p273 = pnand %p271, %p272
      %p274 = pneg %p273
      // Predicated region
      $region37: #{tpu_custom_call.1} parent=5 // pred_check
        _
      $region38: #{tpu_custom_call.1} parent=5 // pred_check_branch
        %276 = sbr.rel (%p273) target = $region40
      $region39: #{tpu_custom_call.1} parent=5 // pred_region
        %s277 = ssub.s32 %s20, 1
        %s278 = sand.u32 %s101, 1
        %s279 = scalar_lea.sflag [#allocation4], %s278
        %s280 = sand.u32 %s101, 1
        %s281 = smul.addr %s280, 32
        %s282 = scalar_lea.vmem [#allocation3], %s281
        // Predicated region
        $region41: #{tpu_custom_call.1} parent=39 // pred_check
          %p283 = pneg %p114
        $region42: #{tpu_custom_call.1} parent=39 // pred_check_branch
          %285 = sbr.rel (%p283) target = $region44
        $region43: #{tpu_custom_call.1} parent=39 // pred_region
          %287 = dma.done %s279, 512
        $region44: #{tpu_custom_call.1} parent=39 // pred_fallthru
          _
        %p288 = pneg %p41
        %p289 = pneg %p38
        %p290 = pneg %p62
        %p291 = pneg %p59
        %p292 = scmp.lt.s32.totalorder %s25, 1
        %s293 = scalar_select %p292, %s25, 1
        %s294 = smul.addr %s293, 4
        %s295 = smul.addr %s294, 4
        %s296 = scalar_lea.vmem %s2, %s295
        %p297 = pneg %p88
        %p298 = pneg %p85
        %s299 = sand.u32 %s101, 1
        %s300 = scalar_lea.sflag [#allocation4], %s299
        %s301 = sand.u32 %s101, 1
        %s302 = smul.addr %s301, 32
        %s303 = scalar_lea.vmem [#allocation3], %s302
        %p304 = pneg %p114
        %p305 = pneg %p111
        %p306 = pneg %p135
        %p307 = pneg %p132
        %p308 = pneg %p161
        %p309 = pneg %p158
        %s310 = sand.u32 %s148, 1
        %s311 = scalar_lea.sflag [#allocation5], %s310
        %s312 = sand.u32 %s148, 1
        %s313 = smul.addr %s312, 8
        %s314 = scalar_lea.vmem [#allocation6], %s313
        %p315 = pneg %p187
        %p316 = pneg %p184
        %p317 = scmp.lt.s32.totalorder %s25, 1
        %s318 = scalar_select %p317, %s25, 1
        %s319 = smul.addr %s318, 4
        %s320 = scalar_lea.vmem %s6, %s319
        %p321 = pneg %p213
        %p322 = pneg %p210
        %p323 = scmp.lt.s32.totalorder %s25, 1
        %s324 = scalar_select %p323, %s25, 1
        %s325 = smul.addr %s324, 4
        %s326 = scalar_lea.vmem %s7, %s325
        %p327 = scmp.lt.s32.totalorder %s25, 1
        %s328 = scalar_select %p327, %s25, 1
        %s329 = smul.addr %s328, 4
        %s330 = smul.addr %s329, 4
        %s331 = scalar_lea.vmem %s2, %s330
        %p332 = scmp.lt.s32.totalorder %s25, 1
        %s333 = scalar_select %p332, %s25, 1
        %s334 = smul.addr %s333, 4
        %s335 = scalar_lea.vmem %s6, %s334
        %p336 = scmp.lt.s32.totalorder %s25, 1
        %s337 = scalar_select %p336, %s25, 1
        %s338 = smul.addr %s337, 4
        %s339 = scalar_lea.vmem %s7, %s338
        %vm341 = vcmask 146432
        %342 = vst.msk [vmem:[#allocation2] sm:$0xff] %vm341, 0.0
        %343 = vst.msk [vmem:[#allocation2 + $0x8] sm:$0xff] %vm341, 0.0
        %vm344 = vcmask 140288
        %345 = vst.msk [vmem:[#allocation2 + $0x10] sm:$0x3] %vm344, 0.0
        %346 = vst.msk [vmem:[#allocation2 + $0x18] sm:$0xff] %vm341, 0.0
        %347 = vst.msk [vmem:[#allocation2 + $0x20] sm:$0xff] %vm341, 0.0
        %348 = vst.msk [vmem:[#allocation2 + $0x28] sm:$0x3] %vm344, 0.0
        %349 = vst.msk [vmem:[#allocation2 + $0x30] sm:$0xff] %vm341, 0.0
        %350 = vst.msk [vmem:[#allocation2 + $0x38] sm:$0xff] %vm341, 0.0
        %351 = vst.msk [vmem:[#allocation2 + $0x40] sm:$0x3] %vm344, 0.0
        %352 = vst.msk [vmem:[#allocation2 + $0x48] sm:$0xff] %vm341, 0.0
        %353 = vst.msk [vmem:[#allocation2 + $0x50] sm:$0xff] %vm341, 0.0
        %354 = vst.msk [vmem:[#allocation2 + $0x58] sm:$0x3] %vm344, 0.0
        %355 = vst.msk [vmem:[#allocation2 + $0x60] sm:$0xff] %vm341, 0.0
        %356 = vst.msk [vmem:[#allocation2 + $0x68] sm:$0xff] %vm341, 0.0
        %357 = vst.msk [vmem:[#allocation2 + $0x70] sm:$0x3] %vm344, 0.0
        %358 = vst.msk [vmem:[#allocation2 + $0x78] sm:$0xff] %vm341, 0.0
        %359 = vst.msk [vmem:[#allocation2 + $0x80] sm:$0xff] %vm341, 0.0
        %360 = vst.msk [vmem:[#allocation2 + $0x88] sm:$0x3] %vm344, 0.0
        %361 = vst.msk [vmem:[#allocation2 + $0x90] sm:$0xff] %vm341, 0.0
        %362 = vst.msk [vmem:[#allocation2 + $0x98] sm:$0xff] %vm341, 0.0
        %363 = vst.msk [vmem:[#allocation2 + $0xa0] sm:$0x3] %vm344, 0.0
        %364 = vst.msk [vmem:[#allocation2 + $0xa8] sm:$0xff] %vm341, 0.0
        %365 = vst.msk [vmem:[#allocation2 + $0xb0] sm:$0xff] %vm341, 0.0
        %366 = vst.msk [vmem:[#allocation2 + $0xb8] sm:$0x3] %vm344, 0.0
        %v367 = vld [vmem:[%s282] sm:$0xf]
        %v368 = vld [vmem:[%s282 + $0x4] sm:$0xf]
        %v369 = vld [vmem:[%s282 + $0x8] sm:$0xf]
        %v370 = vld [vmem:[%s282 + $0xc] sm:$0xf]
        %v371 = vld [vmem:[%s282 + $0x10] sm:$0xf]
        %v372 = vld [vmem:[%s282 + $0x14] sm:$0xf]
        %v373 = vld [vmem:[%s282 + $0x18] sm:$0xf]
        %v374 = vld [vmem:[%s282 + $0x1c] sm:$0xf]
        %v375 = vunpack.c.l.bf16 %v367
        %v376 = vunpack.c.l.bf16 %v368
        %v377 = vunpack.c.l.bf16 %v369
        %v378 = vunpack.c.l.bf16 %v370
        %v379 = vunpack.c.l.bf16 %v371
        %v380 = vunpack.c.l.bf16 %v372
        %v381 = vunpack.c.l.bf16 %v373
        %v382 = vunpack.c.l.bf16 %v374
        %391 = vrot.lane.b32.xlu0 %v375, 1
        %v392 = vpop.permute.xlu0 %391
        %393 = vrot.lane.b32.xlu0 %v376, 1
        %v394 = vpop.permute.xlu0 %393
        %395 = vrot.lane.b32.xlu0 %v377, 1
        %v396 = vpop.permute.xlu0 %395
        %397 = vrot.lane.b32.xlu0 %v378, 1
        %v398 = vpop.permute.xlu0 %397
        %399 = vrot.lane.b32.xlu0 %v379, 1
        %v400 = vpop.permute.xlu0 %399
        %401 = vrot.lane.b32.xlu0 %v380, 1
        %v402 = vpop.permute.xlu0 %401
        %403 = vrot.lane.b32.xlu0 %v381, 1
        %v404 = vpop.permute.xlu0 %403
        %405 = vrot.lane.b32.xlu0 %v382, 1
        %v406 = vpop.permute.xlu0 %405
        %vm415 = vcmask 138248
        %416 = vst.msk [vmem:[#allocation2 + $0x1] sm:$0xff] %vm415, %v392
        %417 = vst.msk [vmem:[#allocation2 + $0x9] sm:$0xff] %vm415, %v394
        %418 = vst.msk [vmem:[#allocation2 + $0x19] sm:$0xff] %vm415, %v396
        %419 = vst.msk [vmem:[#allocation2 + $0x21] sm:$0xff] %vm415, %v398
        %420 = vst.msk [vmem:[#allocation2 + $0x31] sm:$0xff] %vm415, %v400
        %421 = vst.msk [vmem:[#allocation2 + $0x39] sm:$0xff] %vm415, %v402
        %422 = vst.msk [vmem:[#allocation2 + $0x49] sm:$0xff] %vm415, %v404
        %423 = vst.msk [vmem:[#allocation2 + $0x51] sm:$0xff] %vm415, %v406
        %v424 = vld [vmem:[%s331] sm:$0xf]
        %v425 = vld [vmem:[%s331 + $0x4] sm:$0xf]
        %v426 = vld [vmem:[%s331 + $0x8] sm:$0xf]
        %v427 = vld [vmem:[%s331 + $0xc] sm:$0xf]
        %v428 = vld [vmem:[%s1] sm:$0xf]
        %v433 = vunpack.c.l.b16 %v424
        %v434 = vunpack.c.l.b16 %v425
        %v435 = vunpack.c.l.b16 %v426
        %v436 = vunpack.c.l.b16 %v427
        %v437 = vpack.c.b16 %v434, %v433
        %v438 = vpack.c.b16 %v436, %v435
        %vm439 = vcmask 64512
        %v441 = vsel %vm439, %v437, 0
        %v444 = vsel %vm439, %v438, 0
        %vm446 = vcmask 1043456
        %v448 = vsel %vm446, %v428, 0
        %450 = vmatpush.bf16.msra.mxu0 0
        %451 = vmatpush.bf16.msra.mxu0 0
        %452 = vmatpush.bf16.msra.mxu0 0
        %453 = vmatpush.bf16.msra.mxu0 0
        %454 = vmatpush.bf16.msra.mxu0 0
        %455 = vmatpush.bf16.msra.mxu0 0
        %456 = vmatpush.bf16.msra.mxu0 0
        %457 = vmatpush.bf16.msra.mxu0 %v448
        %458 = vmatmul.bf16.gmra.mxu0 %v441
        %v459 = vpop.f32.mrf.mxu0
        %v460 = vadd.f32 0.0, %v459
        %v461 = vpop.f32.mrf.mxu0
        %v462 = vadd.f32 0.0, %v461
        %463 = vmatmul.bf16.gmra.mxu0 %v444
        %v464 = vpop.f32.mrf.mxu0
        %v465 = vadd.f32 0.0, %v464
        %v466 = vpop.f32.mrf.mxu0
        %v467 = vadd.f32 0.0, %v466
        %468 = vdwg.mxu0
        %v469 = vpack.c.bf16 %v460, %v460
        %v470 = vpack.c.bf16 %v462, %v462
        %v471 = vpack.c.bf16 %v465, %v465
        %v472 = vpack.c.bf16 %v467, %v467
        %v473 = vld [vmem:[%s0] sm:$0xf]
        %v474 = vld [vmem:[%s0 + $0x4] sm:$0xf]
        %v477 = vunpack.c.l.b16 %v473
        %v478 = vunpack.c.l.b16 %v474
        %v479 = vpack.c.b16 %v478, %v477
        %v481 = vsel %vm439, %v479, 0
        %v484 = vsel %vm446, %v469, 0
        %486 = vmatpush.bf16.msra.mxu0 0
        %487 = vmatpush.bf16.msra.mxu0 0
        %488 = vmatpush.bf16.msra.mxu0 0
        %489 = vmatpush.bf16.msra.mxu0 0
        %490 = vmatpush.bf16.msra.mxu0 0
        %491 = vmatpush.bf16.msra.mxu0 0
        %492 = vmatpush.bf16.msra.mxu0 0
        %493 = vmatpush.bf16.msra.mxu0 %v484
        %494 = vmatmul.bf16.gmra.mxu0 %v481
        %v495 = vpop.f32.mrf.mxu0
        %v496 = vadd.f32 0.0, %v495
        %v497 = vpop.f32.mrf.mxu0
        %v498 = vadd.f32 0.0, %v497
        %499 = vdwg.mxu0
        %v501 = vsel %vm446, %v470, 0
        %503 = vmatpush.bf16.msra.mxu0 0
        %504 = vmatpush.bf16.msra.mxu0 0
        %505 = vmatpush.bf16.msra.mxu0 0
        %506 = vmatpush.bf16.msra.mxu0 0
        %507 = vmatpush.bf16.msra.mxu0 0
        %508 = vmatpush.bf16.msra.mxu0 0
        %509 = vmatpush.bf16.msra.mxu0 0
        %510 = vmatpush.bf16.msra.mxu0 %v501
        %511 = vmatmul.bf16.gmra.mxu0 %v481
        %v512 = vpop.f32.mrf.mxu0
        %v513 = vadd.f32 0.0, %v512
        %v514 = vpop.f32.mrf.mxu0
        %v515 = vadd.f32 0.0, %v514
        %516 = vdwg.mxu0
        %v518 = vsel %vm446, %v471, 0
        %520 = vmatpush.bf16.msra.mxu0 0
        %521 = vmatpush.bf16.msra.mxu0 0
        %522 = vmatpush.bf16.msra.mxu0 0
        %523 = vmatpush.bf16.msra.mxu0 0
        %524 = vmatpush.bf16.msra.mxu0 0
        %525 = vmatpush.bf16.msra.mxu0 0
        %526 = vmatpush.bf16.msra.mxu0 0
        %527 = vmatpush.bf16.msra.mxu0 %v518
        %528 = vmatmul.bf16.gmra.mxu0 %v481
        %v529 = vpop.f32.mrf.mxu0
        %v530 = vadd.f32 0.0, %v529
        %v531 = vpop.f32.mrf.mxu0
        %v532 = vadd.f32 0.0, %v531
        %533 = vdwg.mxu0
        %v535 = vsel %vm446, %v472, 0
        %537 = vmatpush.bf16.msra.mxu0 0
        %538 = vmatpush.bf16.msra.mxu0 0
        %539 = vmatpush.bf16.msra.mxu0 0
        %540 = vmatpush.bf16.msra.mxu0 0
        %541 = vmatpush.bf16.msra.mxu0 0
        %542 = vmatpush.bf16.msra.mxu0 0
        %543 = vmatpush.bf16.msra.mxu0 0
        %544 = vmatpush.bf16.msra.mxu0 %v535
        %545 = vmatmul.bf16.gmra.mxu0 %v481
        %v546 = vpop.f32.mrf.mxu0
        %v547 = vadd.f32 0.0, %v546
        %v548 = vpop.f32.mrf.mxu0
        %v549 = vadd.f32 0.0, %v548
        %550 = vdwg.mxu0
        %559 = vrot.lane.b32.xlu0 %v496, 1
        %v560 = vpop.permute.xlu0 %559
        %561 = vrot.lane.b32.xlu0 %v498, 1
        %v562 = vpop.permute.xlu0 %561
        %563 = vrot.lane.b32.xlu0 %v513, 1
        %v564 = vpop.permute.xlu0 %563
        %565 = vrot.lane.b32.xlu0 %v515, 1
        %v566 = vpop.permute.xlu0 %565
        %567 = vrot.lane.b32.xlu0 %v530, 1
        %v568 = vpop.permute.xlu0 %567
        %569 = vrot.lane.b32.xlu0 %v532, 1
        %v570 = vpop.permute.xlu0 %569
        %571 = vrot.lane.b32.xlu0 %v547, 1
        %v572 = vpop.permute.xlu0 %571
        %573 = vrot.lane.b32.xlu0 %v549, 1
        %v574 = vpop.permute.xlu0 %573
        %s583 = scalar_lea.vmem [#allocation2], 96
        %584 = vst.msk [vmem:[%s583 + $0x1] sm:$0xff] %vm415, %v560
        %585 = vst.msk [vmem:[%s583 + $0x9] sm:$0xff] %vm415, %v562
        %586 = vst.msk [vmem:[%s583 + $0x19] sm:$0xff] %vm415, %v564
        %587 = vst.msk [vmem:[%s583 + $0x21] sm:$0xff] %vm415, %v566
        %588 = vst.msk [vmem:[%s583 + $0x31] sm:$0xff] %vm415, %v568
        %589 = vst.msk [vmem:[%s583 + $0x39] sm:$0xff] %vm415, %v570
        %590 = vst.msk [vmem:[%s583 + $0x49] sm:$0xff] %vm415, %v572
        %591 = vst.msk [vmem:[%s583 + $0x51] sm:$0xff] %vm415, %v574
        %v592 = vld [vmem:[#allocation2] sm:$0xff]
        %v593 = vld [vmem:[#allocation2 + $0x8] sm:$0xff]
        %v594 = vld [vmem:[#allocation2 + $0x10] sm:$0x3]
        %v595 = vld [vmem:[#allocation2 + $0x18] sm:$0xff]
        %v596 = vld [vmem:[#allocation2 + $0x20] sm:$0xff]
        %v597 = vld [vmem:[#allocation2 + $0x28] sm:$0x3]
        %v598 = vld [vmem:[#allocation2 + $0x30] sm:$0xff]
        %v599 = vld [vmem:[#allocation2 + $0x38] sm:$0xff]
        %v600 = vld [vmem:[#allocation2 + $0x40] sm:$0x3]
        %v601 = vld [vmem:[#allocation2 + $0x48] sm:$0xff]
        %v602 = vld [vmem:[#allocation2 + $0x50] sm:$0xff]
        %v603 = vld [vmem:[#allocation2 + $0x58] sm:$0x3]
        %v604 = vld [vmem:[#allocation2 + $0x60] sm:$0xff]
        %v605 = vld [vmem:[#allocation2 + $0x68] sm:$0xff]
        %v606 = vld [vmem:[#allocation2 + $0x70] sm:$0x3]
        %v607 = vld [vmem:[#allocation2 + $0x78] sm:$0xff]
        %v608 = vld [vmem:[#allocation2 + $0x80] sm:$0xff]
        %v609 = vld [vmem:[#allocation2 + $0x88] sm:$0x3]
        %v610 = vld [vmem:[#allocation2 + $0x90] sm:$0xff]
        %v611 = vld [vmem:[#allocation2 + $0x98] sm:$0xff]
        %v612 = vld [vmem:[#allocation2 + $0xa0] sm:$0x3]
        %v613 = vld [vmem:[#allocation2 + $0xa8] sm:$0xff]
        %v614 = vld [vmem:[#allocation2 + $0xb0] sm:$0xff]
        %v615 = vld [vmem:[#allocation2 + $0xb8] sm:$0x3]
        %v616 = vpack.c.bf16 %v592, %v592
        %v617 = vpack.c.bf16 %v593, %v593
        %v618 = vpack.c.bf16 %v594, %v594
        %v619 = vpack.c.bf16 %v595, %v595
        %v620 = vpack.c.bf16 %v596, %v596
        %v621 = vpack.c.bf16 %v597, %v597
        %v622 = vpack.c.bf16 %v598, %v598
        %v623 = vpack.c.bf16 %v599, %v599
        %v624 = vpack.c.bf16 %v600, %v600
        %v625 = vpack.c.bf16 %v601, %v601
        %v626 = vpack.c.bf16 %v602, %v602
        %v627 = vpack.c.bf16 %v603, %v603
        %v628 = vpack.c.bf16 %v604, %v604
        %v629 = vpack.c.bf16 %v605, %v605
        %v630 = vpack.c.bf16 %v606, %v606
        %v631 = vpack.c.bf16 %v607, %v607
        %v632 = vpack.c.bf16 %v608, %v608
        %v633 = vpack.c.bf16 %v609, %v609
        %v634 = vpack.c.bf16 %v610, %v610
        %v635 = vpack.c.bf16 %v611, %v611
        %v636 = vpack.c.bf16 %v612, %v612
        %v637 = vpack.c.bf16 %v613, %v613
        %v638 = vpack.c.bf16 %v614, %v614
        %v639 = vpack.c.bf16 %v615, %v615
        %v640 = vrot.slane %v628, 4
        %vm641 = vcmask 1047556
        %v642 = vsel %vm641, %v640, %v616
        %v644 = vunpack.c.l.s4 1983009808
        %v645 = vunpack.c.0.s8 %v644
        %v646 = vperm.slane %v642, %v645
        %v647 = vrot.slane %v634, 4
        %v648 = vsel %vm641, %v647, %v622
        %v650 = vunpack.c.l.s4 1983009808
        %v651 = vunpack.c.0.s8 %v650
        %v652 = vperm.slane %v648, %v651
        %v653 = vrot.slane %v652, 4
        %v654 = vsel %vm641, %v653, %v646
        %v655 = vrot.slane %v646, 4
        %v656 = vsel %vm641, %v652, %v655
        %v658 = vunpack.c.l.s4 1934713408
        %v659 = vunpack.c.0.s8 %v658
        %v660 = vperm.slane %v654, %v659
        %v662 = vunpack.c.l.s4 1934713408
        %v663 = vunpack.c.0.s8 %v662
        %v664 = vperm.slane %v656, %v663
        %v665 = vrot.slane %v660, 4
        %v666 = vsel %vm641, 0, %v665
        %v667 = vrot.slane %v664, 4
        %v668 = vsel %vm641, 0, %v667
        %v669 = vrot.slane %v631, 4
        %v670 = vsel %vm641, %v669, %v619
        %v672 = vunpack.c.l.s4 1983009808
        %v673 = vunpack.c.0.s8 %v672
        %v674 = vperm.slane %v670, %v673
        %v675 = vrot.slane %v637, 4
        %v676 = vsel %vm641, %v675, %v625
        %v678 = vunpack.c.l.s4 1983009808
        %v679 = vunpack.c.0.s8 %v678
        %v680 = vperm.slane %v676, %v679
        %v681 = vrot.slane %v680, 4
        %v682 = vsel %vm641, %v681, %v674
        %v683 = vrot.slane %v674, 4
        %v684 = vsel %vm641, %v680, %v683
        %v686 = vunpack.c.l.s4 1934713408
        %v687 = vunpack.c.0.s8 %v686
        %v688 = vperm.slane %v682, %v687
        %v690 = vunpack.c.l.s4 1934713408
        %v691 = vunpack.c.0.s8 %v690
        %v692 = vperm.slane %v684, %v691
        %v693 = vrot.slane %v688, 4
        %v694 = vsel %vm641, 0, %v693
        %v695 = vrot.slane %v692, 4
        %v696 = vsel %vm641, 0, %v695
        %v697 = vrot.slane %v629, 4
        %v698 = vsel %vm641, %v697, %v617
        %v700 = vunpack.c.l.s4 1983009808
        %v701 = vunpack.c.0.s8 %v700
        %v702 = vperm.slane %v698, %v701
        %v703 = vrot.slane %v635, 4
        %v704 = vsel %vm641, %v703, %v623
        %v706 = vunpack.c.l.s4 1983009808
        %v707 = vunpack.c.0.s8 %v706
        %v708 = vperm.slane %v704, %v707
        %v709 = vrot.slane %v708, 4
        %v710 = vsel %vm641, %v709, %v702
        %v711 = vrot.slane %v702, 4
        %v712 = vsel %vm641, %v708, %v711
        %v714 = vunpack.c.l.s4 1934713408
        %v715 = vunpack.c.0.s8 %v714
        %v716 = vperm.slane %v710, %v715
        %v718 = vunpack.c.l.s4 1934713408
        %v719 = vunpack.c.0.s8 %v718
        %v720 = vperm.slane %v712, %v719
        %v721 = vrot.slane %v716, 4
        %v722 = vsel %vm641, 0, %v721
        %v723 = vrot.slane %v720, 4
        %v724 = vsel %vm641, 0, %v723
        %v725 = vrot.slane %v632, 4
        %v726 = vsel %vm641, %v725, %v620
        %v728 = vunpack.c.l.s4 1983009808
        %v729 = vunpack.c.0.s8 %v728
        %v730 = vperm.slane %v726, %v729
        %v731 = vrot.slane %v638, 4
        %v732 = vsel %vm641, %v731, %v626
        %v734 = vunpack.c.l.s4 1983009808
        %v735 = vunpack.c.0.s8 %v734
        %v736 = vperm.slane %v732, %v735
        %v737 = vrot.slane %v736, 4
        %v738 = vsel %vm641, %v737, %v730
        %v739 = vrot.slane %v730, 4
        %v740 = vsel %vm641, %v736, %v739
        %v742 = vunpack.c.l.s4 1934713408
        %v743 = vunpack.c.0.s8 %v742
        %v744 = vperm.slane %v738, %v743
        %v746 = vunpack.c.l.s4 1934713408
        %v747 = vunpack.c.0.s8 %v746
        %v748 = vperm.slane %v740, %v747
        %v749 = vrot.slane %v744, 4
        %v750 = vsel %vm641, 0, %v749
        %v751 = vrot.slane %v748, 4
        %v752 = vsel %vm641, 0, %v751
        %v755 = vpack.i.b16 %v688, %v660
        %v756 = vshrl.u32 %v660, 16
        %v757 = vshrl.u32 %v688, 16
        %v758 = vpack.i.b16 %v757, %v756
        %v761 = vpack.i.b16 %v694, %v666
        %v762 = vshrl.u32 %v666, 16
        %v763 = vshrl.u32 %v694, 16
        %v764 = vpack.i.b16 %v763, %v762
        %v767 = vpack.i.b16 %v692, %v664
        %v768 = vshrl.u32 %v664, 16
        %v769 = vshrl.u32 %v692, 16
        %v770 = vpack.i.b16 %v769, %v768
        %v773 = vpack.i.b16 %v696, %v668
        %v774 = vshrl.u32 %v668, 16
        %v775 = vshrl.u32 %v696, 16
        %v776 = vpack.i.b16 %v775, %v774
        %v779 = vpack.i.b16 %v744, %v716
        %v780 = vshrl.u32 %v716, 16
        %v781 = vshrl.u32 %v744, 16
        %v782 = vpack.i.b16 %v781, %v780
        %v785 = vpack.i.b16 %v750, %v722
        %v786 = vshrl.u32 %v722, 16
        %v787 = vshrl.u32 %v750, 16
        %v788 = vpack.i.b16 %v787, %v786
        %v791 = vpack.i.b16 %v748, %v720
        %v792 = vshrl.u32 %v720, 16
        %v793 = vshrl.u32 %v748, 16
        %v794 = vpack.i.b16 %v793, %v792
        %v797 = vpack.i.b16 %v752, %v724
        %v798 = vshrl.u32 %v724, 16
        %v799 = vshrl.u32 %v752, 16
        %v800 = vpack.i.b16 %v799, %v798
        %v801 = vunpack.c.l.b16 %v758
        %v802 = vpack.c.b16 %v801, %v801
        %803 = vrot.lane.b32.xlu0 %v802, 16
        %v804 = vpop.permute.xlu0 %803
        %v805 = vunpack.c.l.b16 %v761
        %v806 = vpack.c.b16 %v805, %v805
        %807 = vrot.lane.b32.xlu0 %v806, 32
        %v808 = vpop.permute.xlu0 %807
        %v809 = vunpack.c.l.b16 %v764
        %v810 = vpack.c.b16 %v809, %v809
        %811 = vrot.lane.b32.xlu0 %v810, 48
        %v812 = vpop.permute.xlu0 %811
        %v813 = vunpack.c.l.b16 %v767
        %v814 = vpack.c.b16 %v813, %v813
        %815 = vrot.lane.b32.xlu0 %v814, 64
        %v816 = vpop.permute.xlu0 %815
        %v817 = vunpack.c.l.b16 %v770
        %v818 = vpack.c.b16 %v817, %v817
        %819 = vrot.lane.b32.xlu0 %v818, 80
        %v820 = vpop.permute.xlu0 %819
        %v821 = vunpack.c.l.b16 %v773
        %v822 = vpack.c.b16 %v821, %v821
        %823 = vrot.lane.b32.xlu0 %v822, 96
        %v824 = vpop.permute.xlu0 %823
        %v825 = vunpack.c.l.b16 %v776
        %v826 = vpack.c.b16 %v825, %v825
        %827 = vrot.lane.b32.xlu0 %v826, 112
        %v828 = vpop.permute.xlu0 %827
        %v829 = vunpack.c.l.b16 %v782
        %v830 = vpack.c.b16 %v829, %v829
        %831 = vrot.lane.b32.xlu0 %v830, 16
        %v832 = vpop.permute.xlu0 %831
        %v833 = vunpack.c.l.b16 %v785
        %v834 = vpack.c.b16 %v833, %v833
        %835 = vrot.lane.b32.xlu0 %v834, 32
        %v836 = vpop.permute.xlu0 %835
        %v837 = vunpack.c.l.b16 %v788
        %v838 = vpack.c.b16 %v837, %v837
        %839 = vrot.lane.b32.xlu0 %v838, 48
        %v840 = vpop.permute.xlu0 %839
        %v841 = vunpack.c.l.b16 %v791
        %v842 = vpack.c.b16 %v841, %v841
        %843 = vrot.lane.b32.xlu0 %v842, 64
        %v844 = vpop.permute.xlu0 %843
        %v845 = vunpack.c.l.b16 %v794
        %v846 = vpack.c.b16 %v845, %v845
        %847 = vrot.lane.b32.xlu0 %v846, 80
        %v848 = vpop.permute.xlu0 %847
        %v849 = vunpack.c.l.b16 %v797
        %v850 = vpack.c.b16 %v849, %v849
        %851 = vrot.lane.b32.xlu0 %v850, 96
        %v852 = vpop.permute.xlu0 %851
        %v853 = vunpack.c.l.b16 %v800
        %v854 = vpack.c.b16 %v853, %v853
        %855 = vrot.lane.b32.xlu0 %v854, 112
        %v856 = vpop.permute.xlu0 %855
        %vm857 = vcmask 130048
        %v860 = vsel %vm857, %v755, %v804
        %vm861 = vcmask 261120
        %v863 = vsel %vm861, %v860, %v808
        %vm864 = vcmask 392192
        %v866 = vsel %vm864, %v863, %v812
        %vm867 = vcmask 523264
        %v869 = vsel %vm867, %v866, %v816
        %vm870 = vcmask 654336
        %v872 = vsel %vm870, %v869, %v820
        %vm873 = vcmask 785408
        %v875 = vsel %vm873, %v872, %v824
        %vm876 = vcmask 916480
        %v878 = vsel %vm876, %v875, %v828
        %v881 = vsel %vm857, %v779, %v832
        %v883 = vsel %vm861, %v881, %v836
        %v885 = vsel %vm864, %v883, %v840
        %v887 = vsel %vm867, %v885, %v844
        %v889 = vsel %vm870, %v887, %v848
        %v891 = vsel %vm873, %v889, %v852
        %v893 = vsel %vm876, %v891, %v856
        %v894 = vld [vmem:[%s4] sm:$0x3]
        %911 = vrot.lane.b32.xlu0 %v616, 127
        %v912 = vpop.permute.xlu0 %911
        %913 = vrot.lane.b32.xlu0 %v617, 127
        %v914 = vpop.permute.xlu0 %913
        %915 = vrot.lane.b32.xlu0 %v619, 127
        %v916 = vpop.permute.xlu0 %915
        %917 = vrot.lane.b32.xlu0 %v620, 127
        %v918 = vpop.permute.xlu0 %917
        %919 = vrot.lane.b32.xlu0 %v622, 127
        %v920 = vpop.permute.xlu0 %919
        %921 = vrot.lane.b32.xlu0 %v623, 127
        %v922 = vpop.permute.xlu0 %921
        %923 = vrot.lane.b32.xlu0 %v625, 127
        %v924 = vpop.permute.xlu0 %923
        %925 = vrot.lane.b32.xlu0 %v626, 127
        %v926 = vpop.permute.xlu0 %925
        %927 = vrot.lane.b32.xlu0 %v628, 127
        %v928 = vpop.permute.xlu0 %927
        %929 = vrot.lane.b32.xlu0 %v629, 127
        %v930 = vpop.permute.xlu0 %929
        %931 = vrot.lane.b32.xlu0 %v631, 127
        %v932 = vpop.permute.xlu0 %931
        %933 = vrot.lane.b32.xlu0 %v632, 127
        %v934 = vpop.permute.xlu0 %933
        %935 = vrot.lane.b32.xlu0 %v634, 127
        %v936 = vpop.permute.xlu0 %935
        %937 = vrot.lane.b32.xlu0 %v635, 127
        %v938 = vpop.permute.xlu0 %937
        %939 = vrot.lane.b32.xlu0 %v637, 127
        %v940 = vpop.permute.xlu0 %939
        %941 = vrot.lane.b32.xlu0 %v638, 127
        %v942 = vpop.permute.xlu0 %941
        %v959 = vrot.slane %v928, 4
        %v960 = vsel %vm641, %v959, %v912
        %v962 = vunpack.c.l.s4 1983009808
        %v963 = vunpack.c.0.s8 %v962
        %v964 = vperm.slane %v960, %v963
        %v965 = vrot.slane %v936, 4
        %v966 = vsel %vm641, %v965, %v920
        %v968 = vunpack.c.l.s4 1983009808
        %v969 = vunpack.c.0.s8 %v968
        %v970 = vperm.slane %v966, %v969
        %v971 = vrot.slane %v970, 4
        %v972 = vsel %vm641, %v971, %v964
        %v973 = vrot.slane %v964, 4
        %v974 = vsel %vm641, %v970, %v973
        %v976 = vunpack.c.l.s4 1934713408
        %v977 = vunpack.c.0.s8 %v976
        %v978 = vperm.slane %v972, %v977
        %v980 = vunpack.c.l.s4 1934713408
        %v981 = vunpack.c.0.s8 %v980
        %v982 = vperm.slane %v974, %v981
        %v983 = vrot.slane %v978, 4
        %v984 = vsel %vm641, 0, %v983
        %v985 = vrot.slane %v982, 4
        %v986 = vsel %vm641, 0, %v985
        %v987 = vrot.slane %v932, 4
        %v988 = vsel %vm641, %v987, %v916
        %v990 = vunpack.c.l.s4 1983009808
        %v991 = vunpack.c.0.s8 %v990
        %v992 = vperm.slane %v988, %v991
        %v993 = vrot.slane %v940, 4
        %v994 = vsel %vm641, %v993, %v924
        %v996 = vunpack.c.l.s4 1983009808
        %v997 = vunpack.c.0.s8 %v996
        %v998 = vperm.slane %v994, %v997
        %v999 = vrot.slane %v998, 4
        %v1000 = vsel %vm641, %v999, %v992
        %v1001 = vrot.slane %v992, 4
        %v1002 = vsel %vm641, %v998, %v1001
        %v1004 = vunpack.c.l.s4 1934713408
        %v1005 = vunpack.c.0.s8 %v1004
        %v1006 = vperm.slane %v1000, %v1005
        %v1008 = vunpack.c.l.s4 1934713408
        %v1009 = vunpack.c.0.s8 %v1008
        %v1010 = vperm.slane %v1002, %v1009
        %v1011 = vrot.slane %v1006, 4
        %v1012 = vsel %vm641, 0, %v1011
        %v1013 = vrot.slane %v1010, 4
        %v1014 = vsel %vm641, 0, %v1013
        %v1015 = vrot.slane %v930, 4
        %v1016 = vsel %vm641, %v1015, %v914
        %v1018 = vunpack.c.l.s4 1983009808
        %v1019 = vunpack.c.0.s8 %v1018
        %v1020 = vperm.slane %v1016, %v1019
        %v1021 = vrot.slane %v938, 4
        %v1022 = vsel %vm641, %v1021, %v922
        %v1024 = vunpack.c.l.s4 1983009808
        %v1025 = vunpack.c.0.s8 %v1024
        %v1026 = vperm.slane %v1022, %v1025
        %v1027 = vrot.slane %v1026, 4
        %v1028 = vsel %vm641, %v1027, %v1020
        %v1029 = vrot.slane %v1020, 4
        %v1030 = vsel %vm641, %v1026, %v1029
        %v1032 = vunpack.c.l.s4 1934713408
        %v1033 = vunpack.c.0.s8 %v1032
        %v1034 = vperm.slane %v1028, %v1033
        %v1036 = vunpack.c.l.s4 1934713408
        %v1037 = vunpack.c.0.s8 %v1036
        %v1038 = vperm.slane %v1030, %v1037
        %v1039 = vrot.slane %v1034, 4
        %v1040 = vsel %vm641, 0, %v1039
        %v1041 = vrot.slane %v1038, 4
        %v1042 = vsel %vm641, 0, %v1041
        %v1043 = vrot.slane %v934, 4
        %v1044 = vsel %vm641, %v1043, %v918
        %v1046 = vunpack.c.l.s4 1983009808
        %v1047 = vunpack.c.0.s8 %v1046
        %v1048 = vperm.slane %v1044, %v1047
        %v1049 = vrot.slane %v942, 4
        %v1050 = vsel %vm641, %v1049, %v926
        %v1052 = vunpack.c.l.s4 1983009808
        %v1053 = vunpack.c.0.s8 %v1052
        %v1054 = vperm.slane %v1050, %v1053
        %v1055 = vrot.slane %v1054, 4
        %v1056 = vsel %vm641, %v1055, %v1048
        %v1057 = vrot.slane %v1048, 4
        %v1058 = vsel %vm641, %v1054, %v1057
        %v1060 = vunpack.c.l.s4 1934713408
        %v1061 = vunpack.c.0.s8 %v1060
        %v1062 = vperm.slane %v1056, %v1061
        %v1064 = vunpack.c.l.s4 1934713408
        %v1065 = vunpack.c.0.s8 %v1064
        %v1066 = vperm.slane %v1058, %v1065
        %v1067 = vrot.slane %v1062, 4
        %v1068 = vsel %vm641, 0, %v1067
        %v1069 = vrot.slane %v1066, 4
        %v1070 = vsel %vm641, 0, %v1069
        %v1073 = vpack.i.b16 %v1006, %v978
        %v1074 = vshrl.u32 %v978, 16
        %v1075 = vshrl.u32 %v1006, 16
        %v1076 = vpack.i.b16 %v1075, %v1074
        %v1079 = vpack.i.b16 %v1012, %v984
        %v1080 = vshrl.u32 %v984, 16
        %v1081 = vshrl.u32 %v1012, 16
        %v1082 = vpack.i.b16 %v1081, %v1080
        %v1085 = vpack.i.b16 %v1010, %v982
        %v1086 = vshrl.u32 %v982, 16
        %v1087 = vshrl.u32 %v1010, 16
        %v1088 = vpack.i.b16 %v1087, %v1086
        %v1091 = vpack.i.b16 %v1014, %v986
        %v1092 = vshrl.u32 %v986, 16
        %v1093 = vshrl.u32 %v1014, 16
        %v1094 = vpack.i.b16 %v1093, %v1092
        %v1097 = vpack.i.b16 %v1062, %v1034
        %v1098 = vshrl.u32 %v1034, 16
        %v1099 = vshrl.u32 %v1062, 16
        %v1100 = vpack.i.b16 %v1099, %v1098
        %v1103 = vpack.i.b16 %v1068, %v1040
        %v1104 = vshrl.u32 %v1040, 16
        %v1105 = vshrl.u32 %v1068, 16
        %v1106 = vpack.i.b16 %v1105, %v1104
        %v1109 = vpack.i.b16 %v1066, %v1038
        %v1110 = vshrl.u32 %v1038, 16
        %v1111 = vshrl.u32 %v1066, 16
        %v1112 = vpack.i.b16 %v1111, %v1110
        %v1115 = vpack.i.b16 %v1070, %v1042
        %v1116 = vshrl.u32 %v1042, 16
        %v1117 = vshrl.u32 %v1070, 16
        %v1118 = vpack.i.b16 %v1117, %v1116
        %v1119 = vunpack.c.l.b16 %v1076
        %v1120 = vpack.c.b16 %v1119, %v1119
        %1121 = vrot.lane.b32.xlu0 %v1120, 16
        %v1122 = vpop.permute.xlu0 %1121
        %v1123 = vunpack.c.l.b16 %v1079
        %v1124 = vpack.c.b16 %v1123, %v1123
        %1125 = vrot.lane.b32.xlu0 %v1124, 32
        %v1126 = vpop.permute.xlu0 %1125
        %v1127 = vunpack.c.l.b16 %v1082
        %v1128 = vpack.c.b16 %v1127, %v1127
        %1129 = vrot.lane.b32.xlu0 %v1128, 48
        %v1130 = vpop.permute.xlu0 %1129
        %v1131 = vunpack.c.l.b16 %v1085
        %v1132 = vpack.c.b16 %v1131, %v1131
        %1133 = vrot.lane.b32.xlu0 %v1132, 64
        %v1134 = vpop.permute.xlu0 %1133
        %v1135 = vunpack.c.l.b16 %v1088
        %v1136 = vpack.c.b16 %v1135, %v1135
        %1137 = vrot.lane.b32.xlu0 %v1136, 80
        %v1138 = vpop.permute.xlu0 %1137
        %v1139 = vunpack.c.l.b16 %v1091
        %v1140 = vpack.c.b16 %v1139, %v1139
        %1141 = vrot.lane.b32.xlu0 %v1140, 96
        %v1142 = vpop.permute.xlu0 %1141
        %v1143 = vunpack.c.l.b16 %v1094
        %v1144 = vpack.c.b16 %v1143, %v1143
        %1145 = vrot.lane.b32.xlu0 %v1144, 112
        %v1146 = vpop.permute.xlu0 %1145
        %v1147 = vunpack.c.l.b16 %v1100
        %v1148 = vpack.c.b16 %v1147, %v1147
        %1149 = vrot.lane.b32.xlu0 %v1148, 16
        %v1150 = vpop.permute.xlu0 %1149
        %v1151 = vunpack.c.l.b16 %v1103
        %v1152 = vpack.c.b16 %v1151, %v1151
        %1153 = vrot.lane.b32.xlu0 %v1152, 32
        %v1154 = vpop.permute.xlu0 %1153
        %v1155 = vunpack.c.l.b16 %v1106
        %v1156 = vpack.c.b16 %v1155, %v1155
        %1157 = vrot.lane.b32.xlu0 %v1156, 48
        %v1158 = vpop.permute.xlu0 %1157
        %v1159 = vunpack.c.l.b16 %v1109
        %v1160 = vpack.c.b16 %v1159, %v1159
        %1161 = vrot.lane.b32.xlu0 %v1160, 64
        %v1162 = vpop.permute.xlu0 %1161
        %v1163 = vunpack.c.l.b16 %v1112
        %v1164 = vpack.c.b16 %v1163, %v1163
        %1165 = vrot.lane.b32.xlu0 %v1164, 80
        %v1166 = vpop.permute.xlu0 %1165
        %v1167 = vunpack.c.l.b16 %v1115
        %v1168 = vpack.c.b16 %v1167, %v1167
        %1169 = vrot.lane.b32.xlu0 %v1168, 96
        %v1170 = vpop.permute.xlu0 %1169
        %v1171 = vunpack.c.l.b16 %v1118
        %v1172 = vpack.c.b16 %v1171, %v1171
        %1173 = vrot.lane.b32.xlu0 %v1172, 112
        %v1174 = vpop.permute.xlu0 %1173
        %v1177 = vsel %vm857, %v1073, %v1122
        %v1179 = vsel %vm861, %v1177, %v1126
        %v1181 = vsel %vm864, %v1179, %v1130
        %v1183 = vsel %vm867, %v1181, %v1134
        %v1185 = vsel %vm870, %v1183, %v1138
        %v1187 = vsel %vm873, %v1185, %v1142
        %v1189 = vsel %vm876, %v1187, %v1146
        %v1192 = vsel %vm857, %v1097, %v1150
        %v1194 = vsel %vm861, %v1192, %v1154
        %v1196 = vsel %vm864, %v1194, %v1158
        %v1198 = vsel %vm867, %v1196, %v1162
        %v1200 = vsel %vm870, %v1198, %v1166
        %v1202 = vsel %vm873, %v1200, %v1170
        %v1204 = vsel %vm876, %v1202, %v1174
        %s1205 = scalar_lea.vmem %s4, 2
        %v1206 = vld [vmem:[%s1205] sm:$0x3]
        %v1208 = vsel %vm439, %v1206, 0
        %v1210 = vsel %vm446, %v1189, 0
        %v1212 = vsel %vm446, %v1204, 0
        %1214 = vmatpush.bf16.msra.mxu0 0
        %1215 = vmatpush.bf16.msra.mxu0 0
        %1216 = vmatpush.bf16.msra.mxu0 0
        %1217 = vmatpush.bf16.msra.mxu0 0
        %1218 = vmatpush.bf16.msra.mxu0 0
        %1219 = vmatpush.bf16.msra.mxu0 0
        %1220 = vmatpush.bf16.msra.mxu0 0
        %1221 = vmatpush.bf16.msra.mxu0 %v1210
        %1222 = vmatmul.bf16.gmra.mxu0 %v1208
        %v1223 = vpop.f32.mrf.mxu0
        %v1224 = vadd.f32 0.0, %v1223
        %v1225 = vpop.f32.mrf.mxu0
        %1226 = vdwg.mxu0
        %1227 = vmatpush.bf16.msra.mxu0 0
        %1228 = vmatpush.bf16.msra.mxu0 0
        %1229 = vmatpush.bf16.msra.mxu0 0
        %1230 = vmatpush.bf16.msra.mxu0 0
        %1231 = vmatpush.bf16.msra.mxu0 0
        %1232 = vmatpush.bf16.msra.mxu0 0
        %1233 = vmatpush.bf16.msra.mxu0 0
        %1234 = vmatpush.bf16.msra.mxu0 %v1212
        %1235 = vmatmul.bf16.gmra.mxu0 %v1208
        %v1236 = vpop.f32.mrf.mxu0
        %v1237 = vadd.f32 0.0, %v1236
        %v1238 = vpop.f32.mrf.mxu0
        %1239 = vdwg.mxu0
        %v1241 = vsel %vm439, %v894, 0
        %v1243 = vsel %vm446, %v878, 0
        %v1245 = vsel %vm446, %v893, 0
        %1247 = vmatpush.bf16.msra.mxu0 0
        %1248 = vmatpush.bf16.msra.mxu0 0
        %1249 = vmatpush.bf16.msra.mxu0 0
        %1250 = vmatpush.bf16.msra.mxu0 0
        %1251 = vmatpush.bf16.msra.mxu0 0
        %1252 = vmatpush.bf16.msra.mxu0 0
        %1253 = vmatpush.bf16.msra.mxu0 0
        %1254 = vmatpush.bf16.msra.mxu0 %v1243
        %1255 = vmatmul.bf16.gmra.mxu0 %v1241
        %v1256 = vpop.f32.mrf.mxu0
        %v1257 = vadd.f32 %v1224, %v1256
        %v1258 = vpop.f32.mrf.mxu0
        %1259 = vdwg.mxu0
        %1260 = vmatpush.bf16.msra.mxu0 0
        %1261 = vmatpush.bf16.msra.mxu0 0
        %1262 = vmatpush.bf16.msra.mxu0 0
        %1263 = vmatpush.bf16.msra.mxu0 0
        %1264 = vmatpush.bf16.msra.mxu0 0
        %1265 = vmatpush.bf16.msra.mxu0 0
        %1266 = vmatpush.bf16.msra.mxu0 0
        %1267 = vmatpush.bf16.msra.mxu0 %v1245
        %1268 = vmatmul.bf16.gmra.mxu0 %v1241
        %v1269 = vpop.f32.mrf.mxu0
        %v1270 = vadd.f32 %v1237, %v1269
        %v1271 = vpop.f32.mrf.mxu0
        %1272 = vdwg.mxu0
        %1273 = vrot.lane.b32.xlu0 %v616, 126
        %v1274 = vpop.permute.xlu0 %1273
        %1275 = vrot.lane.b32.xlu0 %v617, 126
        %v1276 = vpop.permute.xlu0 %1275
        %1277 = vrot.lane.b32.xlu0 %v619, 126
        %v1278 = vpop.permute.xlu0 %1277
        %1279 = vrot.lane.b32.xlu0 %v620, 126
        %v1280 = vpop.permute.xlu0 %1279
        %1281 = vrot.lane.b32.xlu0 %v622, 126
        %v1282 = vpop.permute.xlu0 %1281
        %1283 = vrot.lane.b32.xlu0 %v623, 126
        %v1284 = vpop.permute.xlu0 %1283
        %1285 = vrot.lane.b32.xlu0 %v625, 126
        %v1286 = vpop.permute.xlu0 %1285
        %1287 = vrot.lane.b32.xlu0 %v626, 126
        %v1288 = vpop.permute.xlu0 %1287
        %1289 = vrot.lane.b32.xlu0 %v628, 126
        %v1290 = vpop.permute.xlu0 %1289
        %1291 = vrot.lane.b32.xlu0 %v629, 126
        %v1292 = vpop.permute.xlu0 %1291
        %1293 = vrot.lane.b32.xlu0 %v631, 126
        %v1294 = vpop.permute.xlu0 %1293
        %1295 = vrot.lane.b32.xlu0 %v632, 126
        %v1296 = vpop.permute.xlu0 %1295
        %1297 = vrot.lane.b32.xlu0 %v634, 126
        %v1298 = vpop.permute.xlu0 %1297
        %1299 = vrot.lane.b32.xlu0 %v635, 126
        %v1300 = vpop.permute.xlu0 %1299
        %1301 = vrot.lane.b32.xlu0 %v637, 126
        %v1302 = vpop.permute.xlu0 %1301
        %1303 = vrot.lane.b32.xlu0 %v638, 126
        %v1304 = vpop.permute.xlu0 %1303
        %v1321 = vrot.slane %v1290, 4
        %v1322 = vsel %vm641, %v1321, %v1274
        %v1324 = vunpack.c.l.s4 1983009808
        %v1325 = vunpack.c.0.s8 %v1324
        %v1326 = vperm.slane %v1322, %v1325
        %v1327 = vrot.slane %v1298, 4
        %v1328 = vsel %vm641, %v1327, %v1282
        %v1330 = vunpack.c.l.s4 1983009808
        %v1331 = vunpack.c.0.s8 %v1330
        %v1332 = vperm.slane %v1328, %v1331
        %v1333 = vrot.slane %v1332, 4
        %v1334 = vsel %vm641, %v1333, %v1326
        %v1335 = vrot.slane %v1326, 4
        %v1336 = vsel %vm641, %v1332, %v1335
        %v1338 = vunpack.c.l.s4 1934713408
        %v1339 = vunpack.c.0.s8 %v1338
        %v1340 = vperm.slane %v1334, %v1339
        %v1342 = vunpack.c.l.s4 1934713408
        %v1343 = vunpack.c.0.s8 %v1342
        %v1344 = vperm.slane %v1336, %v1343
        %v1345 = vrot.slane %v1340, 4
        %v1346 = vsel %vm641, 0, %v1345
        %v1347 = vrot.slane %v1344, 4
        %v1348 = vsel %vm641, 0, %v1347
        %v1349 = vrot.slane %v1294, 4
        %v1350 = vsel %vm641, %v1349, %v1278
        %v1352 = vunpack.c.l.s4 1983009808
        %v1353 = vunpack.c.0.s8 %v1352
        %v1354 = vperm.slane %v1350, %v1353
        %v1355 = vrot.slane %v1302, 4
        %v1356 = vsel %vm641, %v1355, %v1286
        %v1358 = vunpack.c.l.s4 1983009808
        %v1359 = vunpack.c.0.s8 %v1358
        %v1360 = vperm.slane %v1356, %v1359
        %v1361 = vrot.slane %v1360, 4
        %v1362 = vsel %vm641, %v1361, %v1354
        %v1363 = vrot.slane %v1354, 4
        %v1364 = vsel %vm641, %v1360, %v1363
        %v1366 = vunpack.c.l.s4 1934713408
        %v1367 = vunpack.c.0.s8 %v1366
        %v1368 = vperm.slane %v1362, %v1367
        %v1370 = vunpack.c.l.s4 1934713408
        %v1371 = vunpack.c.0.s8 %v1370
        %v1372 = vperm.slane %v1364, %v1371
        %v1373 = vrot.slane %v1368, 4
        %v1374 = vsel %vm641, 0, %v1373
        %v1375 = vrot.slane %v1372, 4
        %v1376 = vsel %vm641, 0, %v1375
        %v1377 = vrot.slane %v1292, 4
        %v1378 = vsel %vm641, %v1377, %v1276
        %v1380 = vunpack.c.l.s4 1983009808
        %v1381 = vunpack.c.0.s8 %v1380
        %v1382 = vperm.slane %v1378, %v1381
        %v1383 = vrot.slane %v1300, 4
        %v1384 = vsel %vm641, %v1383, %v1284
        %v1386 = vunpack.c.l.s4 1983009808
        %v1387 = vunpack.c.0.s8 %v1386
        %v1388 = vperm.slane %v1384, %v1387
        %v1389 = vrot.slane %v1388, 4
        %v1390 = vsel %vm641, %v1389, %v1382
        %v1391 = vrot.slane %v1382, 4
        %v1392 = vsel %vm641, %v1388, %v1391
        %v1394 = vunpack.c.l.s4 1934713408
        %v1395 = vunpack.c.0.s8 %v1394
        %v1396 = vperm.slane %v1390, %v1395
        %v1398 = vunpack.c.l.s4 1934713408
        %v1399 = vunpack.c.0.s8 %v1398
        %v1400 = vperm.slane %v1392, %v1399
        %v1401 = vrot.slane %v1396, 4
        %v1402 = vsel %vm641, 0, %v1401
        %v1403 = vrot.slane %v1400, 4
        %v1404 = vsel %vm641, 0, %v1403
        %v1405 = vrot.slane %v1296, 4
        %v1406 = vsel %vm641, %v1405, %v1280
        %v1408 = vunpack.c.l.s4 1983009808
        %v1409 = vunpack.c.0.s8 %v1408
        %v1410 = vperm.slane %v1406, %v1409
        %v1411 = vrot.slane %v1304, 4
        %v1412 = vsel %vm641, %v1411, %v1288
        %v1414 = vunpack.c.l.s4 1983009808
        %v1415 = vunpack.c.0.s8 %v1414
        %v1416 = vperm.slane %v1412, %v1415
        %v1417 = vrot.slane %v1416, 4
        %v1418 = vsel %vm641, %v1417, %v1410
        %v1419 = vrot.slane %v1410, 4
        %v1420 = vsel %vm641, %v1416, %v1419
        %v1422 = vunpack.c.l.s4 1934713408
        %v1423 = vunpack.c.0.s8 %v1422
        %v1424 = vperm.slane %v1418, %v1423
        %v1426 = vunpack.c.l.s4 1934713408
        %v1427 = vunpack.c.0.s8 %v1426
        %v1428 = vperm.slane %v1420, %v1427
        %v1429 = vrot.slane %v1424, 4
        %v1430 = vsel %vm641, 0, %v1429
        %v1431 = vrot.slane %v1428, 4
        %v1432 = vsel %vm641, 0, %v1431
        %v1435 = vpack.i.b16 %v1368, %v1340
        %v1436 = vshrl.u32 %v1340, 16
        %v1437 = vshrl.u32 %v1368, 16
        %v1438 = vpack.i.b16 %v1437, %v1436
        %v1441 = vpack.i.b16 %v1374, %v1346
        %v1442 = vshrl.u32 %v1346, 16
        %v1443 = vshrl.u32 %v1374, 16
        %v1444 = vpack.i.b16 %v1443, %v1442
        %v1447 = vpack.i.b16 %v1372, %v1344
        %v1448 = vshrl.u32 %v1344, 16
        %v1449 = vshrl.u32 %v1372, 16
        %v1450 = vpack.i.b16 %v1449, %v1448
        %v1453 = vpack.i.b16 %v1376, %v1348
        %v1454 = vshrl.u32 %v1348, 16
        %v1455 = vshrl.u32 %v1376, 16
        %v1456 = vpack.i.b16 %v1455, %v1454
        %v1459 = vpack.i.b16 %v1424, %v1396
        %v1460 = vshrl.u32 %v1396, 16
        %v1461 = vshrl.u32 %v1424, 16
        %v1462 = vpack.i.b16 %v1461, %v1460
        %v1465 = vpack.i.b16 %v1430, %v1402
        %v1466 = vshrl.u32 %v1402, 16
        %v1467 = vshrl.u32 %v1430, 16
        %v1468 = vpack.i.b16 %v1467, %v1466
        %v1471 = vpack.i.b16 %v1428, %v1400
        %v1472 = vshrl.u32 %v1400, 16
        %v1473 = vshrl.u32 %v1428, 16
        %v1474 = vpack.i.b16 %v1473, %v1472
        %v1477 = vpack.i.b16 %v1432, %v1404
        %v1478 = vshrl.u32 %v1404, 16
        %v1479 = vshrl.u32 %v1432, 16
        %v1480 = vpack.i.b16 %v1479, %v1478
        %v1481 = vunpack.c.l.b16 %v1438
        %v1482 = vpack.c.b16 %v1481, %v1481
        %1483 = vrot.lane.b32.xlu0 %v1482, 16
        %v1484 = vpop.permute.xlu0 %1483
        %v1485 = vunpack.c.l.b16 %v1441
        %v1486 = vpack.c.b16 %v1485, %v1485
        %1487 = vrot.lane.b32.xlu0 %v1486, 32
        %v1488 = vpop.permute.xlu0 %1487
        %v1489 = vunpack.c.l.b16 %v1444
        %v1490 = vpack.c.b16 %v1489, %v1489
        %1491 = vrot.lane.b32.xlu0 %v1490, 48
        %v1492 = vpop.permute.xlu0 %1491
        %v1493 = vunpack.c.l.b16 %v1447
        %v1494 = vpack.c.b16 %v1493, %v1493
        %1495 = vrot.lane.b32.xlu0 %v1494, 64
        %v1496 = vpop.permute.xlu0 %1495
        %v1497 = vunpack.c.l.b16 %v1450
        %v1498 = vpack.c.b16 %v1497, %v1497
        %1499 = vrot.lane.b32.xlu0 %v1498, 80
        %v1500 = vpop.permute.xlu0 %1499
        %v1501 = vunpack.c.l.b16 %v1453
        %v1502 = vpack.c.b16 %v1501, %v1501
        %1503 = vrot.lane.b32.xlu0 %v1502, 96
        %v1504 = vpop.permute.xlu0 %1503
        %v1505 = vunpack.c.l.b16 %v1456
        %v1506 = vpack.c.b16 %v1505, %v1505
        %1507 = vrot.lane.b32.xlu0 %v1506, 112
        %v1508 = vpop.permute.xlu0 %1507
        %v1509 = vunpack.c.l.b16 %v1462
        %v1510 = vpack.c.b16 %v1509, %v1509
        %1511 = vrot.lane.b32.xlu0 %v1510, 16
        %v1512 = vpop.permute.xlu0 %1511
        %v1513 = vunpack.c.l.b16 %v1465
        %v1514 = vpack.c.b16 %v1513, %v1513
        %1515 = vrot.lane.b32.xlu0 %v1514, 32
        %v1516 = vpop.permute.xlu0 %1515
        %v1517 = vunpack.c.l.b16 %v1468
        %v1518 = vpack.c.b16 %v1517, %v1517
        %1519 = vrot.lane.b32.xlu0 %v1518, 48
        %v1520 = vpop.permute.xlu0 %1519
        %v1521 = vunpack.c.l.b16 %v1471
        %v1522 = vpack.c.b16 %v1521, %v1521
        %1523 = vrot.lane.b32.xlu0 %v1522, 64
        %v1524 = vpop.permute.xlu0 %1523
        %v1525 = vunpack.c.l.b16 %v1474
        %v1526 = vpack.c.b16 %v1525, %v1525
        %1527 = vrot.lane.b32.xlu0 %v1526, 80
        %v1528 = vpop.permute.xlu0 %1527
        %v1529 = vunpack.c.l.b16 %v1477
        %v1530 = vpack.c.b16 %v1529, %v1529
        %1531 = vrot.lane.b32.xlu0 %v1530, 96
        %v1532 = vpop.permute.xlu0 %1531
        %v1533 = vunpack.c.l.b16 %v1480
        %v1534 = vpack.c.b16 %v1533, %v1533
        %1535 = vrot.lane.b32.xlu0 %v1534, 112
        %v1536 = vpop.permute.xlu0 %1535
        %v1539 = vsel %vm857, %v1435, %v1484
        %v1541 = vsel %vm861, %v1539, %v1488
        %v1543 = vsel %vm864, %v1541, %v1492
        %v1545 = vsel %vm867, %v1543, %v1496
        %v1547 = vsel %vm870, %v1545, %v1500
        %v1549 = vsel %vm873, %v1547, %v1504
        %v1551 = vsel %vm876, %v1549, %v1508
        %v1554 = vsel %vm857, %v1459, %v1512
        %v1556 = vsel %vm861, %v1554, %v1516
        %v1558 = vsel %vm864, %v1556, %v1520
        %v1560 = vsel %vm867, %v1558, %v1524
        %v1562 = vsel %vm870, %v1560, %v1528
        %v1564 = vsel %vm873, %v1562, %v1532
        %v1566 = vsel %vm876, %v1564, %v1536
        %s1567 = scalar_lea.vmem %s4, 4
        %v1568 = vld [vmem:[%s1567] sm:$0x3]
        %v1570 = vsel %vm439, %v1568, 0
        %v1572 = vsel %vm446, %v1551, 0
        %v1574 = vsel %vm446, %v1566, 0
        %1576 = vmatpush.bf16.msra.mxu0 0
        %1577 = vmatpush.bf16.msra.mxu0 0
        %1578 = vmatpush.bf16.msra.mxu0 0
        %1579 = vmatpush.bf16.msra.mxu0 0
        %1580 = vmatpush.bf16.msra.mxu0 0
        %1581 = vmatpush.bf16.msra.mxu0 0
        %1582 = vmatpush.bf16.msra.mxu0 0
        %1583 = vmatpush.bf16.msra.mxu0 %v1572
        %1584 = vmatmul.bf16.gmra.mxu0 %v1570
        %v1585 = vpop.f32.mrf.mxu0
        %v1586 = vadd.f32 0.0, %v1585
        %v1587 = vpop.f32.mrf.mxu0
        %1588 = vdwg.mxu0
        %1589 = vmatpush.bf16.msra.mxu0 0
        %1590 = vmatpush.bf16.msra.mxu0 0
        %1591 = vmatpush.bf16.msra.mxu0 0
        %1592 = vmatpush.bf16.msra.mxu0 0
        %1593 = vmatpush.bf16.msra.mxu0 0
        %1594 = vmatpush.bf16.msra.mxu0 0
        %1595 = vmatpush.bf16.msra.mxu0 0
        %1596 = vmatpush.bf16.msra.mxu0 %v1574
        %1597 = vmatmul.bf16.gmra.mxu0 %v1570
        %v1598 = vpop.f32.mrf.mxu0
        %v1599 = vadd.f32 0.0, %v1598
        %v1600 = vpop.f32.mrf.mxu0
        %1601 = vdwg.mxu0
        %v1602 = vadd.f32 %v1257, %v1586
        %v1603 = vadd.f32 %v1270, %v1599
        %vm1604 = vsmask.f32 3328
        %vm1605 = vsmask.f32 7440
        %vm1606 = vmor %vm1604, %vm1605
        %v1608 = vshrl.u32 %v616, 16
        %v1610 = vrot.slane %v1608, 4
        %v1611 = vshll.u32 %v616, 16
        %v1613 = vrot.slane %v1611, 5
        %v1614 = vor.u32 %v1610, %v1613
        %v1615 = vrot.slane %v1614, 4
        %v1617 = vshll.u32 %v617, 16
        %v1619 = vrot.slane %v1617, 5
        %v1620 = vsel %vm1606, %v1615, %v1619
        %v1621 = vshrl.u32 %v617, 16
        %v1623 = vrot.slane %v1621, 4
        %v1624 = vor.u32 %v1623, %v1619
        %v1625 = vrot.slane %v1624, 4
        %v1627 = vshll.u32 %v618, 16
        %v1629 = vrot.slane %v1627, 5
        %v1630 = vsel %vm1606, %v1625, %v1629
        %v1632 = vshrl.u32 %v619, 16
        %v1634 = vrot.slane %v1632, 4
        %v1635 = vshll.u32 %v619, 16
        %v1637 = vrot.slane %v1635, 5
        %v1638 = vor.u32 %v1634, %v1637
        %v1639 = vrot.slane %v1638, 4
        %v1641 = vshll.u32 %v620, 16
        %v1643 = vrot.slane %v1641, 5
        %v1644 = vsel %vm1606, %v1639, %v1643
        %v1645 = vshrl.u32 %v620, 16
        %v1647 = vrot.slane %v1645, 4
        %v1648 = vor.u32 %v1647, %v1643
        %v1649 = vrot.slane %v1648, 4
        %v1651 = vshll.u32 %v621, 16
        %v1653 = vrot.slane %v1651, 5
        %v1654 = vsel %vm1606, %v1649, %v1653
        %v1656 = vshrl.u32 %v622, 16
        %v1658 = vrot.slane %v1656, 4
        %v1659 = vshll.u32 %v622, 16
        %v1661 = vrot.slane %v1659, 5
        %v1662 = vor.u32 %v1658, %v1661
        %v1663 = vrot.slane %v1662, 4
        %v1665 = vshll.u32 %v623, 16
        %v1667 = vrot.slane %v1665, 5
        %v1668 = vsel %vm1606, %v1663, %v1667
        %v1669 = vshrl.u32 %v623, 16
        %v1671 = vrot.slane %v1669, 4
        %v1672 = vor.u32 %v1671, %v1667
        %v1673 = vrot.slane %v1672, 4
        %v1675 = vshll.u32 %v624, 16
        %v1677 = vrot.slane %v1675, 5
        %v1678 = vsel %vm1606, %v1673, %v1677
        %v1680 = vshrl.u32 %v625, 16
        %v1682 = vrot.slane %v1680, 4
        %v1683 = vshll.u32 %v625, 16
        %v1685 = vrot.slane %v1683, 5
        %v1686 = vor.u32 %v1682, %v1685
        %v1687 = vrot.slane %v1686, 4
        %v1689 = vshll.u32 %v626, 16
        %v1691 = vrot.slane %v1689, 5
        %v1692 = vsel %vm1606, %v1687, %v1691
        %v1693 = vshrl.u32 %v626, 16
        %v1695 = vrot.slane %v1693, 4
        %v1696 = vor.u32 %v1695, %v1691
        %v1697 = vrot.slane %v1696, 4
        %v1699 = vshll.u32 %v627, 16
        %v1701 = vrot.slane %v1699, 5
        %v1702 = vsel %vm1606, %v1697, %v1701
        %v1704 = vshrl.u32 %v628, 16
        %v1706 = vrot.slane %v1704, 4
        %v1707 = vshll.u32 %v628, 16
        %v1709 = vrot.slane %v1707, 5
        %v1710 = vor.u32 %v1706, %v1709
        %v1711 = vrot.slane %v1710, 4
        %v1713 = vshll.u32 %v629, 16
        %v1715 = vrot.slane %v1713, 5
        %v1716 = vsel %vm1606, %v1711, %v1715
        %v1717 = vshrl.u32 %v629, 16
        %v1719 = vrot.slane %v1717, 4
        %v1720 = vor.u32 %v1719, %v1715
        %v1721 = vrot.slane %v1720, 4
        %v1723 = vshll.u32 %v630, 16
        %v1725 = vrot.slane %v1723, 5
        %v1726 = vsel %vm1606, %v1721, %v1725
        %v1728 = vshrl.u32 %v631, 16
        %v1730 = vrot.slane %v1728, 4
        %v1731 = vshll.u32 %v631, 16
        %v1733 = vrot.slane %v1731, 5
        %v1734 = vor.u32 %v1730, %v1733
        %v1735 = vrot.slane %v1734, 4
        %v1737 = vshll.u32 %v632, 16
        %v1739 = vrot.slane %v1737, 5
        %v1740 = vsel %vm1606, %v1735, %v1739
        %v1741 = vshrl.u32 %v632, 16
        %v1743 = vrot.slane %v1741, 4
        %v1744 = vor.u32 %v1743, %v1739
        %v1745 = vrot.slane %v1744, 4
        %v1747 = vshll.u32 %v633, 16
        %v1749 = vrot.slane %v1747, 5
        %v1750 = vsel %vm1606, %v1745, %v1749
        %v1752 = vshrl.u32 %v634, 16
        %v1754 = vrot.slane %v1752, 4
        %v1755 = vshll.u32 %v634, 16
        %v1757 = vrot.slane %v1755, 5
        %v1758 = vor.u32 %v1754, %v1757
        %v1759 = vrot.slane %v1758, 4
        %v1761 = vshll.u32 %v635, 16
        %v1763 = vrot.slane %v1761, 5
        %v1764 = vsel %vm1606, %v1759, %v1763
        %v1765 = vshrl.u32 %v635, 16
        %v1767 = vrot.slane %v1765, 4
        %v1768 = vor.u32 %v1767, %v1763
        %v1769 = vrot.slane %v1768, 4
        %v1771 = vshll.u32 %v636, 16
        %v1773 = vrot.slane %v1771, 5
        %v1774 = vsel %vm1606, %v1769, %v1773
        %v1776 = vshrl.u32 %v637, 16
        %v1778 = vrot.slane %v1776, 4
        %v1779 = vshll.u32 %v637, 16
        %v1781 = vrot.slane %v1779, 5
        %v1782 = vor.u32 %v1778, %v1781
        %v1783 = vrot.slane %v1782, 4
        %v1785 = vshll.u32 %v638, 16
        %v1787 = vrot.slane %v1785, 5
        %v1788 = vsel %vm1606, %v1783, %v1787
        %v1789 = vshrl.u32 %v638, 16
        %v1791 = vrot.slane %v1789, 4
        %v1792 = vor.u32 %v1791, %v1787
        %v1793 = vrot.slane %v1792, 4
        %v1795 = vshll.u32 %v639, 16
        %v1797 = vrot.slane %v1795, 5
        %v1798 = vsel %vm1606, %v1793, %v1797
        %v1815 = vrot.slane %v1716, 4
        %v1816 = vsel %vm641, %v1815, %v1620
        %v1818 = vunpack.c.l.s4 1983009808
        %v1819 = vunpack.c.0.s8 %v1818
        %v1820 = vperm.slane %v1816, %v1819
        %v1821 = vrot.slane %v1764, 4
        %v1822 = vsel %vm641, %v1821, %v1668
        %v1824 = vunpack.c.l.s4 1983009808
        %v1825 = vunpack.c.0.s8 %v1824
        %v1826 = vperm.slane %v1822, %v1825
        %v1827 = vrot.slane %v1826, 4
        %v1828 = vsel %vm641, %v1827, %v1820
        %v1829 = vrot.slane %v1820, 4
        %v1830 = vsel %vm641, %v1826, %v1829
        %v1832 = vunpack.c.l.s4 1934713408
        %v1833 = vunpack.c.0.s8 %v1832
        %v1834 = vperm.slane %v1828, %v1833
        %v1836 = vunpack.c.l.s4 1934713408
        %v1837 = vunpack.c.0.s8 %v1836
        %v1838 = vperm.slane %v1830, %v1837
        %v1839 = vrot.slane %v1834, 4
        %v1840 = vsel %vm641, 0, %v1839
        %v1841 = vrot.slane %v1838, 4
        %v1842 = vsel %vm641, 0, %v1841
        %v1843 = vrot.slane %v1740, 4
        %v1844 = vsel %vm641, %v1843, %v1644
        %v1846 = vunpack.c.l.s4 1983009808
        %v1847 = vunpack.c.0.s8 %v1846
        %v1848 = vperm.slane %v1844, %v1847
        %v1849 = vrot.slane %v1788, 4
        %v1850 = vsel %vm641, %v1849, %v1692
        %v1852 = vunpack.c.l.s4 1983009808
        %v1853 = vunpack.c.0.s8 %v1852
        %v1854 = vperm.slane %v1850, %v1853
        %v1855 = vrot.slane %v1854, 4
        %v1856 = vsel %vm641, %v1855, %v1848
        %v1857 = vrot.slane %v1848, 4
        %v1858 = vsel %vm641, %v1854, %v1857
        %v1860 = vunpack.c.l.s4 1934713408
        %v1861 = vunpack.c.0.s8 %v1860
        %v1862 = vperm.slane %v1856, %v1861
        %v1864 = vunpack.c.l.s4 1934713408
        %v1865 = vunpack.c.0.s8 %v1864
        %v1866 = vperm.slane %v1858, %v1865
        %v1867 = vrot.slane %v1862, 4
        %v1868 = vsel %vm641, 0, %v1867
        %v1869 = vrot.slane %v1866, 4
        %v1870 = vsel %vm641, 0, %v1869
        %v1871 = vrot.slane %v1726, 4
        %v1872 = vsel %vm641, %v1871, %v1630
        %v1874 = vunpack.c.l.s4 1983009808
        %v1875 = vunpack.c.0.s8 %v1874
        %v1876 = vperm.slane %v1872, %v1875
        %v1877 = vrot.slane %v1774, 4
        %v1878 = vsel %vm641, %v1877, %v1678
        %v1880 = vunpack.c.l.s4 1983009808
        %v1881 = vunpack.c.0.s8 %v1880
        %v1882 = vperm.slane %v1878, %v1881
        %v1883 = vrot.slane %v1882, 4
        %v1884 = vsel %vm641, %v1883, %v1876
        %v1885 = vrot.slane %v1876, 4
        %v1886 = vsel %vm641, %v1882, %v1885
        %v1888 = vunpack.c.l.s4 1934713408
        %v1889 = vunpack.c.0.s8 %v1888
        %v1890 = vperm.slane %v1884, %v1889
        %v1892 = vunpack.c.l.s4 1934713408
        %v1893 = vunpack.c.0.s8 %v1892
        %v1894 = vperm.slane %v1886, %v1893
        %v1895 = vrot.slane %v1890, 4
        %v1896 = vsel %vm641, 0, %v1895
        %v1897 = vrot.slane %v1894, 4
        %v1898 = vsel %vm641, 0, %v1897
        %v1899 = vrot.slane %v1750, 4
        %v1900 = vsel %vm641, %v1899, %v1654
        %v1902 = vunpack.c.l.s4 1983009808
        %v1903 = vunpack.c.0.s8 %v1902
        %v1904 = vperm.slane %v1900, %v1903
        %v1905 = vrot.slane %v1798, 4
        %v1906 = vsel %vm641, %v1905, %v1702
        %v1908 = vunpack.c.l.s4 1983009808
        %v1909 = vunpack.c.0.s8 %v1908
        %v1910 = vperm.slane %v1906, %v1909
        %v1911 = vrot.slane %v1910, 4
        %v1912 = vsel %vm641, %v1911, %v1904
        %v1913 = vrot.slane %v1904, 4
        %v1914 = vsel %vm641, %v1910, %v1913
        %v1916 = vunpack.c.l.s4 1934713408
        %v1917 = vunpack.c.0.s8 %v1916
        %v1918 = vperm.slane %v1912, %v1917
        %v1920 = vunpack.c.l.s4 1934713408
        %v1921 = vunpack.c.0.s8 %v1920
        %v1922 = vperm.slane %v1914, %v1921
        %v1923 = vrot.slane %v1918, 4
        %v1924 = vsel %vm641, 0, %v1923
        %v1925 = vrot.slane %v1922, 4
        %v1926 = vsel %vm641, 0, %v1925
        %v1929 = vpack.i.b16 %v1862, %v1834
        %v1930 = vshrl.u32 %v1834, 16
        %v1931 = vshrl.u32 %v1862, 16
        %v1932 = vpack.i.b16 %v1931, %v1930
        %v1935 = vpack.i.b16 %v1868, %v1840
        %v1936 = vshrl.u32 %v1840, 16
        %v1937 = vshrl.u32 %v1868, 16
        %v1938 = vpack.i.b16 %v1937, %v1936
        %v1941 = vpack.i.b16 %v1866, %v1838
        %v1942 = vshrl.u32 %v1838, 16
        %v1943 = vshrl.u32 %v1866, 16
        %v1944 = vpack.i.b16 %v1943, %v1942
        %v1947 = vpack.i.b16 %v1870, %v1842
        %v1948 = vshrl.u32 %v1842, 16
        %v1949 = vshrl.u32 %v1870, 16
        %v1950 = vpack.i.b16 %v1949, %v1948
        %v1953 = vpack.i.b16 %v1918, %v1890
        %v1954 = vshrl.u32 %v1890, 16
        %v1955 = vshrl.u32 %v1918, 16
        %v1956 = vpack.i.b16 %v1955, %v1954
        %v1959 = vpack.i.b16 %v1924, %v1896
        %v1960 = vshrl.u32 %v1896, 16
        %v1961 = vshrl.u32 %v1924, 16
        %v1962 = vpack.i.b16 %v1961, %v1960
        %v1965 = vpack.i.b16 %v1922, %v1894
        %v1966 = vshrl.u32 %v1894, 16
        %v1967 = vshrl.u32 %v1922, 16
        %v1968 = vpack.i.b16 %v1967, %v1966
        %v1971 = vpack.i.b16 %v1926, %v1898
        %v1972 = vshrl.u32 %v1898, 16
        %v1973 = vshrl.u32 %v1926, 16
        %v1974 = vpack.i.b16 %v1973, %v1972
        %v1975 = vunpack.c.l.b16 %v1932
        %v1976 = vpack.c.b16 %v1975, %v1975
        %1977 = vrot.lane.b32.xlu0 %v1976, 16
        %v1978 = vpop.permute.xlu0 %1977
        %v1979 = vunpack.c.l.b16 %v1935
        %v1980 = vpack.c.b16 %v1979, %v1979
        %1981 = vrot.lane.b32.xlu0 %v1980, 32
        %v1982 = vpop.permute.xlu0 %1981
        %v1983 = vunpack.c.l.b16 %v1938
        %v1984 = vpack.c.b16 %v1983, %v1983
        %1985 = vrot.lane.b32.xlu0 %v1984, 48
        %v1986 = vpop.permute.xlu0 %1985
        %v1987 = vunpack.c.l.b16 %v1941
        %v1988 = vpack.c.b16 %v1987, %v1987
        %1989 = vrot.lane.b32.xlu0 %v1988, 64
        %v1990 = vpop.permute.xlu0 %1989
        %v1991 = vunpack.c.l.b16 %v1944
        %v1992 = vpack.c.b16 %v1991, %v1991
        %1993 = vrot.lane.b32.xlu0 %v1992, 80
        %v1994 = vpop.permute.xlu0 %1993
        %v1995 = vunpack.c.l.b16 %v1947
        %v1996 = vpack.c.b16 %v1995, %v1995
        %1997 = vrot.lane.b32.xlu0 %v1996, 96
        %v1998 = vpop.permute.xlu0 %1997
        %v1999 = vunpack.c.l.b16 %v1950
        %v2000 = vpack.c.b16 %v1999, %v1999
        %2001 = vrot.lane.b32.xlu0 %v2000, 112
        %v2002 = vpop.permute.xlu0 %2001
        %v2003 = vunpack.c.l.b16 %v1956
        %v2004 = vpack.c.b16 %v2003, %v2003
        %2005 = vrot.lane.b32.xlu0 %v2004, 16
        %v2006 = vpop.permute.xlu0 %2005
        %v2007 = vunpack.c.l.b16 %v1959
        %v2008 = vpack.c.b16 %v2007, %v2007
        %2009 = vrot.lane.b32.xlu0 %v2008, 32
        %v2010 = vpop.permute.xlu0 %2009
        %v2011 = vunpack.c.l.b16 %v1962
        %v2012 = vpack.c.b16 %v2011, %v2011
        %2013 = vrot.lane.b32.xlu0 %v2012, 48
        %v2014 = vpop.permute.xlu0 %2013
        %v2015 = vunpack.c.l.b16 %v1965
        %v2016 = vpack.c.b16 %v2015, %v2015
        %2017 = vrot.lane.b32.xlu0 %v2016, 64
        %v2018 = vpop.permute.xlu0 %2017
        %v2019 = vunpack.c.l.b16 %v1968
        %v2020 = vpack.c.b16 %v2019, %v2019
        %2021 = vrot.lane.b32.xlu0 %v2020, 80
        %v2022 = vpop.permute.xlu0 %2021
        %v2023 = vunpack.c.l.b16 %v1971
        %v2024 = vpack.c.b16 %v2023, %v2023
        %2025 = vrot.lane.b32.xlu0 %v2024, 96
        %v2026 = vpop.permute.xlu0 %2025
        %v2027 = vunpack.c.l.b16 %v1974
        %v2028 = vpack.c.b16 %v2027, %v2027
        %2029 = vrot.lane.b32.xlu0 %v2028, 112
        %v2030 = vpop.permute.xlu0 %2029
        %v2033 = vsel %vm857, %v1929, %v1978
        %v2035 = vsel %vm861, %v2033, %v1982
        %v2037 = vsel %vm864, %v2035, %v1986
        %v2039 = vsel %vm867, %v2037, %v1990
        %v2041 = vsel %vm870, %v2039, %v1994
        %v2043 = vsel %vm873, %v2041, %v1998
        %v2045 = vsel %vm876, %v2043, %v2002
        %v2048 = vsel %vm857, %v1953, %v2006
        %v2050 = vsel %vm861, %v2048, %v2010
        %v2052 = vsel %vm864, %v2050, %v2014
        %v2054 = vsel %vm867, %v2052, %v2018
        %v2056 = vsel %vm870, %v2054, %v2022
        %v2058 = vsel %vm873, %v2056, %v2026
        %v2060 = vsel %vm876, %v2058, %v2030
        %s2061 = scalar_lea.vmem %s4, 6
        %v2062 = vld [vmem:[%s2061] sm:$0x3]
        %v2064 = vsel %vm439, %v2062, 0
        %v2066 = vsel %vm446, %v2045, 0
        %v2068 = vsel %vm446, %v2060, 0
        %2070 = vmatpush.bf16.msra.mxu0 0
        %2071 = vmatpush.bf16.msra.mxu0 0
        %2072 = vmatpush.bf16.msra.mxu0 0
        %2073 = vmatpush.bf16.msra.mxu0 0
        %2074 = vmatpush.bf16.msra.mxu0 0
        %2075 = vmatpush.bf16.msra.mxu0 0
        %2076 = vmatpush.bf16.msra.mxu0 0
        %2077 = vmatpush.bf16.msra.mxu0 %v2066
        %2078 = vmatmul.bf16.gmra.mxu0 %v2064
        %v2079 = vpop.f32.mrf.mxu0
        %v2080 = vadd.f32 0.0, %v2079
        %v2081 = vpop.f32.mrf.mxu0
        %2082 = vdwg.mxu0
        %2083 = vmatpush.bf16.msra.mxu0 0
        %2084 = vmatpush.bf16.msra.mxu0 0
        %2085 = vmatpush.bf16.msra.mxu0 0
        %2086 = vmatpush.bf16.msra.mxu0 0
        %2087 = vmatpush.bf16.msra.mxu0 0
        %2088 = vmatpush.bf16.msra.mxu0 0
        %2089 = vmatpush.bf16.msra.mxu0 0
        %2090 = vmatpush.bf16.msra.mxu0 %v2068
        %2091 = vmatmul.bf16.gmra.mxu0 %v2064
        %v2092 = vpop.f32.mrf.mxu0
        %v2093 = vadd.f32 0.0, %v2092
        %v2094 = vpop.f32.mrf.mxu0
        %2095 = vdwg.mxu0
        %v2096 = vadd.f32 %v1602, %v2080
        %v2097 = vadd.f32 %v1603, %v2093
        %2098 = vrot.lane.b32.xlu0 %v1620, 127
        %v2099 = vpop.permute.xlu0 %2098
        %2100 = vrot.lane.b32.xlu0 %v1630, 127
        %v2101 = vpop.permute.xlu0 %2100
        %2102 = vrot.lane.b32.xlu0 %v1644, 127
        %v2103 = vpop.permute.xlu0 %2102
        %2104 = vrot.lane.b32.xlu0 %v1654, 127
        %v2105 = vpop.permute.xlu0 %2104
        %2106 = vrot.lane.b32.xlu0 %v1668, 127
        %v2107 = vpop.permute.xlu0 %2106
        %2108 = vrot.lane.b32.xlu0 %v1678, 127
        %v2109 = vpop.permute.xlu0 %2108
        %2110 = vrot.lane.b32.xlu0 %v1692, 127
        %v2111 = vpop.permute.xlu0 %2110
        %2112 = vrot.lane.b32.xlu0 %v1702, 127
        %v2113 = vpop.permute.xlu0 %2112
        %2114 = vrot.lane.b32.xlu0 %v1716, 127
        %v2115 = vpop.permute.xlu0 %2114
        %2116 = vrot.lane.b32.xlu0 %v1726, 127
        %v2117 = vpop.permute.xlu0 %2116
        %2118 = vrot.lane.b32.xlu0 %v1740, 127
        %v2119 = vpop.permute.xlu0 %2118
        %2120 = vrot.lane.b32.xlu0 %v1750, 127
        %v2121 = vpop.permute.xlu0 %2120
        %2122 = vrot.lane.b32.xlu0 %v1764, 127
        %v2123 = vpop.permute.xlu0 %2122
        %2124 = vrot.lane.b32.xlu0 %v1774, 127
        %v2125 = vpop.permute.xlu0 %2124
        %2126 = vrot.lane.b32.xlu0 %v1788, 127
        %v2127 = vpop.permute.xlu0 %2126
        %2128 = vrot.lane.b32.xlu0 %v1798, 127
        %v2129 = vpop.permute.xlu0 %2128
        %v2146 = vrot.slane %v2115, 4
        %v2147 = vsel %vm641, %v2146, %v2099
        %v2149 = vunpack.c.l.s4 1983009808
        %v2150 = vunpack.c.0.s8 %v2149
        %v2151 = vperm.slane %v2147, %v2150
        %v2152 = vrot.slane %v2123, 4
        %v2153 = vsel %vm641, %v2152, %v2107
        %v2155 = vunpack.c.l.s4 1983009808
        %v2156 = vunpack.c.0.s8 %v2155
        %v2157 = vperm.slane %v2153, %v2156
        %v2158 = vrot.slane %v2157, 4
        %v2159 = vsel %vm641, %v2158, %v2151
        %v2160 = vrot.slane %v2151, 4
        %v2161 = vsel %vm641, %v2157, %v2160
        %v2163 = vunpack.c.l.s4 1934713408
        %v2164 = vunpack.c.0.s8 %v2163
        %v2165 = vperm.slane %v2159, %v2164
        %v2167 = vunpack.c.l.s4 1934713408
        %v2168 = vunpack.c.0.s8 %v2167
        %v2169 = vperm.slane %v2161, %v2168
        %v2170 = vrot.slane %v2165, 4
        %v2171 = vsel %vm641, 0, %v2170
        %v2172 = vrot.slane %v2169, 4
        %v2173 = vsel %vm641, 0, %v2172
        %v2174 = vrot.slane %v2119, 4
        %v2175 = vsel %vm641, %v2174, %v2103
        %v2177 = vunpack.c.l.s4 1983009808
        %v2178 = vunpack.c.0.s8 %v2177
        %v2179 = vperm.slane %v2175, %v2178
        %v2180 = vrot.slane %v2127, 4
        %v2181 = vsel %vm641, %v2180, %v2111
        %v2183 = vunpack.c.l.s4 1983009808
        %v2184 = vunpack.c.0.s8 %v2183
        %v2185 = vperm.slane %v2181, %v2184
        %v2186 = vrot.slane %v2185, 4
        %v2187 = vsel %vm641, %v2186, %v2179
        %v2188 = vrot.slane %v2179, 4
        %v2189 = vsel %vm641, %v2185, %v2188
        %v2191 = vunpack.c.l.s4 1934713408
        %v2192 = vunpack.c.0.s8 %v2191
        %v2193 = vperm.slane %v2187, %v2192
        %v2195 = vunpack.c.l.s4 1934713408
        %v2196 = vunpack.c.0.s8 %v2195
        %v2197 = vperm.slane %v2189, %v2196
        %v2198 = vrot.slane %v2193, 4
        %v2199 = vsel %vm641, 0, %v2198
        %v2200 = vrot.slane %v2197, 4
        %v2201 = vsel %vm641, 0, %v2200
        %v2202 = vrot.slane %v2117, 4
        %v2203 = vsel %vm641, %v2202, %v2101
        %v2205 = vunpack.c.l.s4 1983009808
        %v2206 = vunpack.c.0.s8 %v2205
        %v2207 = vperm.slane %v2203, %v2206
        %v2208 = vrot.slane %v2125, 4
        %v2209 = vsel %vm641, %v2208, %v2109
        %v2211 = vunpack.c.l.s4 1983009808
        %v2212 = vunpack.c.0.s8 %v2211
        %v2213 = vperm.slane %v2209, %v2212
        %v2214 = vrot.slane %v2213, 4
        %v2215 = vsel %vm641, %v2214, %v2207
        %v2216 = vrot.slane %v2207, 4
        %v2217 = vsel %vm641, %v2213, %v2216
        %v2219 = vunpack.c.l.s4 1934713408
        %v2220 = vunpack.c.0.s8 %v2219
        %v2221 = vperm.slane %v2215, %v2220
        %v2223 = vunpack.c.l.s4 1934713408
        %v2224 = vunpack.c.0.s8 %v2223
        %v2225 = vperm.slane %v2217, %v2224
        %v2226 = vrot.slane %v2221, 4
        %v2227 = vsel %vm641, 0, %v2226
        %v2228 = vrot.slane %v2225, 4
        %v2229 = vsel %vm641, 0, %v2228
        %v2230 = vrot.slane %v2121, 4
        %v2231 = vsel %vm641, %v2230, %v2105
        %v2233 = vunpack.c.l.s4 1983009808
        %v2234 = vunpack.c.0.s8 %v2233
        %v2235 = vperm.slane %v2231, %v2234
        %v2236 = vrot.slane %v2129, 4
        %v2237 = vsel %vm641, %v2236, %v2113
        %v2239 = vunpack.c.l.s4 1983009808
        %v2240 = vunpack.c.0.s8 %v2239
        %v2241 = vperm.slane %v2237, %v2240
        %v2242 = vrot.slane %v2241, 4
        %v2243 = vsel %vm641, %v2242, %v2235
        %v2244 = vrot.slane %v2235, 4
        %v2245 = vsel %vm641, %v2241, %v2244
        %v2247 = vunpack.c.l.s4 1934713408
        %v2248 = vunpack.c.0.s8 %v2247
        %v2249 = vperm.slane %v2243, %v2248
        %v2251 = vunpack.c.l.s4 1934713408
        %v2252 = vunpack.c.0.s8 %v2251
        %v2253 = vperm.slane %v2245, %v2252
        %v2254 = vrot.slane %v2249, 4
        %v2255 = vsel %vm641, 0, %v2254
        %v2256 = vrot.slane %v2253, 4
        %v2257 = vsel %vm641, 0, %v2256
        %v2260 = vpack.i.b16 %v2193, %v2165
        %v2261 = vshrl.u32 %v2165, 16
        %v2262 = vshrl.u32 %v2193, 16
        %v2263 = vpack.i.b16 %v2262, %v2261
        %v2266 = vpack.i.b16 %v2199, %v2171
        %v2267 = vshrl.u32 %v2171, 16
        %v2268 = vshrl.u32 %v2199, 16
        %v2269 = vpack.i.b16 %v2268, %v2267
        %v2272 = vpack.i.b16 %v2197, %v2169
        %v2273 = vshrl.u32 %v2169, 16
        %v2274 = vshrl.u32 %v2197, 16
        %v2275 = vpack.i.b16 %v2274, %v2273
        %v2278 = vpack.i.b16 %v2201, %v2173
        %v2279 = vshrl.u32 %v2173, 16
        %v2280 = vshrl.u32 %v2201, 16
        %v2281 = vpack.i.b16 %v2280, %v2279
        %v2284 = vpack.i.b16 %v2249, %v2221
        %v2285 = vshrl.u32 %v2221, 16
        %v2286 = vshrl.u32 %v2249, 16
        %v2287 = vpack.i.b16 %v2286, %v2285
        %v2290 = vpack.i.b16 %v2255, %v2227
        %v2291 = vshrl.u32 %v2227, 16
        %v2292 = vshrl.u32 %v2255, 16
        %v2293 = vpack.i.b16 %v2292, %v2291
        %v2296 = vpack.i.b16 %v2253, %v2225
        %v2297 = vshrl.u32 %v2225, 16
        %v2298 = vshrl.u32 %v2253, 16
        %v2299 = vpack.i.b16 %v2298, %v2297
        %v2302 = vpack.i.b16 %v2257, %v2229
        %v2303 = vshrl.u32 %v2229, 16
        %v2304 = vshrl.u32 %v2257, 16
        %v2305 = vpack.i.b16 %v2304, %v2303
        %v2306 = vunpack.c.l.b16 %v2263
        %v2307 = vpack.c.b16 %v2306, %v2306
        %2308 = vrot.lane.b32.xlu0 %v2307, 16
        %v2309 = vpop.permute.xlu0 %2308
        %v2310 = vunpack.c.l.b16 %v2266
        %v2311 = vpack.c.b16 %v2310, %v2310
        %2312 = vrot.lane.b32.xlu0 %v2311, 32
        %v2313 = vpop.permute.xlu0 %2312
        %v2314 = vunpack.c.l.b16 %v2269
        %v2315 = vpack.c.b16 %v2314, %v2314
        %2316 = vrot.lane.b32.xlu0 %v2315, 48
        %v2317 = vpop.permute.xlu0 %2316
        %v2318 = vunpack.c.l.b16 %v2272
        %v2319 = vpack.c.b16 %v2318, %v2318
        %2320 = vrot.lane.b32.xlu0 %v2319, 64
        %v2321 = vpop.permute.xlu0 %2320
        %v2322 = vunpack.c.l.b16 %v2275
        %v2323 = vpack.c.b16 %v2322, %v2322
        %2324 = vrot.lane.b32.xlu0 %v2323, 80
        %v2325 = vpop.permute.xlu0 %2324
        %v2326 = vunpack.c.l.b16 %v2278
        %v2327 = vpack.c.b16 %v2326, %v2326
        %2328 = vrot.lane.b32.xlu0 %v2327, 96
        %v2329 = vpop.permute.xlu0 %2328
        %v2330 = vunpack.c.l.b16 %v2281
        %v2331 = vpack.c.b16 %v2330, %v2330
        %2332 = vrot.lane.b32.xlu0 %v2331, 112
        %v2333 = vpop.permute.xlu0 %2332
        %v2334 = vunpack.c.l.b16 %v2287
        %v2335 = vpack.c.b16 %v2334, %v2334
        %2336 = vrot.lane.b32.xlu0 %v2335, 16
        %v2337 = vpop.permute.xlu0 %2336
        %v2338 = vunpack.c.l.b16 %v2290
        %v2339 = vpack.c.b16 %v2338, %v2338
        %2340 = vrot.lane.b32.xlu0 %v2339, 32
        %v2341 = vpop.permute.xlu0 %2340
        %v2342 = vunpack.c.l.b16 %v2293
        %v2343 = vpack.c.b16 %v2342, %v2342
        %2344 = vrot.lane.b32.xlu0 %v2343, 48
        %v2345 = vpop.permute.xlu0 %2344
        %v2346 = vunpack.c.l.b16 %v2296
        %v2347 = vpack.c.b16 %v2346, %v2346
        %2348 = vrot.lane.b32.xlu0 %v2347, 64
        %v2349 = vpop.permute.xlu0 %2348
        %v2350 = vunpack.c.l.b16 %v2299
        %v2351 = vpack.c.b16 %v2350, %v2350
        %2352 = vrot.lane.b32.xlu0 %v2351, 80
        %v2353 = vpop.permute.xlu0 %2352
        %v2354 = vunpack.c.l.b16 %v2302
        %v2355 = vpack.c.b16 %v2354, %v2354
        %2356 = vrot.lane.b32.xlu0 %v2355, 96
        %v2357 = vpop.permute.xlu0 %2356
        %v2358 = vunpack.c.l.b16 %v2305
        %v2359 = vpack.c.b16 %v2358, %v2358
        %2360 = vrot.lane.b32.xlu0 %v2359, 112
        %v2361 = vpop.permute.xlu0 %2360
        %v2364 = vsel %vm857, %v2260, %v2309
        %v2366 = vsel %vm861, %v2364, %v2313
        %v2368 = vsel %vm864, %v2366, %v2317
        %v2370 = vsel %vm867, %v2368, %v2321
        %v2372 = vsel %vm870, %v2370, %v2325
        %v2374 = vsel %vm873, %v2372, %v2329
        %v2376 = vsel %vm876, %v2374, %v2333
        %v2379 = vsel %vm857, %v2284, %v2337
        %v2381 = vsel %vm861, %v2379, %v2341
        %v2383 = vsel %vm864, %v2381, %v2345
        %v2385 = vsel %vm867, %v2383, %v2349
        %v2387 = vsel %vm870, %v2385, %v2353
        %v2389 = vsel %vm873, %v2387, %v2357
        %v2391 = vsel %vm876, %v2389, %v2361
        %s2392 = scalar_lea.vmem %s4, 8
        %v2393 = vld [vmem:[%s2392] sm:$0x3]
        %v2395 = vsel %vm439, %v2393, 0
        %v2397 = vsel %vm446, %v2376, 0
        %v2399 = vsel %vm446, %v2391, 0
        %2401 = vmatpush.bf16.msra.mxu0 0
        %2402 = vmatpush.bf16.msra.mxu0 0
        %2403 = vmatpush.bf16.msra.mxu0 0
        %2404 = vmatpush.bf16.msra.mxu0 0
        %2405 = vmatpush.bf16.msra.mxu0 0
        %2406 = vmatpush.bf16.msra.mxu0 0
        %2407 = vmatpush.bf16.msra.mxu0 0
        %2408 = vmatpush.bf16.msra.mxu0 %v2397
        %2409 = vmatmul.bf16.gmra.mxu0 %v2395
        %v2410 = vpop.f32.mrf.mxu0
        %v2411 = vadd.f32 0.0, %v2410
        %v2412 = vpop.f32.mrf.mxu0
        %2413 = vdwg.mxu0
        %2414 = vmatpush.bf16.msra.mxu0 0
        %2415 = vmatpush.bf16.msra.mxu0 0
        %2416 = vmatpush.bf16.msra.mxu0 0
        %2417 = vmatpush.bf16.msra.mxu0 0
        %2418 = vmatpush.bf16.msra.mxu0 0
        %2419 = vmatpush.bf16.msra.mxu0 0
        %2420 = vmatpush.bf16.msra.mxu0 0
        %2421 = vmatpush.bf16.msra.mxu0 %v2399
        %2422 = vmatmul.bf16.gmra.mxu0 %v2395
        %v2423 = vpop.f32.mrf.mxu0
        %v2424 = vadd.f32 0.0, %v2423
        %v2425 = vpop.f32.mrf.mxu0
        %2426 = vdwg.mxu0
        %v2427 = vadd.f32 %v2096, %v2411
        %v2428 = vadd.f32 %v2097, %v2424
        %2429 = vrot.lane.b32.xlu0 %v1620, 126
        %v2430 = vpop.permute.xlu0 %2429
        %2431 = vrot.lane.b32.xlu0 %v1630, 126
        %v2432 = vpop.permute.xlu0 %2431
        %2433 = vrot.lane.b32.xlu0 %v1644, 126
        %v2434 = vpop.permute.xlu0 %2433
        %2435 = vrot.lane.b32.xlu0 %v1654, 126
        %v2436 = vpop.permute.xlu0 %2435
        %2437 = vrot.lane.b32.xlu0 %v1668, 126
        %v2438 = vpop.permute.xlu0 %2437
        %2439 = vrot.lane.b32.xlu0 %v1678, 126
        %v2440 = vpop.permute.xlu0 %2439
        %2441 = vrot.lane.b32.xlu0 %v1692, 126
        %v2442 = vpop.permute.xlu0 %2441
        %2443 = vrot.lane.b32.xlu0 %v1702, 126
        %v2444 = vpop.permute.xlu0 %2443
        %2445 = vrot.lane.b32.xlu0 %v1716, 126
        %v2446 = vpop.permute.xlu0 %2445
        %2447 = vrot.lane.b32.xlu0 %v1726, 126
        %v2448 = vpop.permute.xlu0 %2447
        %2449 = vrot.lane.b32.xlu0 %v1740, 126
        %v2450 = vpop.permute.xlu0 %2449
        %2451 = vrot.lane.b32.xlu0 %v1750, 126
        %v2452 = vpop.permute.xlu0 %2451
        %2453 = vrot.lane.b32.xlu0 %v1764, 126
        %v2454 = vpop.permute.xlu0 %2453
        %2455 = vrot.lane.b32.xlu0 %v1774, 126
        %v2456 = vpop.permute.xlu0 %2455
        %2457 = vrot.lane.b32.xlu0 %v1788, 126
        %v2458 = vpop.permute.xlu0 %2457
        %2459 = vrot.lane.b32.xlu0 %v1798, 126
        %v2460 = vpop.permute.xlu0 %2459
        %v2477 = vrot.slane %v2446, 4
        %v2478 = vsel %vm641, %v2477, %v2430
        %v2480 = vunpack.c.l.s4 1983009808
        %v2481 = vunpack.c.0.s8 %v2480
        %v2482 = vperm.slane %v2478, %v2481
        %v2483 = vrot.slane %v2454, 4
        %v2484 = vsel %vm641, %v2483, %v2438
        %v2486 = vunpack.c.l.s4 1983009808
        %v2487 = vunpack.c.0.s8 %v2486
        %v2488 = vperm.slane %v2484, %v2487
        %v2489 = vrot.slane %v2488, 4
        %v2490 = vsel %vm641, %v2489, %v2482
        %v2491 = vrot.slane %v2482, 4
        %v2492 = vsel %vm641, %v2488, %v2491
        %v2494 = vunpack.c.l.s4 1934713408
        %v2495 = vunpack.c.0.s8 %v2494
        %v2496 = vperm.slane %v2490, %v2495
        %v2498 = vunpack.c.l.s4 1934713408
        %v2499 = vunpack.c.0.s8 %v2498
        %v2500 = vperm.slane %v2492, %v2499
        %v2501 = vrot.slane %v2496, 4
        %v2502 = vsel %vm641, 0, %v2501
        %v2503 = vrot.slane %v2500, 4
        %v2504 = vsel %vm641, 0, %v2503
        %v2505 = vrot.slane %v2450, 4
        %v2506 = vsel %vm641, %v2505, %v2434
        %v2508 = vunpack.c.l.s4 1983009808
        %v2509 = vunpack.c.0.s8 %v2508
        %v2510 = vperm.slane %v2506, %v2509
        %v2511 = vrot.slane %v2458, 4
        %v2512 = vsel %vm641, %v2511, %v2442
        %v2514 = vunpack.c.l.s4 1983009808
        %v2515 = vunpack.c.0.s8 %v2514
        %v2516 = vperm.slane %v2512, %v2515
        %v2517 = vrot.slane %v2516, 4
        %v2518 = vsel %vm641, %v2517, %v2510
        %v2519 = vrot.slane %v2510, 4
        %v2520 = vsel %vm641, %v2516, %v2519
        %v2522 = vunpack.c.l.s4 1934713408
        %v2523 = vunpack.c.0.s8 %v2522
        %v2524 = vperm.slane %v2518, %v2523
        %v2526 = vunpack.c.l.s4 1934713408
        %v2527 = vunpack.c.0.s8 %v2526
        %v2528 = vperm.slane %v2520, %v2527
        %v2529 = vrot.slane %v2524, 4
        %v2530 = vsel %vm641, 0, %v2529
        %v2531 = vrot.slane %v2528, 4
        %v2532 = vsel %vm641, 0, %v2531
        %v2533 = vrot.slane %v2448, 4
        %v2534 = vsel %vm641, %v2533, %v2432
        %v2536 = vunpack.c.l.s4 1983009808
        %v2537 = vunpack.c.0.s8 %v2536
        %v2538 = vperm.slane %v2534, %v2537
        %v2539 = vrot.slane %v2456, 4
        %v2540 = vsel %vm641, %v2539, %v2440
        %v2542 = vunpack.c.l.s4 1983009808
        %v2543 = vunpack.c.0.s8 %v2542
        %v2544 = vperm.slane %v2540, %v2543
        %v2545 = vrot.slane %v2544, 4
        %v2546 = vsel %vm641, %v2545, %v2538
        %v2547 = vrot.slane %v2538, 4
        %v2548 = vsel %vm641, %v2544, %v2547
        %v2550 = vunpack.c.l.s4 1934713408
        %v2551 = vunpack.c.0.s8 %v2550
        %v2552 = vperm.slane %v2546, %v2551
        %v2554 = vunpack.c.l.s4 1934713408
        %v2555 = vunpack.c.0.s8 %v2554
        %v2556 = vperm.slane %v2548, %v2555
        %v2557 = vrot.slane %v2552, 4
        %v2558 = vsel %vm641, 0, %v2557
        %v2559 = vrot.slane %v2556, 4
        %v2560 = vsel %vm641, 0, %v2559
        %v2561 = vrot.slane %v2452, 4
        %v2562 = vsel %vm641, %v2561, %v2436
        %v2564 = vunpack.c.l.s4 1983009808
        %v2565 = vunpack.c.0.s8 %v2564
        %v2566 = vperm.slane %v2562, %v2565
        %v2567 = vrot.slane %v2460, 4
        %v2568 = vsel %vm641, %v2567, %v2444
        %v2570 = vunpack.c.l.s4 1983009808
        %v2571 = vunpack.c.0.s8 %v2570
        %v2572 = vperm.slane %v2568, %v2571
        %v2573 = vrot.slane %v2572, 4
        %v2574 = vsel %vm641, %v2573, %v2566
        %v2575 = vrot.slane %v2566, 4
        %v2576 = vsel %vm641, %v2572, %v2575
        %v2578 = vunpack.c.l.s4 1934713408
        %v2579 = vunpack.c.0.s8 %v2578
        %v2580 = vperm.slane %v2574, %v2579
        %v2582 = vunpack.c.l.s4 1934713408
        %v2583 = vunpack.c.0.s8 %v2582
        %v2584 = vperm.slane %v2576, %v2583
        %v2585 = vrot.slane %v2580, 4
        %v2586 = vsel %vm641, 0, %v2585
        %v2587 = vrot.slane %v2584, 4
        %v2588 = vsel %vm641, 0, %v2587
        %v2591 = vpack.i.b16 %v2524, %v2496
        %v2592 = vshrl.u32 %v2496, 16
        %v2593 = vshrl.u32 %v2524, 16
        %v2594 = vpack.i.b16 %v2593, %v2592
        %v2597 = vpack.i.b16 %v2530, %v2502
        %v2598 = vshrl.u32 %v2502, 16
        %v2599 = vshrl.u32 %v2530, 16
        %v2600 = vpack.i.b16 %v2599, %v2598
        %v2603 = vpack.i.b16 %v2528, %v2500
        %v2604 = vshrl.u32 %v2500, 16
        %v2605 = vshrl.u32 %v2528, 16
        %v2606 = vpack.i.b16 %v2605, %v2604
        %v2609 = vpack.i.b16 %v2532, %v2504
        %v2610 = vshrl.u32 %v2504, 16
        %v2611 = vshrl.u32 %v2532, 16
        %v2612 = vpack.i.b16 %v2611, %v2610
        %v2615 = vpack.i.b16 %v2580, %v2552
        %v2616 = vshrl.u32 %v2552, 16
        %v2617 = vshrl.u32 %v2580, 16
        %v2618 = vpack.i.b16 %v2617, %v2616
        %v2621 = vpack.i.b16 %v2586, %v2558
        %v2622 = vshrl.u32 %v2558, 16
        %v2623 = vshrl.u32 %v2586, 16
        %v2624 = vpack.i.b16 %v2623, %v2622
        %v2627 = vpack.i.b16 %v2584, %v2556
        %v2628 = vshrl.u32 %v2556, 16
        %v2629 = vshrl.u32 %v2584, 16
        %v2630 = vpack.i.b16 %v2629, %v2628
        %v2633 = vpack.i.b16 %v2588, %v2560
        %v2634 = vshrl.u32 %v2560, 16
        %v2635 = vshrl.u32 %v2588, 16
        %v2636 = vpack.i.b16 %v2635, %v2634
        %v2637 = vunpack.c.l.b16 %v2594
        %v2638 = vpack.c.b16 %v2637, %v2637
        %2639 = vrot.lane.b32.xlu0 %v2638, 16
        %v2640 = vpop.permute.xlu0 %2639
        %v2641 = vunpack.c.l.b16 %v2597
        %v2642 = vpack.c.b16 %v2641, %v2641
        %2643 = vrot.lane.b32.xlu0 %v2642, 32
        %v2644 = vpop.permute.xlu0 %2643
        %v2645 = vunpack.c.l.b16 %v2600
        %v2646 = vpack.c.b16 %v2645, %v2645
        %2647 = vrot.lane.b32.xlu0 %v2646, 48
        %v2648 = vpop.permute.xlu0 %2647
        %v2649 = vunpack.c.l.b16 %v2603
        %v2650 = vpack.c.b16 %v2649, %v2649
        %2651 = vrot.lane.b32.xlu0 %v2650, 64
        %v2652 = vpop.permute.xlu0 %2651
        %v2653 = vunpack.c.l.b16 %v2606
        %v2654 = vpack.c.b16 %v2653, %v2653
        %2655 = vrot.lane.b32.xlu0 %v2654, 80
        %v2656 = vpop.permute.xlu0 %2655
        %v2657 = vunpack.c.l.b16 %v2609
        %v2658 = vpack.c.b16 %v2657, %v2657
        %2659 = vrot.lane.b32.xlu0 %v2658, 96
        %v2660 = vpop.permute.xlu0 %2659
        %v2661 = vunpack.c.l.b16 %v2612
        %v2662 = vpack.c.b16 %v2661, %v2661
        %2663 = vrot.lane.b32.xlu0 %v2662, 112
        %v2664 = vpop.permute.xlu0 %2663
        %v2665 = vunpack.c.l.b16 %v2618
        %v2666 = vpack.c.b16 %v2665, %v2665
        %2667 = vrot.lane.b32.xlu0 %v2666, 16
        %v2668 = vpop.permute.xlu0 %2667
        %v2669 = vunpack.c.l.b16 %v2621
        %v2670 = vpack.c.b16 %v2669, %v2669
        %2671 = vrot.lane.b32.xlu0 %v2670, 32
        %v2672 = vpop.permute.xlu0 %2671
        %v2673 = vunpack.c.l.b16 %v2624
        %v2674 = vpack.c.b16 %v2673, %v2673
        %2675 = vrot.lane.b32.xlu0 %v2674, 48
        %v2676 = vpop.permute.xlu0 %2675
        %v2677 = vunpack.c.l.b16 %v2627
        %v2678 = vpack.c.b16 %v2677, %v2677
        %2679 = vrot.lane.b32.xlu0 %v2678, 64
        %v2680 = vpop.permute.xlu0 %2679
        %v2681 = vunpack.c.l.b16 %v2630
        %v2682 = vpack.c.b16 %v2681, %v2681
        %2683 = vrot.lane.b32.xlu0 %v2682, 80
        %v2684 = vpop.permute.xlu0 %2683
        %v2685 = vunpack.c.l.b16 %v2633
        %v2686 = vpack.c.b16 %v2685, %v2685
        %2687 = vrot.lane.b32.xlu0 %v2686, 96
        %v2688 = vpop.permute.xlu0 %2687
        %v2689 = vunpack.c.l.b16 %v2636
        %v2690 = vpack.c.b16 %v2689, %v2689
        %2691 = vrot.lane.b32.xlu0 %v2690, 112
        %v2692 = vpop.permute.xlu0 %2691
        %v2695 = vsel %vm857, %v2591, %v2640
        %v2697 = vsel %vm861, %v2695, %v2644
        %v2699 = vsel %vm864, %v2697, %v2648
        %v2701 = vsel %vm867, %v2699, %v2652
        %v2703 = vsel %vm870, %v2701, %v2656
        %v2705 = vsel %vm873, %v2703, %v2660
        %v2707 = vsel %vm876, %v2705, %v2664
        %v2710 = vsel %vm857, %v2615, %v2668
        %v2712 = vsel %vm861, %v2710, %v2672
        %v2714 = vsel %vm864, %v2712, %v2676
        %v2716 = vsel %vm867, %v2714, %v2680
        %v2718 = vsel %vm870, %v2716, %v2684
        %v2720 = vsel %vm873, %v2718, %v2688
        %v2722 = vsel %vm876, %v2720, %v2692
        %s2723 = scalar_lea.vmem %s4, 10
        %v2724 = vld [vmem:[%s2723] sm:$0x3]
        %v2726 = vsel %vm439, %v2724, 0
        %v2728 = vsel %vm446, %v2707, 0
        %v2730 = vsel %vm446, %v2722, 0
        %2732 = vmatpush.bf16.msra.mxu0 0
        %2733 = vmatpush.bf16.msra.mxu0 0
        %2734 = vmatpush.bf16.msra.mxu0 0
        %2735 = vmatpush.bf16.msra.mxu0 0
        %2736 = vmatpush.bf16.msra.mxu0 0
        %2737 = vmatpush.bf16.msra.mxu0 0
        %2738 = vmatpush.bf16.msra.mxu0 0
        %2739 = vmatpush.bf16.msra.mxu0 %v2728
        %2740 = vmatmul.bf16.gmra.mxu0 %v2726
        %v2741 = vpop.f32.mrf.mxu0
        %v2742 = vadd.f32 0.0, %v2741
        %v2743 = vpop.f32.mrf.mxu0
        %2744 = vdwg.mxu0
        %2745 = vmatpush.bf16.msra.mxu0 0
        %2746 = vmatpush.bf16.msra.mxu0 0
        %2747 = vmatpush.bf16.msra.mxu0 0
        %2748 = vmatpush.bf16.msra.mxu0 0
        %2749 = vmatpush.bf16.msra.mxu0 0
        %2750 = vmatpush.bf16.msra.mxu0 0
        %2751 = vmatpush.bf16.msra.mxu0 0
        %2752 = vmatpush.bf16.msra.mxu0 %v2730
        %2753 = vmatmul.bf16.gmra.mxu0 %v2726
        %v2754 = vpop.f32.mrf.mxu0
        %v2755 = vadd.f32 0.0, %v2754
        %v2756 = vpop.f32.mrf.mxu0
        %2757 = vdwg.mxu0
        %v2758 = vadd.f32 %v2427, %v2742
        %v2759 = vadd.f32 %v2428, %v2755
        %vm2768 = vcmask 1042432
        %vm2769 = vcmask 1046532
        %vm2770 = vmor %vm2768, %vm2769
        %v2771 = vrot.slane %v616, 5
        %v2772 = vrot.slane %v2771, 4
        %v2773 = vrot.slane %v617, 5
        %v2774 = vsel %vm2770, %v2772, %v2773
        %v2775 = vrot.slane %v2773, 4
        %v2776 = vrot.slane %v618, 5
        %v2777 = vsel %vm2770, %v2775, %v2776
        %v2778 = vrot.slane %v619, 5
        %v2779 = vrot.slane %v2778, 4
        %v2780 = vrot.slane %v620, 5
        %v2781 = vsel %vm2770, %v2779, %v2780
        %v2782 = vrot.slane %v2780, 4
        %v2783 = vrot.slane %v621, 5
        %v2784 = vsel %vm2770, %v2782, %v2783
        %v2785 = vrot.slane %v622, 5
        %v2786 = vrot.slane %v2785, 4
        %v2787 = vrot.slane %v623, 5
        %v2788 = vsel %vm2770, %v2786, %v2787
        %v2789 = vrot.slane %v2787, 4
        %v2790 = vrot.slane %v624, 5
        %v2791 = vsel %vm2770, %v2789, %v2790
        %v2792 = vrot.slane %v625, 5
        %v2793 = vrot.slane %v2792, 4
        %v2794 = vrot.slane %v626, 5
        %v2795 = vsel %vm2770, %v2793, %v2794
        %v2796 = vrot.slane %v2794, 4
        %v2797 = vrot.slane %v627, 5
        %v2798 = vsel %vm2770, %v2796, %v2797
        %v2799 = vrot.slane %v628, 5
        %v2800 = vrot.slane %v2799, 4
        %v2801 = vrot.slane %v629, 5
        %v2802 = vsel %vm2770, %v2800, %v2801
        %v2803 = vrot.slane %v2801, 4
        %v2804 = vrot.slane %v630, 5
        %v2805 = vsel %vm2770, %v2803, %v2804
        %v2806 = vrot.slane %v631, 5
        %v2807 = vrot.slane %v2806, 4
        %v2808 = vrot.slane %v632, 5
        %v2809 = vsel %vm2770, %v2807, %v2808
        %v2810 = vrot.slane %v2808, 4
        %v2811 = vrot.slane %v633, 5
        %v2812 = vsel %vm2770, %v2810, %v2811
        %v2813 = vrot.slane %v634, 5
        %v2814 = vrot.slane %v2813, 4
        %v2815 = vrot.slane %v635, 5
        %v2816 = vsel %vm2770, %v2814, %v2815
        %v2817 = vrot.slane %v2815, 4
        %v2818 = vrot.slane %v636, 5
        %v2819 = vsel %vm2770, %v2817, %v2818
        %v2820 = vrot.slane %v637, 5
        %v2821 = vrot.slane %v2820, 4
        %v2822 = vrot.slane %v638, 5
        %v2823 = vsel %vm2770, %v2821, %v2822
        %v2824 = vrot.slane %v2822, 4
        %v2825 = vrot.slane %v639, 5
        %v2826 = vsel %vm2770, %v2824, %v2825
        %v2843 = vrot.slane %v2802, 4
        %v2844 = vsel %vm641, %v2843, %v2774
        %v2846 = vunpack.c.l.s4 1983009808
        %v2847 = vunpack.c.0.s8 %v2846
        %v2848 = vperm.slane %v2844, %v2847
        %v2849 = vrot.slane %v2816, 4
        %v2850 = vsel %vm641, %v2849, %v2788
        %v2852 = vunpack.c.l.s4 1983009808
        %v2853 = vunpack.c.0.s8 %v2852
        %v2854 = vperm.slane %v2850, %v2853
        %v2855 = vrot.slane %v2854, 4
        %v2856 = vsel %vm641, %v2855, %v2848
        %v2857 = vrot.slane %v2848, 4
        %v2858 = vsel %vm641, %v2854, %v2857
        %v2860 = vunpack.c.l.s4 1934713408
        %v2861 = vunpack.c.0.s8 %v2860
        %v2862 = vperm.slane %v2856, %v2861
        %v2864 = vunpack.c.l.s4 1934713408
        %v2865 = vunpack.c.0.s8 %v2864
        %v2866 = vperm.slane %v2858, %v2865
        %v2867 = vrot.slane %v2862, 4
        %v2868 = vsel %vm641, 0, %v2867
        %v2869 = vrot.slane %v2866, 4
        %v2870 = vsel %vm641, 0, %v2869
        %v2871 = vrot.slane %v2809, 4
        %v2872 = vsel %vm641, %v2871, %v2781
        %v2874 = vunpack.c.l.s4 1983009808
        %v2875 = vunpack.c.0.s8 %v2874
        %v2876 = vperm.slane %v2872, %v2875
        %v2877 = vrot.slane %v2823, 4
        %v2878 = vsel %vm641, %v2877, %v2795
        %v2880 = vunpack.c.l.s4 1983009808
        %v2881 = vunpack.c.0.s8 %v2880
        %v2882 = vperm.slane %v2878, %v2881
        %v2883 = vrot.slane %v2882, 4
        %v2884 = vsel %vm641, %v2883, %v2876
        %v2885 = vrot.slane %v2876, 4
        %v2886 = vsel %vm641, %v2882, %v2885
        %v2888 = vunpack.c.l.s4 1934713408
        %v2889 = vunpack.c.0.s8 %v2888
        %v2890 = vperm.slane %v2884, %v2889
        %v2892 = vunpack.c.l.s4 1934713408
        %v2893 = vunpack.c.0.s8 %v2892
        %v2894 = vperm.slane %v2886, %v2893
        %v2895 = vrot.slane %v2890, 4
        %v2896 = vsel %vm641, 0, %v2895
        %v2897 = vrot.slane %v2894, 4
        %v2898 = vsel %vm641, 0, %v2897
        %v2899 = vrot.slane %v2805, 4
        %v2900 = vsel %vm641, %v2899, %v2777
        %v2902 = vunpack.c.l.s4 1983009808
        %v2903 = vunpack.c.0.s8 %v2902
        %v2904 = vperm.slane %v2900, %v2903
        %v2905 = vrot.slane %v2819, 4
        %v2906 = vsel %vm641, %v2905, %v2791
        %v2908 = vunpack.c.l.s4 1983009808
        %v2909 = vunpack.c.0.s8 %v2908
        %v2910 = vperm.slane %v2906, %v2909
        %v2911 = vrot.slane %v2910, 4
        %v2912 = vsel %vm641, %v2911, %v2904
        %v2913 = vrot.slane %v2904, 4
        %v2914 = vsel %vm641, %v2910, %v2913
        %v2916 = vunpack.c.l.s4 1934713408
        %v2917 = vunpack.c.0.s8 %v2916
        %v2918 = vperm.slane %v2912, %v2917
        %v2920 = vunpack.c.l.s4 1934713408
        %v2921 = vunpack.c.0.s8 %v2920
        %v2922 = vperm.slane %v2914, %v2921
        %v2923 = vrot.slane %v2918, 4
        %v2924 = vsel %vm641, 0, %v2923
        %v2925 = vrot.slane %v2922, 4
        %v2926 = vsel %vm641, 0, %v2925
        %v2927 = vrot.slane %v2812, 4
        %v2928 = vsel %vm641, %v2927, %v2784
        %v2930 = vunpack.c.l.s4 1983009808
        %v2931 = vunpack.c.0.s8 %v2930
        %v2932 = vperm.slane %v2928, %v2931
        %v2933 = vrot.slane %v2826, 4
        %v2934 = vsel %vm641, %v2933, %v2798
        %v2936 = vunpack.c.l.s4 1983009808
        %v2937 = vunpack.c.0.s8 %v2936
        %v2938 = vperm.slane %v2934, %v2937
        %v2939 = vrot.slane %v2938, 4
        %v2940 = vsel %vm641, %v2939, %v2932
        %v2941 = vrot.slane %v2932, 4
        %v2942 = vsel %vm641, %v2938, %v2941
        %v2944 = vunpack.c.l.s4 1934713408
        %v2945 = vunpack.c.0.s8 %v2944
        %v2946 = vperm.slane %v2940, %v2945
        %v2948 = vunpack.c.l.s4 1934713408
        %v2949 = vunpack.c.0.s8 %v2948
        %v2950 = vperm.slane %v2942, %v2949
        %v2951 = vrot.slane %v2946, 4
        %v2952 = vsel %vm641, 0, %v2951
        %v2953 = vrot.slane %v2950, 4
        %v2954 = vsel %vm641, 0, %v2953
        %v2957 = vpack.i.b16 %v2890, %v2862
        %v2958 = vshrl.u32 %v2862, 16
        %v2959 = vshrl.u32 %v2890, 16
        %v2960 = vpack.i.b16 %v2959, %v2958
        %v2963 = vpack.i.b16 %v2896, %v2868
        %v2964 = vshrl.u32 %v2868, 16
        %v2965 = vshrl.u32 %v2896, 16
        %v2966 = vpack.i.b16 %v2965, %v2964
        %v2969 = vpack.i.b16 %v2894, %v2866
        %v2970 = vshrl.u32 %v2866, 16
        %v2971 = vshrl.u32 %v2894, 16
        %v2972 = vpack.i.b16 %v2971, %v2970
        %v2975 = vpack.i.b16 %v2898, %v2870
        %v2976 = vshrl.u32 %v2870, 16
        %v2977 = vshrl.u32 %v2898, 16
        %v2978 = vpack.i.b16 %v2977, %v2976
        %v2981 = vpack.i.b16 %v2946, %v2918
        %v2982 = vshrl.u32 %v2918, 16
        %v2983 = vshrl.u32 %v2946, 16
        %v2984 = vpack.i.b16 %v2983, %v2982
        %v2987 = vpack.i.b16 %v2952, %v2924
        %v2988 = vshrl.u32 %v2924, 16
        %v2989 = vshrl.u32 %v2952, 16
        %v2990 = vpack.i.b16 %v2989, %v2988
        %v2993 = vpack.i.b16 %v2950, %v2922
        %v2994 = vshrl.u32 %v2922, 16
        %v2995 = vshrl.u32 %v2950, 16
        %v2996 = vpack.i.b16 %v2995, %v2994
        %v2999 = vpack.i.b16 %v2954, %v2926
        %v3000 = vshrl.u32 %v2926, 16
        %v3001 = vshrl.u32 %v2954, 16
        %v3002 = vpack.i.b16 %v3001, %v3000
        %v3003 = vunpack.c.l.b16 %v2960
        %v3004 = vpack.c.b16 %v3003, %v3003
        %3005 = vrot.lane.b32.xlu0 %v3004, 16
        %v3006 = vpop.permute.xlu0 %3005
        %v3007 = vunpack.c.l.b16 %v2963
        %v3008 = vpack.c.b16 %v3007, %v3007
        %3009 = vrot.lane.b32.xlu0 %v3008, 32
        %v3010 = vpop.permute.xlu0 %3009
        %v3011 = vunpack.c.l.b16 %v2966
        %v3012 = vpack.c.b16 %v3011, %v3011
        %3013 = vrot.lane.b32.xlu0 %v3012, 48
        %v3014 = vpop.permute.xlu0 %3013
        %v3015 = vunpack.c.l.b16 %v2969
        %v3016 = vpack.c.b16 %v3015, %v3015
        %3017 = vrot.lane.b32.xlu0 %v3016, 64
        %v3018 = vpop.permute.xlu0 %3017
        %v3019 = vunpack.c.l.b16 %v2972
        %v3020 = vpack.c.b16 %v3019, %v3019
        %3021 = vrot.lane.b32.xlu0 %v3020, 80
        %v3022 = vpop.permute.xlu0 %3021
        %v3023 = vunpack.c.l.b16 %v2975
        %v3024 = vpack.c.b16 %v3023, %v3023
        %3025 = vrot.lane.b32.xlu0 %v3024, 96
        %v3026 = vpop.permute.xlu0 %3025
        %v3027 = vunpack.c.l.b16 %v2978
        %v3028 = vpack.c.b16 %v3027, %v3027
        %3029 = vrot.lane.b32.xlu0 %v3028, 112
        %v3030 = vpop.permute.xlu0 %3029
        %v3031 = vunpack.c.l.b16 %v2984
        %v3032 = vpack.c.b16 %v3031, %v3031
        %3033 = vrot.lane.b32.xlu0 %v3032, 16
        %v3034 = vpop.permute.xlu0 %3033
        %v3035 = vunpack.c.l.b16 %v2987
        %v3036 = vpack.c.b16 %v3035, %v3035
        %3037 = vrot.lane.b32.xlu0 %v3036, 32
        %v3038 = vpop.permute.xlu0 %3037
        %v3039 = vunpack.c.l.b16 %v2990
        %v3040 = vpack.c.b16 %v3039, %v3039
        %3041 = vrot.lane.b32.xlu0 %v3040, 48
        %v3042 = vpop.permute.xlu0 %3041
        %v3043 = vunpack.c.l.b16 %v2993
        %v3044 = vpack.c.b16 %v3043, %v3043
        %3045 = vrot.lane.b32.xlu0 %v3044, 64
        %v3046 = vpop.permute.xlu0 %3045
        %v3047 = vunpack.c.l.b16 %v2996
        %v3048 = vpack.c.b16 %v3047, %v3047
        %3049 = vrot.lane.b32.xlu0 %v3048, 80
        %v3050 = vpop.permute.xlu0 %3049
        %v3051 = vunpack.c.l.b16 %v2999
        %v3052 = vpack.c.b16 %v3051, %v3051
        %3053 = vrot.lane.b32.xlu0 %v3052, 96
        %v3054 = vpop.permute.xlu0 %3053
        %v3055 = vunpack.c.l.b16 %v3002
        %v3056 = vpack.c.b16 %v3055, %v3055
        %3057 = vrot.lane.b32.xlu0 %v3056, 112
        %v3058 = vpop.permute.xlu0 %3057
        %v3061 = vsel %vm857, %v2957, %v3006
        %v3063 = vsel %vm861, %v3061, %v3010
        %v3065 = vsel %vm864, %v3063, %v3014
        %v3067 = vsel %vm867, %v3065, %v3018
        %v3069 = vsel %vm870, %v3067, %v3022
        %v3071 = vsel %vm873, %v3069, %v3026
        %v3073 = vsel %vm876, %v3071, %v3030
        %v3076 = vsel %vm857, %v2981, %v3034
        %v3078 = vsel %vm861, %v3076, %v3038
        %v3080 = vsel %vm864, %v3078, %v3042
        %v3082 = vsel %vm867, %v3080, %v3046
        %v3084 = vsel %vm870, %v3082, %v3050
        %v3086 = vsel %vm873, %v3084, %v3054
        %v3088 = vsel %vm876, %v3086, %v3058
        %s3089 = scalar_lea.vmem %s4, 12
        %v3090 = vld [vmem:[%s3089] sm:$0x3]
        %v3092 = vsel %vm439, %v3090, 0
        %v3094 = vsel %vm446, %v3073, 0
        %v3096 = vsel %vm446, %v3088, 0
        %3098 = vmatpush.bf16.msra.mxu0 0
        %3099 = vmatpush.bf16.msra.mxu0 0
        %3100 = vmatpush.bf16.msra.mxu0 0
        %3101 = vmatpush.bf16.msra.mxu0 0
        %3102 = vmatpush.bf16.msra.mxu0 0
        %3103 = vmatpush.bf16.msra.mxu0 0
        %3104 = vmatpush.bf16.msra.mxu0 0
        %3105 = vmatpush.bf16.msra.mxu0 %v3094
        %3106 = vmatmul.bf16.gmra.mxu0 %v3092
        %v3107 = vpop.f32.mrf.mxu0
        %v3108 = vadd.f32 0.0, %v3107
        %v3109 = vpop.f32.mrf.mxu0
        %3110 = vdwg.mxu0
        %3111 = vmatpush.bf16.msra.mxu0 0
        %3112 = vmatpush.bf16.msra.mxu0 0
        %3113 = vmatpush.bf16.msra.mxu0 0
        %3114 = vmatpush.bf16.msra.mxu0 0
        %3115 = vmatpush.bf16.msra.mxu0 0
        %3116 = vmatpush.bf16.msra.mxu0 0
        %3117 = vmatpush.bf16.msra.mxu0 0
        %3118 = vmatpush.bf16.msra.mxu0 %v3096
        %3119 = vmatmul.bf16.gmra.mxu0 %v3092
        %v3120 = vpop.f32.mrf.mxu0
        %v3121 = vadd.f32 0.0, %v3120
        %v3122 = vpop.f32.mrf.mxu0
        %3123 = vdwg.mxu0
        %v3124 = vadd.f32 %v2758, %v3108
        %v3125 = vadd.f32 %v2759, %v3121
        %3126 = vrot.lane.b32.xlu0 %v2774, 127
        %v3127 = vpop.permute.xlu0 %3126
        %3128 = vrot.lane.b32.xlu0 %v2777, 127
        %v3129 = vpop.permute.xlu0 %3128
        %3130 = vrot.lane.b32.xlu0 %v2781, 127
        %v3131 = vpop.permute.xlu0 %3130
        %3132 = vrot.lane.b32.xlu0 %v2784, 127
        %v3133 = vpop.permute.xlu0 %3132
        %3134 = vrot.lane.b32.xlu0 %v2788, 127
        %v3135 = vpop.permute.xlu0 %3134
        %3136 = vrot.lane.b32.xlu0 %v2791, 127
        %v3137 = vpop.permute.xlu0 %3136
        %3138 = vrot.lane.b32.xlu0 %v2795, 127
        %v3139 = vpop.permute.xlu0 %3138
        %3140 = vrot.lane.b32.xlu0 %v2798, 127
        %v3141 = vpop.permute.xlu0 %3140
        %3142 = vrot.lane.b32.xlu0 %v2802, 127
        %v3143 = vpop.permute.xlu0 %3142
        %3144 = vrot.lane.b32.xlu0 %v2805, 127
        %v3145 = vpop.permute.xlu0 %3144
        %3146 = vrot.lane.b32.xlu0 %v2809, 127
        %v3147 = vpop.permute.xlu0 %3146
        %3148 = vrot.lane.b32.xlu0 %v2812, 127
        %v3149 = vpop.permute.xlu0 %3148
        %3150 = vrot.lane.b32.xlu0 %v2816, 127
        %v3151 = vpop.permute.xlu0 %3150
        %3152 = vrot.lane.b32.xlu0 %v2819, 127
        %v3153 = vpop.permute.xlu0 %3152
        %3154 = vrot.lane.b32.xlu0 %v2823, 127
        %v3155 = vpop.permute.xlu0 %3154
        %3156 = vrot.lane.b32.xlu0 %v2826, 127
        %v3157 = vpop.permute.xlu0 %3156
        %v3174 = vrot.slane %v3143, 4
        %v3175 = vsel %vm641, %v3174, %v3127
        %v3177 = vunpack.c.l.s4 1983009808
        %v3178 = vunpack.c.0.s8 %v3177
        %v3179 = vperm.slane %v3175, %v3178
        %v3180 = vrot.slane %v3151, 4
        %v3181 = vsel %vm641, %v3180, %v3135
        %v3183 = vunpack.c.l.s4 1983009808
        %v3184 = vunpack.c.0.s8 %v3183
        %v3185 = vperm.slane %v3181, %v3184
        %v3186 = vrot.slane %v3185, 4
        %v3187 = vsel %vm641, %v3186, %v3179
        %v3188 = vrot.slane %v3179, 4
        %v3189 = vsel %vm641, %v3185, %v3188
        %v3191 = vunpack.c.l.s4 1934713408
        %v3192 = vunpack.c.0.s8 %v3191
        %v3193 = vperm.slane %v3187, %v3192
        %v3195 = vunpack.c.l.s4 1934713408
        %v3196 = vunpack.c.0.s8 %v3195
        %v3197 = vperm.slane %v3189, %v3196
        %v3198 = vrot.slane %v3193, 4
        %v3199 = vsel %vm641, 0, %v3198
        %v3200 = vrot.slane %v3197, 4
        %v3201 = vsel %vm641, 0, %v3200
        %v3202 = vrot.slane %v3147, 4
        %v3203 = vsel %vm641, %v3202, %v3131
        %v3205 = vunpack.c.l.s4 1983009808
        %v3206 = vunpack.c.0.s8 %v3205
        %v3207 = vperm.slane %v3203, %v3206
        %v3208 = vrot.slane %v3155, 4
        %v3209 = vsel %vm641, %v3208, %v3139
        %v3211 = vunpack.c.l.s4 1983009808
        %v3212 = vunpack.c.0.s8 %v3211
        %v3213 = vperm.slane %v3209, %v3212
        %v3214 = vrot.slane %v3213, 4
        %v3215 = vsel %vm641, %v3214, %v3207
        %v3216 = vrot.slane %v3207, 4
        %v3217 = vsel %vm641, %v3213, %v3216
        %v3219 = vunpack.c.l.s4 1934713408
        %v3220 = vunpack.c.0.s8 %v3219
        %v3221 = vperm.slane %v3215, %v3220
        %v3223 = vunpack.c.l.s4 1934713408
        %v3224 = vunpack.c.0.s8 %v3223
        %v3225 = vperm.slane %v3217, %v3224
        %v3226 = vrot.slane %v3221, 4
        %v3227 = vsel %vm641, 0, %v3226
        %v3228 = vrot.slane %v3225, 4
        %v3229 = vsel %vm641, 0, %v3228
        %v3230 = vrot.slane %v3145, 4
        %v3231 = vsel %vm641, %v3230, %v3129
        %v3233 = vunpack.c.l.s4 1983009808
        %v3234 = vunpack.c.0.s8 %v3233
        %v3235 = vperm.slane %v3231, %v3234
        %v3236 = vrot.slane %v3153, 4
        %v3237 = vsel %vm641, %v3236, %v3137
        %v3239 = vunpack.c.l.s4 1983009808
        %v3240 = vunpack.c.0.s8 %v3239
        %v3241 = vperm.slane %v3237, %v3240
        %v3242 = vrot.slane %v3241, 4
        %v3243 = vsel %vm641, %v3242, %v3235
        %v3244 = vrot.slane %v3235, 4
        %v3245 = vsel %vm641, %v3241, %v3244
        %v3247 = vunpack.c.l.s4 1934713408
        %v3248 = vunpack.c.0.s8 %v3247
        %v3249 = vperm.slane %v3243, %v3248
        %v3251 = vunpack.c.l.s4 1934713408
        %v3252 = vunpack.c.0.s8 %v3251
        %v3253 = vperm.slane %v3245, %v3252
        %v3254 = vrot.slane %v3249, 4
        %v3255 = vsel %vm641, 0, %v3254
        %v3256 = vrot.slane %v3253, 4
        %v3257 = vsel %vm641, 0, %v3256
        %v3258 = vrot.slane %v3149, 4
        %v3259 = vsel %vm641, %v3258, %v3133
        %v3261 = vunpack.c.l.s4 1983009808
        %v3262 = vunpack.c.0.s8 %v3261
        %v3263 = vperm.slane %v3259, %v3262
        %v3264 = vrot.slane %v3157, 4
        %v3265 = vsel %vm641, %v3264, %v3141
        %v3267 = vunpack.c.l.s4 1983009808
        %v3268 = vunpack.c.0.s8 %v3267
        %v3269 = vperm.slane %v3265, %v3268
        %v3270 = vrot.slane %v3269, 4
        %v3271 = vsel %vm641, %v3270, %v3263
        %v3272 = vrot.slane %v3263, 4
        %v3273 = vsel %vm641, %v3269, %v3272
        %v3275 = vunpack.c.l.s4 1934713408
        %v3276 = vunpack.c.0.s8 %v3275
        %v3277 = vperm.slane %v3271, %v3276
        %v3279 = vunpack.c.l.s4 1934713408
        %v3280 = vunpack.c.0.s8 %v3279
        %v3281 = vperm.slane %v3273, %v3280
        %v3282 = vrot.slane %v3277, 4
        %v3283 = vsel %vm641, 0, %v3282
        %v3284 = vrot.slane %v3281, 4
        %v3285 = vsel %vm641, 0, %v3284
        %v3288 = vpack.i.b16 %v3221, %v3193
        %v3289 = vshrl.u32 %v3193, 16
        %v3290 = vshrl.u32 %v3221, 16
        %v3291 = vpack.i.b16 %v3290, %v3289
        %v3294 = vpack.i.b16 %v3227, %v3199
        %v3295 = vshrl.u32 %v3199, 16
        %v3296 = vshrl.u32 %v3227, 16
        %v3297 = vpack.i.b16 %v3296, %v3295
        %v3300 = vpack.i.b16 %v3225, %v3197
        %v3301 = vshrl.u32 %v3197, 16
        %v3302 = vshrl.u32 %v3225, 16
        %v3303 = vpack.i.b16 %v3302, %v3301
        %v3306 = vpack.i.b16 %v3229, %v3201
        %v3307 = vshrl.u32 %v3201, 16
        %v3308 = vshrl.u32 %v3229, 16
        %v3309 = vpack.i.b16 %v3308, %v3307
        %v3312 = vpack.i.b16 %v3277, %v3249
        %v3313 = vshrl.u32 %v3249, 16
        %v3314 = vshrl.u32 %v3277, 16
        %v3315 = vpack.i.b16 %v3314, %v3313
        %v3318 = vpack.i.b16 %v3283, %v3255
        %v3319 = vshrl.u32 %v3255, 16
        %v3320 = vshrl.u32 %v3283, 16
        %v3321 = vpack.i.b16 %v3320, %v3319
        %v3324 = vpack.i.b16 %v3281, %v3253
        %v3325 = vshrl.u32 %v3253, 16
        %v3326 = vshrl.u32 %v3281, 16
        %v3327 = vpack.i.b16 %v3326, %v3325
        %v3330 = vpack.i.b16 %v3285, %v3257
        %v3331 = vshrl.u32 %v3257, 16
        %v3332 = vshrl.u32 %v3285, 16
        %v3333 = vpack.i.b16 %v3332, %v3331
        %v3334 = vunpack.c.l.b16 %v3291
        %v3335 = vpack.c.b16 %v3334, %v3334
        %3336 = vrot.lane.b32.xlu0 %v3335, 16
        %v3337 = vpop.permute.xlu0 %3336
        %v3338 = vunpack.c.l.b16 %v3294
        %v3339 = vpack.c.b16 %v3338, %v3338
        %3340 = vrot.lane.b32.xlu0 %v3339, 32
        %v3341 = vpop.permute.xlu0 %3340
        %v3342 = vunpack.c.l.b16 %v3297
        %v3343 = vpack.c.b16 %v3342, %v3342
        %3344 = vrot.lane.b32.xlu0 %v3343, 48
        %v3345 = vpop.permute.xlu0 %3344
        %v3346 = vunpack.c.l.b16 %v3300
        %v3347 = vpack.c.b16 %v3346, %v3346
        %3348 = vrot.lane.b32.xlu0 %v3347, 64
        %v3349 = vpop.permute.xlu0 %3348
        %v3350 = vunpack.c.l.b16 %v3303
        %v3351 = vpack.c.b16 %v3350, %v3350
        %3352 = vrot.lane.b32.xlu0 %v3351, 80
        %v3353 = vpop.permute.xlu0 %3352
        %v3354 = vunpack.c.l.b16 %v3306
        %v3355 = vpack.c.b16 %v3354, %v3354
        %3356 = vrot.lane.b32.xlu0 %v3355, 96
        %v3357 = vpop.permute.xlu0 %3356
        %v3358 = vunpack.c.l.b16 %v3309
        %v3359 = vpack.c.b16 %v3358, %v3358
        %3360 = vrot.lane.b32.xlu0 %v3359, 112
        %v3361 = vpop.permute.xlu0 %3360
        %v3362 = vunpack.c.l.b16 %v3315
        %v3363 = vpack.c.b16 %v3362, %v3362
        %3364 = vrot.lane.b32.xlu0 %v3363, 16
        %v3365 = vpop.permute.xlu0 %3364
        %v3366 = vunpack.c.l.b16 %v3318
        %v3367 = vpack.c.b16 %v3366, %v3366
        %3368 = vrot.lane.b32.xlu0 %v3367, 32
        %v3369 = vpop.permute.xlu0 %3368
        %v3370 = vunpack.c.l.b16 %v3321
        %v3371 = vpack.c.b16 %v3370, %v3370
        %3372 = vrot.lane.b32.xlu0 %v3371, 48
        %v3373 = vpop.permute.xlu0 %3372
        %v3374 = vunpack.c.l.b16 %v3324
        %v3375 = vpack.c.b16 %v3374, %v3374
        %3376 = vrot.lane.b32.xlu0 %v3375, 64
        %v3377 = vpop.permute.xlu0 %3376
        %v3378 = vunpack.c.l.b16 %v3327
        %v3379 = vpack.c.b16 %v3378, %v3378
        %3380 = vrot.lane.b32.xlu0 %v3379, 80
        %v3381 = vpop.permute.xlu0 %3380
        %v3382 = vunpack.c.l.b16 %v3330
        %v3383 = vpack.c.b16 %v3382, %v3382
        %3384 = vrot.lane.b32.xlu0 %v3383, 96
        %v3385 = vpop.permute.xlu0 %3384
        %v3386 = vunpack.c.l.b16 %v3333
        %v3387 = vpack.c.b16 %v3386, %v3386
        %3388 = vrot.lane.b32.xlu0 %v3387, 112
        %v3389 = vpop.permute.xlu0 %3388
        %v3392 = vsel %vm857, %v3288, %v3337
        %v3394 = vsel %vm861, %v3392, %v3341
        %v3396 = vsel %vm864, %v3394, %v3345
        %v3398 = vsel %vm867, %v3396, %v3349
        %v3400 = vsel %vm870, %v3398, %v3353
        %v3402 = vsel %vm873, %v3400, %v3357
        %v3404 = vsel %vm876, %v3402, %v3361
        %v3407 = vsel %vm857, %v3312, %v3365
        %v3409 = vsel %vm861, %v3407, %v3369
        %v3411 = vsel %vm864, %v3409, %v3373
        %v3413 = vsel %vm867, %v3411, %v3377
        %v3415 = vsel %vm870, %v3413, %v3381
        %v3417 = vsel %vm873, %v3415, %v3385
        %v3419 = vsel %vm876, %v3417, %v3389
        %s3420 = scalar_lea.vmem %s4, 14
        %v3421 = vld [vmem:[%s3420] sm:$0x3]
        %v3423 = vsel %vm439, %v3421, 0
        %v3425 = vsel %vm446, %v3404, 0
        %v3427 = vsel %vm446, %v3419, 0
        %3429 = vmatpush.bf16.msra.mxu0 0
        %3430 = vmatpush.bf16.msra.mxu0 0
        %3431 = vmatpush.bf16.msra.mxu0 0
        %3432 = vmatpush.bf16.msra.mxu0 0
        %3433 = vmatpush.bf16.msra.mxu0 0
        %3434 = vmatpush.bf16.msra.mxu0 0
        %3435 = vmatpush.bf16.msra.mxu0 0
        %3436 = vmatpush.bf16.msra.mxu0 %v3425
        %3437 = vmatmul.bf16.gmra.mxu0 %v3423
        %v3438 = vpop.f32.mrf.mxu0
        %v3439 = vadd.f32 0.0, %v3438
        %v3440 = vpop.f32.mrf.mxu0
        %3441 = vdwg.mxu0
        %3442 = vmatpush.bf16.msra.mxu0 0
        %3443 = vmatpush.bf16.msra.mxu0 0
        %3444 = vmatpush.bf16.msra.mxu0 0
        %3445 = vmatpush.bf16.msra.mxu0 0
        %3446 = vmatpush.bf16.msra.mxu0 0
        %3447 = vmatpush.bf16.msra.mxu0 0
        %3448 = vmatpush.bf16.msra.mxu0 0
        %3449 = vmatpush.bf16.msra.mxu0 %v3427
        %3450 = vmatmul.bf16.gmra.mxu0 %v3423
        %v3451 = vpop.f32.mrf.mxu0
        %v3452 = vadd.f32 0.0, %v3451
        %v3453 = vpop.f32.mrf.mxu0
        %3454 = vdwg.mxu0
        %v3455 = vadd.f32 %v3124, %v3439
        %v3456 = vadd.f32 %v3125, %v3452
        %3457 = vrot.lane.b32.xlu0 %v2774, 126
        %v3458 = vpop.permute.xlu0 %3457
        %3459 = vrot.lane.b32.xlu0 %v2777, 126
        %v3460 = vpop.permute.xlu0 %3459
        %3461 = vrot.lane.b32.xlu0 %v2781, 126
        %v3462 = vpop.permute.xlu0 %3461
        %3463 = vrot.lane.b32.xlu0 %v2784, 126
        %v3464 = vpop.permute.xlu0 %3463
        %3465 = vrot.lane.b32.xlu0 %v2788, 126
        %v3466 = vpop.permute.xlu0 %3465
        %3467 = vrot.lane.b32.xlu0 %v2791, 126
        %v3468 = vpop.permute.xlu0 %3467
        %3469 = vrot.lane.b32.xlu0 %v2795, 126
        %v3470 = vpop.permute.xlu0 %3469
        %3471 = vrot.lane.b32.xlu0 %v2798, 126
        %v3472 = vpop.permute.xlu0 %3471
        %3473 = vrot.lane.b32.xlu0 %v2802, 126
        %v3474 = vpop.permute.xlu0 %3473
        %3475 = vrot.lane.b32.xlu0 %v2805, 126
        %v3476 = vpop.permute.xlu0 %3475
        %3477 = vrot.lane.b32.xlu0 %v2809, 126
        %v3478 = vpop.permute.xlu0 %3477
        %3479 = vrot.lane.b32.xlu0 %v2812, 126
        %v3480 = vpop.permute.xlu0 %3479
        %3481 = vrot.lane.b32.xlu0 %v2816, 126
        %v3482 = vpop.permute.xlu0 %3481
        %3483 = vrot.lane.b32.xlu0 %v2819, 126
        %v3484 = vpop.permute.xlu0 %3483
        %3485 = vrot.lane.b32.xlu0 %v2823, 126
        %v3486 = vpop.permute.xlu0 %3485
        %3487 = vrot.lane.b32.xlu0 %v2826, 126
        %v3488 = vpop.permute.xlu0 %3487
        %v3505 = vrot.slane %v3474, 4
        %v3506 = vsel %vm641, %v3505, %v3458
        %v3508 = vunpack.c.l.s4 1983009808
        %v3509 = vunpack.c.0.s8 %v3508
        %v3510 = vperm.slane %v3506, %v3509
        %v3511 = vrot.slane %v3482, 4
        %v3512 = vsel %vm641, %v3511, %v3466
        %v3514 = vunpack.c.l.s4 1983009808
        %v3515 = vunpack.c.0.s8 %v3514
        %v3516 = vperm.slane %v3512, %v3515
        %v3517 = vrot.slane %v3516, 4
        %v3518 = vsel %vm641, %v3517, %v3510
        %v3519 = vrot.slane %v3510, 4
        %v3520 = vsel %vm641, %v3516, %v3519
        %v3522 = vunpack.c.l.s4 1934713408
        %v3523 = vunpack.c.0.s8 %v3522
        %v3524 = vperm.slane %v3518, %v3523
        %v3526 = vunpack.c.l.s4 1934713408
        %v3527 = vunpack.c.0.s8 %v3526
        %v3528 = vperm.slane %v3520, %v3527
        %v3529 = vrot.slane %v3524, 4
        %v3530 = vsel %vm641, 0, %v3529
        %v3531 = vrot.slane %v3528, 4
        %v3532 = vsel %vm641, 0, %v3531
        %v3533 = vrot.slane %v3478, 4
        %v3534 = vsel %vm641, %v3533, %v3462
        %v3536 = vunpack.c.l.s4 1983009808
        %v3537 = vunpack.c.0.s8 %v3536
        %v3538 = vperm.slane %v3534, %v3537
        %v3539 = vrot.slane %v3486, 4
        %v3540 = vsel %vm641, %v3539, %v3470
        %v3542 = vunpack.c.l.s4 1983009808
        %v3543 = vunpack.c.0.s8 %v3542
        %v3544 = vperm.slane %v3540, %v3543
        %v3545 = vrot.slane %v3544, 4
        %v3546 = vsel %vm641, %v3545, %v3538
        %v3547 = vrot.slane %v3538, 4
        %v3548 = vsel %vm641, %v3544, %v3547
        %v3550 = vunpack.c.l.s4 1934713408
        %v3551 = vunpack.c.0.s8 %v3550
        %v3552 = vperm.slane %v3546, %v3551
        %v3554 = vunpack.c.l.s4 1934713408
        %v3555 = vunpack.c.0.s8 %v3554
        %v3556 = vperm.slane %v3548, %v3555
        %v3557 = vrot.slane %v3552, 4
        %v3558 = vsel %vm641, 0, %v3557
        %v3559 = vrot.slane %v3556, 4
        %v3560 = vsel %vm641, 0, %v3559
        %v3561 = vrot.slane %v3476, 4
        %v3562 = vsel %vm641, %v3561, %v3460
        %v3564 = vunpack.c.l.s4 1983009808
        %v3565 = vunpack.c.0.s8 %v3564
        %v3566 = vperm.slane %v3562, %v3565
        %v3567 = vrot.slane %v3484, 4
        %v3568 = vsel %vm641, %v3567, %v3468
        %v3570 = vunpack.c.l.s4 1983009808
        %v3571 = vunpack.c.0.s8 %v3570
        %v3572 = vperm.slane %v3568, %v3571
        %v3573 = vrot.slane %v3572, 4
        %v3574 = vsel %vm641, %v3573, %v3566
        %v3575 = vrot.slane %v3566, 4
        %v3576 = vsel %vm641, %v3572, %v3575
        %v3578 = vunpack.c.l.s4 1934713408
        %v3579 = vunpack.c.0.s8 %v3578
        %v3580 = vperm.slane %v3574, %v3579
        %v3582 = vunpack.c.l.s4 1934713408
        %v3583 = vunpack.c.0.s8 %v3582
        %v3584 = vperm.slane %v3576, %v3583
        %v3585 = vrot.slane %v3580, 4
        %v3586 = vsel %vm641, 0, %v3585
        %v3587 = vrot.slane %v3584, 4
        %v3588 = vsel %vm641, 0, %v3587
        %v3589 = vrot.slane %v3480, 4
        %v3590 = vsel %vm641, %v3589, %v3464
        %v3592 = vunpack.c.l.s4 1983009808
        %v3593 = vunpack.c.0.s8 %v3592
        %v3594 = vperm.slane %v3590, %v3593
        %v3595 = vrot.slane %v3488, 4
        %v3596 = vsel %vm641, %v3595, %v3472
        %v3598 = vunpack.c.l.s4 1983009808
        %v3599 = vunpack.c.0.s8 %v3598
        %v3600 = vperm.slane %v3596, %v3599
        %v3601 = vrot.slane %v3600, 4
        %v3602 = vsel %vm641, %v3601, %v3594
        %v3603 = vrot.slane %v3594, 4
        %v3604 = vsel %vm641, %v3600, %v3603
        %v3606 = vunpack.c.l.s4 1934713408
        %v3607 = vunpack.c.0.s8 %v3606
        %v3608 = vperm.slane %v3602, %v3607
        %v3610 = vunpack.c.l.s4 1934713408
        %v3611 = vunpack.c.0.s8 %v3610
        %v3612 = vperm.slane %v3604, %v3611
        %v3613 = vrot.slane %v3608, 4
        %v3614 = vsel %vm641, 0, %v3613
        %v3615 = vrot.slane %v3612, 4
        %v3616 = vsel %vm641, 0, %v3615
        %v3619 = vpack.i.b16 %v3552, %v3524
        %v3620 = vshrl.u32 %v3524, 16
        %v3621 = vshrl.u32 %v3552, 16
        %v3622 = vpack.i.b16 %v3621, %v3620
        %v3625 = vpack.i.b16 %v3558, %v3530
        %v3626 = vshrl.u32 %v3530, 16
        %v3627 = vshrl.u32 %v3558, 16
        %v3628 = vpack.i.b16 %v3627, %v3626
        %v3631 = vpack.i.b16 %v3556, %v3528
        %v3632 = vshrl.u32 %v3528, 16
        %v3633 = vshrl.u32 %v3556, 16
        %v3634 = vpack.i.b16 %v3633, %v3632
        %v3637 = vpack.i.b16 %v3560, %v3532
        %v3638 = vshrl.u32 %v3532, 16
        %v3639 = vshrl.u32 %v3560, 16
        %v3640 = vpack.i.b16 %v3639, %v3638
        %v3643 = vpack.i.b16 %v3608, %v3580
        %v3644 = vshrl.u32 %v3580, 16
        %v3645 = vshrl.u32 %v3608, 16
        %v3646 = vpack.i.b16 %v3645, %v3644
        %v3649 = vpack.i.b16 %v3614, %v3586
        %v3650 = vshrl.u32 %v3586, 16
        %v3651 = vshrl.u32 %v3614, 16
        %v3652 = vpack.i.b16 %v3651, %v3650
        %v3655 = vpack.i.b16 %v3612, %v3584
        %v3656 = vshrl.u32 %v3584, 16
        %v3657 = vshrl.u32 %v3612, 16
        %v3658 = vpack.i.b16 %v3657, %v3656
        %v3661 = vpack.i.b16 %v3616, %v3588
        %v3662 = vshrl.u32 %v3588, 16
        %v3663 = vshrl.u32 %v3616, 16
        %v3664 = vpack.i.b16 %v3663, %v3662
        %v3665 = vunpack.c.l.b16 %v3622
        %v3666 = vpack.c.b16 %v3665, %v3665
        %3667 = vrot.lane.b32.xlu0 %v3666, 16
        %v3668 = vpop.permute.xlu0 %3667
        %v3669 = vunpack.c.l.b16 %v3625
        %v3670 = vpack.c.b16 %v3669, %v3669
        %3671 = vrot.lane.b32.xlu0 %v3670, 32
        %v3672 = vpop.permute.xlu0 %3671
        %v3673 = vunpack.c.l.b16 %v3628
        %v3674 = vpack.c.b16 %v3673, %v3673
        %3675 = vrot.lane.b32.xlu0 %v3674, 48
        %v3676 = vpop.permute.xlu0 %3675
        %v3677 = vunpack.c.l.b16 %v3631
        %v3678 = vpack.c.b16 %v3677, %v3677
        %3679 = vrot.lane.b32.xlu0 %v3678, 64
        %v3680 = vpop.permute.xlu0 %3679
        %v3681 = vunpack.c.l.b16 %v3634
        %v3682 = vpack.c.b16 %v3681, %v3681
        %3683 = vrot.lane.b32.xlu0 %v3682, 80
        %v3684 = vpop.permute.xlu0 %3683
        %v3685 = vunpack.c.l.b16 %v3637
        %v3686 = vpack.c.b16 %v3685, %v3685
        %3687 = vrot.lane.b32.xlu0 %v3686, 96
        %v3688 = vpop.permute.xlu0 %3687
        %v3689 = vunpack.c.l.b16 %v3640
        %v3690 = vpack.c.b16 %v3689, %v3689
        %3691 = vrot.lane.b32.xlu0 %v3690, 112
        %v3692 = vpop.permute.xlu0 %3691
        %v3693 = vunpack.c.l.b16 %v3646
        %v3694 = vpack.c.b16 %v3693, %v3693
        %3695 = vrot.lane.b32.xlu0 %v3694, 16
        %v3696 = vpop.permute.xlu0 %3695
        %v3697 = vunpack.c.l.b16 %v3649
        %v3698 = vpack.c.b16 %v3697, %v3697
        %3699 = vrot.lane.b32.xlu0 %v3698, 32
        %v3700 = vpop.permute.xlu0 %3699
        %v3701 = vunpack.c.l.b16 %v3652
        %v3702 = vpack.c.b16 %v3701, %v3701
        %3703 = vrot.lane.b32.xlu0 %v3702, 48
        %v3704 = vpop.permute.xlu0 %3703
        %v3705 = vunpack.c.l.b16 %v3655
        %v3706 = vpack.c.b16 %v3705, %v3705
        %3707 = vrot.lane.b32.xlu0 %v3706, 64
        %v3708 = vpop.permute.xlu0 %3707
        %v3709 = vunpack.c.l.b16 %v3658
        %v3710 = vpack.c.b16 %v3709, %v3709
        %3711 = vrot.lane.b32.xlu0 %v3710, 80
        %v3712 = vpop.permute.xlu0 %3711
        %v3713 = vunpack.c.l.b16 %v3661
        %v3714 = vpack.c.b16 %v3713, %v3713
        %3715 = vrot.lane.b32.xlu0 %v3714, 96
        %v3716 = vpop.permute.xlu0 %3715
        %v3717 = vunpack.c.l.b16 %v3664
        %v3718 = vpack.c.b16 %v3717, %v3717
        %3719 = vrot.lane.b32.xlu0 %v3718, 112
        %v3720 = vpop.permute.xlu0 %3719
        %v3723 = vsel %vm857, %v3619, %v3668
        %v3725 = vsel %vm861, %v3723, %v3672
        %v3727 = vsel %vm864, %v3725, %v3676
        %v3729 = vsel %vm867, %v3727, %v3680
        %v3731 = vsel %vm870, %v3729, %v3684
        %v3733 = vsel %vm873, %v3731, %v3688
        %v3735 = vsel %vm876, %v3733, %v3692
        %v3738 = vsel %vm857, %v3643, %v3696
        %v3740 = vsel %vm861, %v3738, %v3700
        %v3742 = vsel %vm864, %v3740, %v3704
        %v3744 = vsel %vm867, %v3742, %v3708
        %v3746 = vsel %vm870, %v3744, %v3712
        %v3748 = vsel %vm873, %v3746, %v3716
        %v3750 = vsel %vm876, %v3748, %v3720
        %s3751 = scalar_lea.vmem %s4, 16
        %v3752 = vld [vmem:[%s3751] sm:$0x3]
        %v3754 = vsel %vm439, %v3752, 0
        %v3756 = vsel %vm446, %v3735, 0
        %v3758 = vsel %vm446, %v3750, 0
        %3760 = vmatpush.bf16.msra.mxu0 0
        %3761 = vmatpush.bf16.msra.mxu0 0
        %3762 = vmatpush.bf16.msra.mxu0 0
        %3763 = vmatpush.bf16.msra.mxu0 0
        %3764 = vmatpush.bf16.msra.mxu0 0
        %3765 = vmatpush.bf16.msra.mxu0 0
        %3766 = vmatpush.bf16.msra.mxu0 0
        %3767 = vmatpush.bf16.msra.mxu0 %v3756
        %3768 = vmatmul.bf16.gmra.mxu0 %v3754
        %v3769 = vpop.f32.mrf.mxu0
        %v3770 = vadd.f32 0.0, %v3769
        %v3771 = vpop.f32.mrf.mxu0
        %3772 = vdwg.mxu0
        %3773 = vmatpush.bf16.msra.mxu0 0
        %3774 = vmatpush.bf16.msra.mxu0 0
        %3775 = vmatpush.bf16.msra.mxu0 0
        %3776 = vmatpush.bf16.msra.mxu0 0
        %3777 = vmatpush.bf16.msra.mxu0 0
        %3778 = vmatpush.bf16.msra.mxu0 0
        %3779 = vmatpush.bf16.msra.mxu0 0
        %3780 = vmatpush.bf16.msra.mxu0 %v3758
        %3781 = vmatmul.bf16.gmra.mxu0 %v3754
        %v3782 = vpop.f32.mrf.mxu0
        %v3783 = vadd.f32 0.0, %v3782
        %v3784 = vpop.f32.mrf.mxu0
        %3785 = vdwg.mxu0
        %v3786 = vadd.f32 %v3455, %v3770
        %v3787 = vadd.f32 %v3456, %v3783
        %v3790 = vrot.slane %v3787, 4
        %v3791 = vsel %vm446, %v3786, %v3790
        %3793 = vst [vmem:[%s314] sm:$0xff] %v3791
        %v3794 = vsel %vm446, %v3786, 0.0
        %v3795 = vsel %vm446, %v3787, 0.0
        %v3796 = vadd.f32 %v3794, %v3795
        %3797 = vadd.xlane.f32.xlu0 %v3796
        %v3798 = vpop.xlane.xlu0 %3797
        %vm3799 = vcmask 3072
        %3800 = vst.msk [vmem:[%s335] sm:$0xf] %vm3799, %v3798
        %v3801 = vmul.f32 %v3786, %v3786
        %v3802 = vmul.f32 %v3787, %v3787
        %v3803 = vsel %vm446, %v3801, 0.0
        %v3804 = vsel %vm446, %v3802, 0.0
        %v3805 = vadd.f32 %v3803, %v3804
        %3806 = vadd.xlane.f32.xlu0 %v3805
        %v3807 = vpop.xlane.xlu0 %3806
        %3808 = vst.msk [vmem:[%s339] sm:$0xf] %vm3799, %v3807
        %s3809 = sand.u32 %s148, 1
        %s3810 = scalar_lea.sflag [#allocation5], %s3809
        %s3811 = sand.u32 %s148, 1
        %s3812 = smul.addr %s3811, 8
        %s3813 = scalar_lea.vmem [#allocation6], %s3812
        %p3814 = scmp.lt.s32.totalorder %s25, 1
        %s3815 = scalar_select %p3814, %s25, 1
        %s3816 = smul.addr %s3815, 4
        %s3817 = scalar_lea.vmem %s6, %s3816
        %p3818 = scmp.lt.s32.totalorder %s25, 1
        %s3819 = scalar_select %p3818, %s25, 1
        %s3820 = smul.addr %s3819, 4
        %s3821 = scalar_lea.vmem %s7, %s3820
        // Predicated region
        $region45: #{tpu_custom_call.1} parent=39 // pred_check
          %p3822 = pneg %p158
        $region46: #{tpu_custom_call.1} parent=39 // pred_check_branch
          %3824 = sbr.rel (%p3822) target = $region48
        $region47: #{tpu_custom_call.1} parent=39 // pred_region
          %3826 = vsyncadd %s3810, 0
          %s3827 = smul.addr %s25, 2
          %s3828 = smul.addr %s3827, 4
          %s3829 = scalar_lea.hbm %s5, %s3828
          %s3831 = sshll.u32 %s3813, 4
          %s3832 = int_to_ptr.vmem [resolvable:$true] %s3831
          %s3833 = sshll.u32 %s3829, 4
          %s3834 = int_to_ptr.hbm [resolvable:$true] %s3833
          %3836 = dma.vmem_to_hbm [thread:$0]  %s3832, 128, %s3834, %s3810
        $region48: #{tpu_custom_call.1} parent=39 // pred_fallthru
          _
        // Predicated region
        $region49: #{tpu_custom_call.1} parent=39 // pred_check
          %p3837 = pneg %p184
        $region50: #{tpu_custom_call.1} parent=39 // pred_check_branch
          %3839 = sbr.rel (%p3837) target = $region52
        $region51: #{tpu_custom_call.1} parent=39 // pred_region
          _
        $region52: #{tpu_custom_call.1} parent=39 // pred_fallthru
          _
        // Predicated region
        $region53: #{tpu_custom_call.1} parent=39 // pred_check
          %p3840 = pneg %p210
        $region54: #{tpu_custom_call.1} parent=39 // pred_check_branch
          %3842 = sbr.rel (%p3840) target = $region56
        $region55: #{tpu_custom_call.1} parent=39 // pred_region
          _
        $region56: #{tpu_custom_call.1} parent=39 // pred_fallthru
          _
      $region40: #{tpu_custom_call.1} parent=5 // pred_fallthru
        _
      %p3843 = scmp.le.s32.totalorder 2, %s20
      // Predicated region
      $region57: #{tpu_custom_call.1} parent=5 // pred_check
        %p3844 = pneg %p3843
      $region58: #{tpu_custom_call.1} parent=5 // pred_check_branch
        %3846 = sbr.rel (%p3844) target = $region60
      $region59: #{tpu_custom_call.1} parent=5 // pred_region
        %s3847 = ssub.s32 %s20, 2
        // Predicated region
        $region61: #{tpu_custom_call.1} parent=59 // pred_check
          %p3848 = pneg %p164
        $region62: #{tpu_custom_call.1} parent=59 // pred_check_branch
          %3850 = sbr.rel (%p3848) target = $region64
        $region63: #{tpu_custom_call.1} parent=59 // pred_region
          %s3851 = sand.u32 %s149, 1
          %s3852 = scalar_lea.sflag [#allocation5], %s3851
          %s3853 = sand.u32 %s149, 1
          %s3854 = smul.addr %s3853, 8
          %s3855 = scalar_lea.vmem [#allocation6], %s3854
          %3857 = dma.done %s3852, 128
        $region64: #{tpu_custom_call.1} parent=59 // pred_fallthru
          _
        // Predicated region
        $region65: #{tpu_custom_call.1} parent=59 // pred_check
          %p3858 = pneg %p190
        $region66: #{tpu_custom_call.1} parent=59 // pred_check_branch
          %3860 = sbr.rel (%p3858) target = $region68
        $region67: #{tpu_custom_call.1} parent=59 // pred_region
          %p3861 = scmp.lt.s32.totalorder %s26, 1
          %s3862 = scalar_select %p3861, %s26, 1
          %s3863 = smul.addr %s3862, 4
          %s3864 = scalar_lea.vmem %s6, %s3863
        $region68: #{tpu_custom_call.1} parent=59 // pred_fallthru
          _
        // Predicated region
        $region69: #{tpu_custom_call.1} parent=59 // pred_check
          %p3865 = pneg %p216
        $region70: #{tpu_custom_call.1} parent=59 // pred_check_branch
          %3867 = sbr.rel (%p3865) target = $region72
        $region71: #{tpu_custom_call.1} parent=59 // pred_region
          %p3868 = scmp.lt.s32.totalorder %s26, 1
          %s3869 = scalar_select %p3868, %s26, 1
          %s3870 = smul.addr %s3869, 4
          %s3871 = scalar_lea.vmem %s7, %s3870
        $region72: #{tpu_custom_call.1} parent=59 // pred_fallthru
          _
      $region60: #{tpu_custom_call.1} parent=5 // pred_fallthru
        _
    $region6: #{tpu_custom_call.1} parent=1 // loop_footer
      %s24 = sadd.s32 1, %s20
    $region7: #{tpu_custom_call.1} parent=1 // loop_footer_branch
      %19 = sbr.rel target = $region3
    $region8: #{tpu_custom_call.1} parent=1 // loop_exit
      _
    %3872 = vsyncpa [#allocation4], 1
    %s3873 = scalar_lea.sflag [#allocation4], 1
    %3874 = vsyncpa %s3873, 1
    %3875 = vsyncpa [#allocation5], 1
    %s3876 = scalar_lea.sflag [#allocation5], 1
    %3877 = vsyncpa %s3876, 1

</llo_original>
